<compile_context>
chip_gen: v7x
topology: tpu7x:2x2x1
jax: 0.10.0
libtpu: 0.0.40
codegen_flags: <defaults>
</compile_context>

<pallas_src>
import jax
import jax.numpy as jnp
import numpy as np
from jax import lax
from jax.experimental import pallas as pl
from jax.experimental.pallas import tpu as pltpu

C1 = 16        # conv output channels
CIN = 3        # input channels
KH = KW = 3    # conv kernel size
PACK = 4       # W-pool window packed into the conv1 matmul N dimension
U1 = KW + PACK - 1          # input columns needed per packed pixel group (6)
K1P = KH * U1 * CIN         # packed conv1 contraction size (54)


def _pick_bt(batch, H, W):
    """Largest batch tile that divides the batch, keeps >= 2 grid steps and
    stays well inside scoped VMEM (rough f32, lane-padded estimate)."""
    H2, W2 = H // 4, W // 4
    H3, W3 = H2 // 4, W2 // 4
    rup = lambda x, m: ((x + m - 1) // m) * m
    per_img = 4 * (
        2 * H * W2 * rup(K1P, 128)                       # xcol block (double-buffered)
        + (H2 + 2) * rup(W2 + 2, 8) * 128                # padded conv2 input scratch
        + H2 * rup(W2, 8) * rup(KH * KW * C1, 128)       # conv2 im2col slab
        + rup(H3 * W2, 8) * 128                          # pool2 W-stage scratch
        + rup(H3 * W3, 8) * 128                          # pooled features scratch
        + rup(H3 * W3 * C1, 128)                         # flattened features row
    )
    budget = 20 * 1024 * 1024
    for bt in (16, 8, 4, 2):
        if batch % bt == 0 and batch // bt >= 2 and bt * per_img <= budget:
            return bt
    return 1


def _make_kernel(Bt, H, W, A):
    H2, W2 = H // 4, W // 4
    H3, W3 = H2 // 4, W2 // 4
    K2 = KH * KW * C1          # 144
    F = H3 * W3 * C1
    M1 = Bt * H * W2           # conv1 matmul rows (one row per 4-pixel group)

    def kernel(xcol_ref, w1_ref, b1_ref, w2_ref, b2_ref, wh_ref, bh_ref,
               out_ref, p1pad, col2, s2, s3, featsc):
        f32 = jnp.float32

        # ---- conv1: single packed matmul on the MXU (N lanes = (pool-pixel j, co)) ----
        lhs1 = xcol_ref[...].reshape(M1, K1P)                         # (Bt*H*W2, 54)
        a1 = jnp.dot(lhs1, w1_ref[...], preferred_element_type=f32) + b1_ref[...]
        # (M1, 64): lanes [j*16 : (j+1)*16] hold conv1 output for pixel w = 4*q + j

        # ---- maxpool W: tree-max over the 4 packed 16-lane groups (in-register) ----
        t = jnp.maximum(a1[:, :2 * C1], a1[:, 2 * C1:4 * C1])         # (M1, 32)
        pw = jnp.maximum(t[:, :C1], t[:, C1:2 * C1])                  # (M1, 16)

        # ---- maxpool H + relu: regroup rows (free leading-dim slices) ----
        v = pw.reshape(Bt * H2, 4, W2, C1)
        vh = jnp.maximum(jnp.maximum(v[:, 0], v[:, 1]),
                         jnp.maximum(v[:, 2], v[:, 3]))               # (Bt*H2, W2, C1)
        p1 = jnp.maximum(vh, 0.0).reshape(Bt, H2, W2, C1)

        # ---- conv2 input: zero only the 1-px border, write the interior ----
        p1pad[:, 0:1, :, :] = jnp.zeros((Bt, 1, W2 + 2, C1), f32)
        p1pad[:, H2 + 1:H2 + 2, :, :] = jnp.zeros((Bt, 1, W2 + 2, C1), f32)
        p1pad[:, 1:H2 + 1, 0:1, :] = jnp.zeros((Bt, H2, 1, C1), f32)
        p1pad[:, 1:H2 + 1, W2 + 1:W2 + 2, :] = jnp.zeros((Bt, H2, 1, C1), f32)
        p1pad[:, 1:H2 + 1, 1:W2 + 1, :] = p1

        # ---- conv2: in-kernel im2col (9 small slice copies) + single matmul ----
        for dy in range(KH):
            for dx in range(KW):
                tap = dy * KW + dx
                col2[:, :, :, tap * C1:(tap + 1) * C1] = p1pad[:, dy:dy + H2, dx:dx + W2, :]
        a2 = jnp.dot(col2[...].reshape(Bt * H2 * W2, K2), w2_ref[...],
                     preferred_element_type=f32) + b2_ref[...]        # (Bt*H2*W2, 16)

        # ---- maxpool 4x4 + relu ----
        u = a2.reshape(Bt * H3, 4, W2, C1)
        uh = jnp.maximum(jnp.maximum(u[:, 0], u[:, 1]),
                         jnp.maximum(u[:, 2], u[:, 3]))               # (Bt*H3, W2, C1)
        s2[...] = uh.reshape(Bt * H3 * W2, C1)
        n2 = Bt * H3 * W3
        p2 = jnp.maximum(
            jnp.maximum(s2[pl.ds(0, n2, stride=4), :], s2[pl.ds(1, n2, stride=4), :]),
            jnp.maximum(s2[pl.ds(2, n2, stride=4), :], s2[pl.ds(3, n2, stride=4), :]))
        p2 = jnp.maximum(p2, 0.0)                                     # (Bt*H3*W3, 16)

        # ---- flatten (h3, w3, c) features into lanes + single head matmul ----
        s3[...] = p2
        for pos in range(H3 * W3):                                    # tiny (e.g. 4)
            featsc[:, pos * C1:(pos + 1) * C1] = s3[pl.ds(pos, Bt, stride=H3 * W3), :]
        out_ref[...] = (jnp.dot(featsc[...], wh_ref[...], preferred_element_type=f32)
                        + bh_ref[...])

    return kernel


@jax.jit
def net_forward(x_nchw, params):
    """Pallas forward pass. x_nchw: (B, 3, H, W) float32 -> (B, num_actions)."""
    w1, b1, w2, b2, hw, hb = params
    B, cin, H, W = x_nchw.shape
    assert cin == CIN and H % 16 == 0 and W % 16 == 0
    A = hb.shape[0]
    H2, W2 = H // 4, W // 4
    H3, W3 = H2 // 4, W2 // 4
    F = H3 * W3 * C1
    K2 = KH * KW * C1

    Bt = _pick_bt(B, H, W)
    G = B // Bt

    # ---------- wrapper-side layout plumbing (no FLOPs) ----------
    x_hwc = jnp.transpose(x_nchw, (0, 2, 3, 1))                      # (B, H, W, 3)
    xp = jnp.pad(x_hwc, ((0, 0), (1, 1), (1, 1), (0, 0)))            # (B, H+2, W+2, 3)

    # Packed im2col: for each 4-wide pool group q, gather the 6 halo columns
    # (per kernel row dy) it needs.  lane index = (dy*6 + u)*3 + c.
    slabs = []
    for dy in range(KH):
        rows = xp[:, dy:dy + H, :, :]                                # (B, H, W+2, 3)
        for u in range(U1):
            slabs.append(rows[:, :, u:u + 4 * (W2 - 1) + 1:4, :])    # (B, H, W2, 3)
    xcol = jnp.concatenate(slabs, axis=-1)                           # (B, H, W2, 54)

    # Packed banded conv1 weight: w1p[(dy*6+u)*3+c, j*16+co] = w1[co,c,dy,u-j]
    w1_t = jnp.transpose(w1, (2, 3, 1, 0))                           # (ky, kx, ci, co)
    w1p = jnp.zeros((KH, U1, CIN, PACK, C1), w1.dtype)
    for j in range(PACK):
        w1p = w1p.at[:, j:j + KW, :, j, :].set(w1_t)
    w1p = w1p.reshape(K1P, PACK * C1)                                # (54, 64)
    b1p = jnp.tile(b1, PACK).reshape(1, PACK * C1)                   # (1, 64)

    w2_k = jnp.transpose(w2, (2, 3, 1, 0)).reshape(K2, C1)           # (144, 16)
    b2_k = b2.reshape(1, C1)
    wh_k = jnp.transpose(hw.reshape(A, C1, H3, W3), (2, 3, 1, 0)).reshape(F, A)
    bh_k = hb.reshape(1, A)

    kernel = _make_kernel(Bt, H, W, A)

    flops = (2 * B * H * W2 * K1P * PACK * C1
             + 2 * B * H2 * W2 * K2 * C1
             + 2 * B * F * A)
    bytes_accessed = 4 * (xcol.size + w1p.size + b1p.size + w2_k.size + b2_k.size
                          + wh_k.size + bh_k.size + B * A)

    out = pl.pallas_call(
        kernel,
        out_shape=jax.ShapeDtypeStruct((G, Bt, A), jnp.float32),
        grid_spec=pltpu.PrefetchScalarGridSpec(
            num_scalar_prefetch=0,
            grid=(G,),
            in_specs=[
                pl.BlockSpec((Bt, H, W2, K1P), lambda i: (i, 0, 0, 0)),
                pl.BlockSpec((K1P, PACK * C1), lambda i: (0, 0)),
                pl.BlockSpec((1, PACK * C1), lambda i: (0, 0)),
                pl.BlockSpec((K2, C1), lambda i: (0, 0)),
                pl.BlockSpec((1, C1), lambda i: (0, 0)),
                pl.BlockSpec((F, A), lambda i: (0, 0)),
                pl.BlockSpec((1, A), lambda i: (0, 0)),
            ],
            out_specs=pl.BlockSpec((None, Bt, A), lambda i: (i, 0, 0)),
            scratch_shapes=[
                pltpu.VMEM((Bt, H2 + 2, W2 + 2, C1), jnp.float32),    # padded conv2 input
                pltpu.VMEM((Bt, H2, W2, K2), jnp.float32),            # conv2 im2col slab
                pltpu.VMEM((Bt * H3 * W2, C1), jnp.float32),          # pool2 W-stage
                pltpu.VMEM((Bt * H3 * W3, C1), jnp.float32),          # pooled features
                pltpu.VMEM((Bt, F), jnp.float32),                     # flattened features
            ],
        ),
        compiler_params=pltpu.CompilerParams(
            dimension_semantics=("parallel",),
            vmem_limit_bytes=32 * 1024 * 1024,
        ),
        cost_estimate=pl.CostEstimate(flops=flops, transcendentals=0,
                                      bytes_accessed=bytes_accessed),
    )(xcol, w1p, b1p, w2_k, b2_k, wh_k, bh_k)
    return out.reshape(B, A)


def net_reference(x_nchw, params):
    """Pure-JAX reference reproducing PyTorch semantics (NCHW)."""
    w1, b1, w2, b2, hw, hb = params
    B = x_nchw.shape[0]
    dn = ("NCHW", "OIHW", "NCHW")
    y = lax.conv_general_dilated(x_nchw, w1, (1, 1), ((1, 1), (1, 1)),
                                 dimension_numbers=dn)
    y = y + b1[None, :, None, None]
    y = lax.reduce_window(y, -jnp.inf, lax.max, (1, 1, 4, 4), (1, 1, 4, 4), "VALID")
    y = jnp.maximum(y, 0.0)
    y = lax.conv_general_dilated(y, w2, (1, 1), ((1, 1), (1, 1)),
                                 dimension_numbers=dn)
    y = y + b2[None, :, None, None]
    y = lax.reduce_window(y, -jnp.inf, lax.max, (1, 1, 4, 4), (1, 1, 4, 4), "VALID")
    y = jnp.maximum(y, 0.0)
    feat = y.reshape(B, -1)
    return feat @ hw.T + hb


if __name__ == "__main__":
    B, IMG_H, IMG_W, NUM_ACTIONS = 8, 32, 32, 4
    H3, W3 = IMG_H // 16, IMG_W // 16

    key = jax.random.PRNGKey(0)
    ks = jax.random.split(key, 7)
    w1 = 0.1 * jax.random.normal(ks[0], (16, 3, 3, 3), jnp.float32)   # Conv2d(3, 16, 3)
    b1 = 0.1 * jax.random.normal(ks[1], (16,), jnp.float32)
    w2 = 0.1 * jax.random.normal(ks[2], (16, 16, 3, 3), jnp.float32)  # Conv2d(16, 16, 3)
    b2 = 0.1 * jax.random.normal(ks[3], (16,), jnp.float32)
    hw = 0.1 * jax.random.normal(ks[4], (NUM_ACTIONS, 16 * H3 * W3), jnp.float32)
    hb = 0.1 * jax.random.normal(ks[5], (NUM_ACTIONS,), jnp.float32)
    x = jax.random.normal(ks[6], (B, 3, IMG_H, IMG_W), jnp.float32)
    params = (w1, b1, w2, b2, hw, hb)

    out = jax.block_until_ready(net_forward(x, params))
    ref = jax.block_until_ready(net_reference(x, params))
    assert out.shape == (B, NUM_ACTIONS)
    np.testing.assert_allclose(np.asarray(out), np.asarray(ref), rtol=1e-4, atol=1e-4)
    print("KERNEL_OK")
</pallas_src>

<mosaic_0001>
module attributes {stable_mosaic.version = 11 : i64} {
  func.func @kernel(%arg0: i32, %arg1: memref<4x32x8x54xf32, #tpu.memory_space<vmem>>, %arg2: memref<54x64xf32, #tpu.memory_space<vmem>>, %arg3: memref<1x64xf32, #tpu.memory_space<vmem>>, %arg4: memref<144x16xf32, #tpu.memory_space<vmem>>, %arg5: memref<1x16xf32, #tpu.memory_space<vmem>>, %arg6: memref<64x4xf32, #tpu.memory_space<vmem>>, %arg7: memref<1x4xf32, #tpu.memory_space<vmem>>, %arg8: memref<1x4x4xf32, #tpu.memory_space<vmem>>, %arg9: memref<4x10x10x16xf32, #tpu.memory_space<vmem>>, %arg10: memref<4x8x8x144xf32, #tpu.memory_space<vmem>>, %arg11: memref<64x16xf32, #tpu.memory_space<vmem>>, %arg12: memref<16x16xf32, #tpu.memory_space<vmem>>, %arg13: memref<4x64xf32, #tpu.memory_space<vmem>>) attributes {dimension_semantics = [#tpu.dimension_semantics<parallel>], iteration_bounds = array<i64: 2>, scalar_prefetch = 0 : i64, scratch_operands = 5 : i64, tpu.core_type = #tpu.core_type<tc>, window_params = [{transform_indices = @transform_0, window_bounds = array<i64: 4, 32, 8, 54>}, {pipeline_mode = #tpu.pipeline_mode<synchronous>, transform_indices = @transform_1, window_bounds = array<i64: 54, 64>}, {pipeline_mode = #tpu.pipeline_mode<synchronous>, transform_indices = @transform_2, window_bounds = array<i64: 1, 64>}, {pipeline_mode = #tpu.pipeline_mode<synchronous>, transform_indices = @transform_3, window_bounds = array<i64: 144, 16>}, {pipeline_mode = #tpu.pipeline_mode<synchronous>, transform_indices = @transform_4, window_bounds = array<i64: 1, 16>}, {pipeline_mode = #tpu.pipeline_mode<synchronous>, transform_indices = @transform_5, window_bounds = array<i64: 64, 4>}, {pipeline_mode = #tpu.pipeline_mode<synchronous>, transform_indices = @transform_6, window_bounds = array<i64: 1, 4>}, {transform_indices = @transform_7, window_bounds = array<i64: 1, 4, 4>}]} {
    %c0 = arith.constant 0 : index
    %c0_0 = arith.constant 0 : index
    %c0_1 = arith.constant 0 : index
    %c0_2 = arith.constant 0 : index
    %0 = vector.load %arg1[%c0, %c0_0, %c0_1, %c0_2] : memref<4x32x8x54xf32, #tpu.memory_space<vmem>>, vector<4x32x8x54xf32>
    %1 = vector.shape_cast %0 : vector<4x32x8x54xf32> to vector<1024x54xf32>
    %c0_3 = arith.constant 0 : index
    %c0_4 = arith.constant 0 : index
    %2 = vector.load %arg2[%c0_3, %c0_4] : memref<54x64xf32, #tpu.memory_space<vmem>>, vector<54x64xf32>
    %cst = arith.constant dense<0.000000e+00> : vector<1024x64xf32>
    %3 = tpu.matmul %1, %2, %cst {dimension_numbers = #tpu.dot_dimension_numbers<[1], [0], [0], [1], [0, 0, 1, 1], [], []>} : vector<1024x54xf32>, vector<54x64xf32>, vector<1024x64xf32> -> vector<1024x64xf32>
    %c0_5 = arith.constant 0 : index
    %c0_6 = arith.constant 0 : index
    %4 = vector.load %arg3[%c0_5, %c0_6] : memref<1x64xf32, #tpu.memory_space<vmem>>, vector<1x64xf32>
    %5 = vector.broadcast %4 : vector<1x64xf32> to vector<1024x64xf32>
    %6 = arith.addf %3, %5 : vector<1024x64xf32>
    %7 = vector.extract_strided_slice %6 {offsets = [0, 0], sizes = [1024, 32], strides = [1, 1]} : vector<1024x64xf32> to vector<1024x32xf32>
    %8 = vector.extract_strided_slice %6 {offsets = [0, 32], sizes = [1024, 32], strides = [1, 1]} : vector<1024x64xf32> to vector<1024x32xf32>
    %9 = arith.maximumf %7, %8 : vector<1024x32xf32>
    %10 = vector.extract_strided_slice %9 {offsets = [0, 0], sizes = [1024, 16], strides = [1, 1]} : vector<1024x32xf32> to vector<1024x16xf32>
    %11 = vector.extract_strided_slice %9 {offsets = [0, 16], sizes = [1024, 16], strides = [1, 1]} : vector<1024x32xf32> to vector<1024x16xf32>
    %12 = arith.maximumf %10, %11 : vector<1024x16xf32>
    %13 = vector.shape_cast %12 : vector<1024x16xf32> to vector<32x4x8x16xf32>
    %14 = vector.extract_strided_slice %13 {offsets = [0, 0, 0, 0], sizes = [32, 1, 8, 16], strides = [1, 1, 1, 1]} : vector<32x4x8x16xf32> to vector<32x1x8x16xf32>
    %15 = vector.shape_cast %14 : vector<32x1x8x16xf32> to vector<32x8x16xf32>
    %16 = vector.extract_strided_slice %13 {offsets = [0, 1, 0, 0], sizes = [32, 1, 8, 16], strides = [1, 1, 1, 1]} : vector<32x4x8x16xf32> to vector<32x1x8x16xf32>
    %17 = vector.shape_cast %16 : vector<32x1x8x16xf32> to vector<32x8x16xf32>
    %18 = arith.maximumf %15, %17 : vector<32x8x16xf32>
    %19 = vector.extract_strided_slice %13 {offsets = [0, 2, 0, 0], sizes = [32, 1, 8, 16], strides = [1, 1, 1, 1]} : vector<32x4x8x16xf32> to vector<32x1x8x16xf32>
    %20 = vector.shape_cast %19 : vector<32x1x8x16xf32> to vector<32x8x16xf32>
    %21 = vector.extract_strided_slice %13 {offsets = [0, 3, 0, 0], sizes = [32, 1, 8, 16], strides = [1, 1, 1, 1]} : vector<32x4x8x16xf32> to vector<32x1x8x16xf32>
    %22 = vector.shape_cast %21 : vector<32x1x8x16xf32> to vector<32x8x16xf32>
    %23 = arith.maximumf %20, %22 : vector<32x8x16xf32>
    %24 = arith.maximumf %18, %23 : vector<32x8x16xf32>
    %cst_7 = arith.constant 0.000000e+00 : f32
    %25 = vector.broadcast %cst_7 : f32 to vector<32x8x16xf32>
    %26 = arith.maximumf %24, %25 : vector<32x8x16xf32>
    %27 = vector.shape_cast %26 : vector<32x8x16xf32> to vector<4x8x8x16xf32>
    %cst_8 = arith.constant 0.000000e+00 : f32
    %28 = vector.broadcast %cst_8 : f32 to vector<4x1x10x16xf32>
    %c0_9 = arith.constant 0 : index
    %c0_10 = arith.constant 0 : index
    %c0_11 = arith.constant 0 : index
    %c0_12 = arith.constant 0 : index
    %29 = vector.load %arg9[%c0_9, %c0_10, %c0_11, %c0_12] : memref<4x10x10x16xf32, #tpu.memory_space<vmem>>, vector<4x1x10x16xf32>
    tpu.vector_store %arg9[%c0_9, %c0_10, %c0_11, %c0_12], %28 {strides = array<i32>} : memref<4x10x10x16xf32, #tpu.memory_space<vmem>>, vector<4x1x10x16xf32>,
    %cst_13 = arith.constant 0.000000e+00 : f32
    %30 = vector.broadcast %cst_13 : f32 to vector<4x1x10x16xf32>
    %c0_14 = arith.constant 0 : index
    %c9 = arith.constant 9 : index
    %c0_15 = arith.constant 0 : index
    %c0_16 = arith.constant 0 : index
    %31 = vector.load %arg9[%c0_14, %c9, %c0_15, %c0_16] : memref<4x10x10x16xf32, #tpu.memory_space<vmem>>, vector<4x1x10x16xf32>
    tpu.vector_store %arg9[%c0_14, %c9, %c0_15, %c0_16], %30 {strides = array<i32>} : memref<4x10x10x16xf32, #tpu.memory_space<vmem>>, vector<4x1x10x16xf32>,
    %cst_17 = arith.constant 0.000000e+00 : f32
    %32 = vector.broadcast %cst_17 : f32 to vector<4x8x1x16xf32>
    %c0_18 = arith.constant 0 : index
    %c1 = arith.constant 1 : index
    %c0_19 = arith.constant 0 : index
    %c0_20 = arith.constant 0 : index
    %33 = vector.load %arg9[%c0_18, %c1, %c0_19, %c0_20] : memref<4x10x10x16xf32, #tpu.memory_space<vmem>>, vector<4x8x1x16xf32>
    tpu.vector_store %arg9[%c0_18, %c1, %c0_19, %c0_20], %32 {strides = array<i32>} : memref<4x10x10x16xf32, #tpu.memory_space<vmem>>, vector<4x8x1x16xf32>,
    %cst_21 = arith.constant 0.000000e+00 : f32
    %34 = vector.broadcast %cst_21 : f32 to vector<4x8x1x16xf32>
    %c0_22 = arith.constant 0 : index
    %c1_23 = arith.constant 1 : index
    %c9_24 = arith.constant 9 : index
    %c0_25 = arith.constant 0 : index
    %35 = vector.load %arg9[%c0_22, %c1_23, %c9_24, %c0_25] : memref<4x10x10x16xf32, #tpu.memory_space<vmem>>, vector<4x8x1x16xf32>
    tpu.vector_store %arg9[%c0_22, %c1_23, %c9_24, %c0_25], %34 {strides = array<i32>} : memref<4x10x10x16xf32, #tpu.memory_space<vmem>>, vector<4x8x1x16xf32>,
    %c0_26 = arith.constant 0 : index
    %c1_27 = arith.constant 1 : index
    %c1_28 = arith.constant 1 : index
    %c0_29 = arith.constant 0 : index
    %36 = vector.load %arg9[%c0_26, %c1_27, %c1_28, %c0_29] : memref<4x10x10x16xf32, #tpu.memory_space<vmem>>, vector<4x8x8x16xf32>
    tpu.vector_store %arg9[%c0_26, %c1_27, %c1_28, %c0_29], %27 {strides = array<i32>} : memref<4x10x10x16xf32, #tpu.memory_space<vmem>>, vector<4x8x8x16xf32>,
    %c0_30 = arith.constant 0 : index
    %c0_31 = arith.constant 0 : index
    %c0_32 = arith.constant 0 : index
    %c0_33 = arith.constant 0 : index
    %37 = vector.load %arg9[%c0_30, %c0_31, %c0_32, %c0_33] : memref<4x10x10x16xf32, #tpu.memory_space<vmem>>, vector<4x8x8x16xf32>
    %c0_34 = arith.constant 0 : index
    %c0_35 = arith.constant 0 : index
    %c0_36 = arith.constant 0 : index
    %c0_37 = arith.constant 0 : index
    %38 = vector.load %arg10[%c0_34, %c0_35, %c0_36, %c0_37] : memref<4x8x8x144xf32, #tpu.memory_space<vmem>>, vector<4x8x8x16xf32>
    tpu.vector_store %arg10[%c0_34, %c0_35, %c0_36, %c0_37], %37 {strides = array<i32>} : memref<4x8x8x144xf32, #tpu.memory_space<vmem>>, vector<4x8x8x16xf32>,
    %c0_38 = arith.constant 0 : index
    %c0_39 = arith.constant 0 : index
    %c1_40 = arith.constant 1 : index
    %c0_41 = arith.constant 0 : index
    %39 = vector.load %arg9[%c0_38, %c0_39, %c1_40, %c0_41] : memref<4x10x10x16xf32, #tpu.memory_space<vmem>>, vector<4x8x8x16xf32>
    %c0_42 = arith.constant 0 : index
    %c0_43 = arith.constant 0 : index
    %c0_44 = arith.constant 0 : index
    %c16 = arith.constant 16 : index
    %40 = vector.load %arg10[%c0_42, %c0_43, %c0_44, %c16] : memref<4x8x8x144xf32, #tpu.memory_space<vmem>>, vector<4x8x8x16xf32>
    tpu.vector_store %arg10[%c0_42, %c0_43, %c0_44, %c16], %39 {strides = array<i32>} : memref<4x8x8x144xf32, #tpu.memory_space<vmem>>, vector<4x8x8x16xf32>,
    %c0_45 = arith.constant 0 : index
    %c0_46 = arith.constant 0 : index
    %c2 = arith.constant 2 : index
    %c0_47 = arith.constant 0 : index
    %41 = vector.load %arg9[%c0_45, %c0_46, %c2, %c0_47] : memref<4x10x10x16xf32, #tpu.memory_space<vmem>>, vector<4x8x8x16xf32>
    %c0_48 = arith.constant 0 : index
    %c0_49 = arith.constant 0 : index
    %c0_50 = arith.constant 0 : index
    %c32 = arith.constant 32 : index
    %42 = vector.load %arg10[%c0_48, %c0_49, %c0_50, %c32] : memref<4x8x8x144xf32, #tpu.memory_space<vmem>>, vector<4x8x8x16xf32>
    tpu.vector_store %arg10[%c0_48, %c0_49, %c0_50, %c32], %41 {strides = array<i32>} : memref<4x8x8x144xf32, #tpu.memory_space<vmem>>, vector<4x8x8x16xf32>,
    %c0_51 = arith.constant 0 : index
    %c1_52 = arith.constant 1 : index
    %c0_53 = arith.constant 0 : index
    %c0_54 = arith.constant 0 : index
    %43 = vector.load %arg9[%c0_51, %c1_52, %c0_53, %c0_54] : memref<4x10x10x16xf32, #tpu.memory_space<vmem>>, vector<4x8x8x16xf32>
    %c0_55 = arith.constant 0 : index
    %c0_56 = arith.constant 0 : index
    %c0_57 = arith.constant 0 : index
    %c48 = arith.constant 48 : index
    %44 = vector.load %arg10[%c0_55, %c0_56, %c0_57, %c48] : memref<4x8x8x144xf32, #tpu.memory_space<vmem>>, vector<4x8x8x16xf32>
    tpu.vector_store %arg10[%c0_55, %c0_56, %c0_57, %c48], %43 {strides = array<i32>} : memref<4x8x8x144xf32, #tpu.memory_space<vmem>>, vector<4x8x8x16xf32>,
    %c0_58 = arith.constant 0 : index
    %c1_59 = arith.constant 1 : index
    %c1_60 = arith.constant 1 : index
    %c0_61 = arith.constant 0 : index
    %45 = vector.load %arg9[%c0_58, %c1_59, %c1_60, %c0_61] : memref<4x10x10x16xf32, #tpu.memory_space<vmem>>, vector<4x8x8x16xf32>
    %c0_62 = arith.constant 0 : index
    %c0_63 = arith.constant 0 : index
    %c0_64 = arith.constant 0 : index
    %c64 = arith.constant 64 : index
    %46 = vector.load %arg10[%c0_62, %c0_63, %c0_64, %c64] : memref<4x8x8x144xf32, #tpu.memory_space<vmem>>, vector<4x8x8x16xf32>
    tpu.vector_store %arg10[%c0_62, %c0_63, %c0_64, %c64], %45 {strides = array<i32>} : memref<4x8x8x144xf32, #tpu.memory_space<vmem>>, vector<4x8x8x16xf32>,
    %c0_65 = arith.constant 0 : index
    %c1_66 = arith.constant 1 : index
    %c2_67 = arith.constant 2 : index
    %c0_68 = arith.constant 0 : index
    %47 = vector.load %arg9[%c0_65, %c1_66, %c2_67, %c0_68] : memref<4x10x10x16xf32, #tpu.memory_space<vmem>>, vector<4x8x8x16xf32>
    %c0_69 = arith.constant 0 : index
    %c0_70 = arith.constant 0 : index
    %c0_71 = arith.constant 0 : index
    %c80 = arith.constant 80 : index
    %48 = vector.load %arg10[%c0_69, %c0_70, %c0_71, %c80] : memref<4x8x8x144xf32, #tpu.memory_space<vmem>>, vector<4x8x8x16xf32>
    tpu.vector_store %arg10[%c0_69, %c0_70, %c0_71, %c80], %47 {strides = array<i32>} : memref<4x8x8x144xf32, #tpu.memory_space<vmem>>, vector<4x8x8x16xf32>,
    %c0_72 = arith.constant 0 : index
    %c2_73 = arith.constant 2 : index
    %c0_74 = arith.constant 0 : index
    %c0_75 = arith.constant 0 : index
    %49 = vector.load %arg9[%c0_72, %c2_73, %c0_74, %c0_75] : memref<4x10x10x16xf32, #tpu.memory_space<vmem>>, vector<4x8x8x16xf32>
    %c0_76 = arith.constant 0 : index
    %c0_77 = arith.constant 0 : index
    %c0_78 = arith.constant 0 : index
    %c96 = arith.constant 96 : index
    %50 = vector.load %arg10[%c0_76, %c0_77, %c0_78, %c96] : memref<4x8x8x144xf32, #tpu.memory_space<vmem>>, vector<4x8x8x16xf32>
    tpu.vector_store %arg10[%c0_76, %c0_77, %c0_78, %c96], %49 {strides = array<i32>} : memref<4x8x8x144xf32, #tpu.memory_space<vmem>>, vector<4x8x8x16xf32>,
    %c0_79 = arith.constant 0 : index
    %c2_80 = arith.constant 2 : index
    %c1_81 = arith.constant 1 : index
    %c0_82 = arith.constant 0 : index
    %51 = vector.load %arg9[%c0_79, %c2_80, %c1_81, %c0_82] : memref<4x10x10x16xf32, #tpu.memory_space<vmem>>, vector<4x8x8x16xf32>
    %c0_83 = arith.constant 0 : index
    %c0_84 = arith.constant 0 : index
    %c0_85 = arith.constant 0 : index
    %c112 = arith.constant 112 : index
    %52 = vector.load %arg10[%c0_83, %c0_84, %c0_85, %c112] : memref<4x8x8x144xf32, #tpu.memory_space<vmem>>, vector<4x8x8x16xf32>
    tpu.vector_store %arg10[%c0_83, %c0_84, %c0_85, %c112], %51 {strides = array<i32>} : memref<4x8x8x144xf32, #tpu.memory_space<vmem>>, vector<4x8x8x16xf32>,
    %c0_86 = arith.constant 0 : index
    %c2_87 = arith.constant 2 : index
    %c2_88 = arith.constant 2 : index
    %c0_89 = arith.constant 0 : index
    %53 = vector.load %arg9[%c0_86, %c2_87, %c2_88, %c0_89] : memref<4x10x10x16xf32, #tpu.memory_space<vmem>>, vector<4x8x8x16xf32>
    %c0_90 = arith.constant 0 : index
    %c0_91 = arith.constant 0 : index
    %c0_92 = arith.constant 0 : index
    %c128 = arith.constant 128 : index
    %54 = vector.load %arg10[%c0_90, %c0_91, %c0_92, %c128] : memref<4x8x8x144xf32, #tpu.memory_space<vmem>>, vector<4x8x8x16xf32>
    tpu.vector_store %arg10[%c0_90, %c0_91, %c0_92, %c128], %53 {strides = array<i32>} : memref<4x8x8x144xf32, #tpu.memory_space<vmem>>, vector<4x8x8x16xf32>,
    %c0_93 = arith.constant 0 : index
    %c0_94 = arith.constant 0 : index
    %c0_95 = arith.constant 0 : index
    %c0_96 = arith.constant 0 : index
    %55 = vector.load %arg10[%c0_93, %c0_94, %c0_95, %c0_96] : memref<4x8x8x144xf32, #tpu.memory_space<vmem>>, vector<4x8x8x144xf32>
    %56 = vector.shape_cast %55 : vector<4x8x8x144xf32> to vector<256x144xf32>
    %c0_97 = arith.constant 0 : index
    %c0_98 = arith.constant 0 : index
    %57 = vector.load %arg4[%c0_97, %c0_98] : memref<144x16xf32, #tpu.memory_space<vmem>>, vector<144x16xf32>
    %cst_99 = arith.constant dense<0.000000e+00> : vector<256x16xf32>
    %58 = tpu.matmul %56, %57, %cst_99 {dimension_numbers = #tpu.dot_dimension_numbers<[1], [0], [0], [1], [0, 0, 1, 1], [], []>} : vector<256x144xf32>, vector<144x16xf32>, vector<256x16xf32> -> vector<256x16xf32>
    %c0_100 = arith.constant 0 : index
    %c0_101 = arith.constant 0 : index
    %59 = vector.load %arg5[%c0_100, %c0_101] : memref<1x16xf32, #tpu.memory_space<vmem>>, vector<1x16xf32>
    %60 = vector.broadcast %59 : vector<1x16xf32> to vector<256x16xf32>
    %61 = arith.addf %58, %60 : vector<256x16xf32>
    %62 = vector.shape_cast %61 : vector<256x16xf32> to vector<8x4x8x16xf32>
    %63 = vector.extract_strided_slice %62 {offsets = [0, 0, 0, 0], sizes = [8, 1, 8, 16], strides = [1, 1, 1, 1]} : vector<8x4x8x16xf32> to vector<8x1x8x16xf32>
    %64 = vector.shape_cast %63 : vector<8x1x8x16xf32> to vector<8x8x16xf32>
    %65 = vector.extract_strided_slice %62 {offsets = [0, 1, 0, 0], sizes = [8, 1, 8, 16], strides = [1, 1, 1, 1]} : vector<8x4x8x16xf32> to vector<8x1x8x16xf32>
    %66 = vector.shape_cast %65 : vector<8x1x8x16xf32> to vector<8x8x16xf32>
    %67 = arith.maximumf %64, %66 : vector<8x8x16xf32>
    %68 = vector.extract_strided_slice %62 {offsets = [0, 2, 0, 0], sizes = [8, 1, 8, 16], strides = [1, 1, 1, 1]} : vector<8x4x8x16xf32> to vector<8x1x8x16xf32>
    %69 = vector.shape_cast %68 : vector<8x1x8x16xf32> to vector<8x8x16xf32>
    %70 = vector.extract_strided_slice %62 {offsets = [0, 3, 0, 0], sizes = [8, 1, 8, 16], strides = [1, 1, 1, 1]} : vector<8x4x8x16xf32> to vector<8x1x8x16xf32>
    %71 = vector.shape_cast %70 : vector<8x1x8x16xf32> to vector<8x8x16xf32>
    %72 = arith.maximumf %69, %71 : vector<8x8x16xf32>
    %73 = arith.maximumf %67, %72 : vector<8x8x16xf32>
    %74 = vector.shape_cast %73 : vector<8x8x16xf32> to vector<64x16xf32>
    %c0_102 = arith.constant 0 : index
    %c0_103 = arith.constant 0 : index
    %75 = vector.load %arg11[%c0_102, %c0_103] : memref<64x16xf32, #tpu.memory_space<vmem>>, vector<64x16xf32>
    tpu.vector_store %arg11[%c0_102, %c0_103], %74 {strides = array<i32>} : memref<64x16xf32, #tpu.memory_space<vmem>>, vector<64x16xf32>,
    %c0_104 = arith.constant 0 : index
    %c0_105 = arith.constant 0 : index
    %76 = tpu.strided_load %arg11[%c0_104, %c0_105] {strides = array<i32: 4, 1>} : memref<64x16xf32, #tpu.memory_space<vmem>>, vector<16x16xf32>
    %c1_106 = arith.constant 1 : index
    %c0_107 = arith.constant 0 : index
    %77 = tpu.strided_load %arg11[%c1_106, %c0_107] {strides = array<i32: 4, 1>} : memref<64x16xf32, #tpu.memory_space<vmem>>, vector<16x16xf32>
    %78 = arith.maximumf %76, %77 : vector<16x16xf32>
    %c2_108 = arith.constant 2 : index
    %c0_109 = arith.constant 0 : index
    %79 = tpu.strided_load %arg11[%c2_108, %c0_109] {strides = array<i32: 4, 1>} : memref<64x16xf32, #tpu.memory_space<vmem>>, vector<16x16xf32>
    %c3 = arith.constant 3 : index
    %c0_110 = arith.constant 0 : index
    %80 = tpu.strided_load %arg11[%c3, %c0_110] {strides = array<i32: 4, 1>} : memref<64x16xf32, #tpu.memory_space<vmem>>, vector<16x16xf32>
    %81 = arith.maximumf %79, %80 : vector<16x16xf32>
    %82 = arith.maximumf %78, %81 : vector<16x16xf32>
    %cst_111 = arith.constant 0.000000e+00 : f32
    %83 = vector.broadcast %cst_111 : f32 to vector<16x16xf32>
    %84 = arith.maximumf %82, %83 : vector<16x16xf32>
    %c0_112 = arith.constant 0 : index
    %c0_113 = arith.constant 0 : index
    %85 = vector.load %arg12[%c0_112, %c0_113] : memref<16x16xf32, #tpu.memory_space<vmem>>, vector<16x16xf32>
    tpu.vector_store %arg12[%c0_112, %c0_113], %84 {strides = array<i32>} : memref<16x16xf32, #tpu.memory_space<vmem>>, vector<16x16xf32>,
    %c0_114 = arith.constant 0 : index
    %c0_115 = arith.constant 0 : index
    %86 = tpu.strided_load %arg12[%c0_114, %c0_115] {strides = array<i32: 4, 1>} : memref<16x16xf32, #tpu.memory_space<vmem>>, vector<4x16xf32>
    %c0_116 = arith.constant 0 : index
    %c0_117 = arith.constant 0 : index
    %87 = vector.load %arg13[%c0_116, %c0_117] : memref<4x64xf32, #tpu.memory_space<vmem>>, vector<4x16xf32>
    tpu.vector_store %arg13[%c0_116, %c0_117], %86 {strides = array<i32>} : memref<4x64xf32, #tpu.memory_space<vmem>>, vector<4x16xf32>,
    %c1_118 = arith.constant 1 : index
    %c0_119 = arith.constant 0 : index
    %88 = tpu.strided_load %arg12[%c1_118, %c0_119] {strides = array<i32: 4, 1>} : memref<16x16xf32, #tpu.memory_space<vmem>>, vector<4x16xf32>
    %c0_120 = arith.constant 0 : index
    %c16_121 = arith.constant 16 : index
    %89 = vector.load %arg13[%c0_120, %c16_121] : memref<4x64xf32, #tpu.memory_space<vmem>>, vector<4x16xf32>
    tpu.vector_store %arg13[%c0_120, %c16_121], %88 {strides = array<i32>} : memref<4x64xf32, #tpu.memory_space<vmem>>, vector<4x16xf32>,
    %c2_122 = arith.constant 2 : index
    %c0_123 = arith.constant 0 : index
    %90 = tpu.strided_load %arg12[%c2_122, %c0_123] {strides = array<i32: 4, 1>} : memref<16x16xf32, #tpu.memory_space<vmem>>, vector<4x16xf32>
    %c0_124 = arith.constant 0 : index
    %c32_125 = arith.constant 32 : index
    %91 = vector.load %arg13[%c0_124, %c32_125] : memref<4x64xf32, #tpu.memory_space<vmem>>, vector<4x16xf32>
    tpu.vector_store %arg13[%c0_124, %c32_125], %90 {strides = array<i32>} : memref<4x64xf32, #tpu.memory_space<vmem>>, vector<4x16xf32>,
    %c3_126 = arith.constant 3 : index
    %c0_127 = arith.constant 0 : index
    %92 = tpu.strided_load %arg12[%c3_126, %c0_127] {strides = array<i32: 4, 1>} : memref<16x16xf32, #tpu.memory_space<vmem>>, vector<4x16xf32>
    %c0_128 = arith.constant 0 : index
    %c48_129 = arith.constant 48 : index
    %93 = vector.load %arg13[%c0_128, %c48_129] : memref<4x64xf32, #tpu.memory_space<vmem>>, vector<4x16xf32>
    tpu.vector_store %arg13[%c0_128, %c48_129], %92 {strides = array<i32>} : memref<4x64xf32, #tpu.memory_space<vmem>>, vector<4x16xf32>,
    %c0_130 = arith.constant 0 : index
    %c0_131 = arith.constant 0 : index
    %94 = vector.load %arg13[%c0_130, %c0_131] : memref<4x64xf32, #tpu.memory_space<vmem>>, vector<4x64xf32>
    %c0_132 = arith.constant 0 : index
    %c0_133 = arith.constant 0 : index
    %95 = vector.load %arg6[%c0_132, %c0_133] : memref<64x4xf32, #tpu.memory_space<vmem>>, vector<64x4xf32>
    %cst_134 = arith.constant dense<0.000000e+00> : vector<4x4xf32>
    %96 = tpu.matmul %94, %95, %cst_134 {dimension_numbers = #tpu.dot_dimension_numbers<[1], [0], [0], [1], [0, 0, 1, 1], [], []>} : vector<4x64xf32>, vector<64x4xf32>, vector<4x4xf32> -> vector<4x4xf32>
    %c0_135 = arith.constant 0 : index
    %c0_136 = arith.constant 0 : index
    %97 = vector.load %arg7[%c0_135, %c0_136] : memref<1x4xf32, #tpu.memory_space<vmem>>, vector<1x4xf32>
    %98 = vector.broadcast %97 : vector<1x4xf32> to vector<4x4xf32>
    %99 = arith.addf %96, %98 : vector<4x4xf32>
    %c0_137 = arith.constant 0 : index
    %c0_138 = arith.constant 0 : index
    %c0_139 = arith.constant 0 : index
    %100 = vector.load %arg8[%c0_137, %c0_138, %c0_139] : memref<1x4x4xf32, #tpu.memory_space<vmem>>, vector<1x4x4xf32>
    %101 = vector.shape_cast %100 : vector<1x4x4xf32> to vector<4x4xf32>
    %102 = vector.shape_cast %99 : vector<4x4xf32> to vector<1x4x4xf32>
    tpu.vector_store %arg8[%c0_137, %c0_138, %c0_139], %102 {strides = array<i32>} : memref<1x4x4xf32, #tpu.memory_space<vmem>>, vector<1x4x4xf32>,
    return
  }
  func.func @transform_0(%arg0: i32) -> (i32, i32, i32, i32) {
    %c0_i32 = arith.constant 0 : i32
    %c0_i32_0 = arith.constant 0 : i32
    %c0_i32_1 = arith.constant 0 : i32
    %c0_i32_2 = arith.constant 0 : i32
    return %arg0, %c0_i32, %c0_i32_0, %c0_i32_1 : i32, i32, i32, i32
  }
  func.func @transform_1(%arg0: i32) -> (i32, i32) {
    %c0_i32 = arith.constant 0 : i32
    %c0_i32_0 = arith.constant 0 : i32
    %c0_i32_1 = arith.constant 0 : i32
    return %c0_i32, %c0_i32_0 : i32, i32
  }
  func.func @transform_2(%arg0: i32) -> (i32, i32) {
    %c0_i32 = arith.constant 0 : i32
    %c0_i32_0 = arith.constant 0 : i32
    %c0_i32_1 = arith.constant 0 : i32
    return %c0_i32, %c0_i32_0 : i32, i32
  }
  func.func @transform_3(%arg0: i32) -> (i32, i32) {
    %c0_i32 = arith.constant 0 : i32
    %c0_i32_0 = arith.constant 0 : i32
    %c0_i32_1 = arith.constant 0 : i32
    return %c0_i32, %c0_i32_0 : i32, i32
  }
  func.func @transform_4(%arg0: i32) -> (i32, i32) {
    %c0_i32 = arith.constant 0 : i32
    %c0_i32_0 = arith.constant 0 : i32
    %c0_i32_1 = arith.constant 0 : i32
    return %c0_i32, %c0_i32_0 : i32, i32
  }
  func.func @transform_5(%arg0: i32) -> (i32, i32) {
    %c0_i32 = arith.constant 0 : i32
    %c0_i32_0 = arith.constant 0 : i32
    %c0_i32_1 = arith.constant 0 : i32
    return %c0_i32, %c0_i32_0 : i32, i32
  }
  func.func @transform_6(%arg0: i32) -> (i32, i32) {
    %c0_i32 = arith.constant 0 : i32
    %c0_i32_0 = arith.constant 0 : i32
    %c0_i32_1 = arith.constant 0 : i32
    return %c0_i32, %c0_i32_0 : i32, i32
  }
  func.func @transform_7(%arg0: i32) -> (i32, i32, i32) {
    %c0_i32 = arith.constant 0 : i32
    %c0_i32_0 = arith.constant 0 : i32
    %c0_i32_1 = arith.constant 0 : i32
    return %arg0, %c0_i32, %c0_i32_0 : i32, i32, i32
  }
}

</mosaic_0001>

<llo_original>
// kernel: tile.8
$region0: #{tile.8}
  #allocation0 [shape = 's32[1]{0}', space=sflag, size = 0x4, scoped, tag = 'scoped memory for tile.8']
  %s0 = inlined_call_operand.vmem [shape: f32[16], index: 0, kind: input, shape index: {}]
  %s1 = inlined_call_operand.vmem [shape: f32[4,16], index: 1, kind: output, shape index: {}]
  // Predicated region
  $region2: #{tile.8} parent=0 // pred_check
    _
  $region3: #{tile.8} parent=0 // pred_check_branch
    %3 = sbr.rel (0) target = $region5
  $region4: #{tile.8} parent=0 // pred_region
    _
  $region5: #{tile.8} parent=0 // pred_fallthru
    _
  %v4 = vld [vmem:[%s0] ss:$0 sm:$0xff]
  %5 = vst [vmem:[%s1] sm:$0xf] %v4

// kernel: tile.9
$region0: #{tile.9}
  %s0 = inlined_call_operand.vmem [shape: f32[4,16], index: 0, kind: input, shape index: {}]
  %s1 = inlined_call_operand.vmem [shape: f32[1,64], index: 1, kind: output, shape index: {}]
  $region1: #{tile.9} parent=0
    #allocation0 [shape = 'u8[4096]{0}', space=vmem, size = 0x1000, scoped, tag = 'scoped mem for output reshape']
    #allocation1 [shape = 'u8[4096]{0}', space=vmem, size = 0x1000, scoped, tag = 'scoped mem for input reshape']
    %s3 = sshllo.u32 0, 4
    %v4 = vld [vmem:[%s0] sm:%s3]
    %5 = vst [vmem:[#allocation1] sm:%s3] %v4
    %v6 = vld [vmem:[#allocation1] sm:$0x1]
    %vm7 = vcmask 130048
    %8 = vst.msk [vmem:[#allocation0] sm:$0x1] %vm7, %v6
    %s9 = scalar_lea.vmem [#allocation1], 3
    %v10 = vld [vmem:[%s9] sm:$0x1]
    %11 = vrot.lane.b32.xlu0 %v10, 48
    %v12 = vpop.permute.xlu0 %11
    %vm13 = vcmask 523648
    %14 = vst.msk [vmem:[#allocation0] sm:$0x1] %vm13, %v12
    %s15 = scalar_lea.vmem [#allocation1], 2
    %v16 = vld [vmem:[%s15] sm:$0x1]
    %17 = vrot.lane.b32.xlu0 %v16, 32
    %v18 = vpop.permute.xlu0 %17
    %vm19 = vcmask 392448
    %20 = vst.msk [vmem:[#allocation0] sm:$0x1] %vm19, %v18
    %s21 = scalar_lea.vmem [#allocation1], 1
    %v22 = vld [vmem:[%s21] sm:$0x1]
    %23 = vrot.lane.b32.xlu0 %v22, 16
    %v24 = vpop.permute.xlu0 %23
    %vm25 = vcmask 261248
    %26 = vst.msk [vmem:[#allocation0] sm:$0x1] %vm25, %v24
    %s28 = sshllo.u32 0, 1
    %v30 = vld [vmem:[#allocation0] sm:%s28]
    %s31 = sshllo.u32 0, 1
    %32 = vst [vmem:[%s1] sm:%s31] %v30

// kernel: net_forward.1
$region0: #{net_forward.1}
  #allocation0 [shape = 'u32[]', space=smem, size = 0x4, offset = 0x4, fixed_abs, tag = 'smem constant byte address 0x4 - core index']
  #allocation1 [shape = 'u32[144,128]{1,0:T(1,128)}', space=vmem, size = 0x12000, scoped, tag = 'internal scratch']
  #allocation2 [shape = 'f32[4,10,10,16]{3,2,1,0:T(8,128)}', space=vmem, size = 0x50000, scoped, tag = 'scratch operand']
  #allocation3 [shape = 'f32[4,8,8,144]{3,2,1,0:T(8,128)}', space=vmem, size = 0x40000, scoped, tag = 'scratch operand']
  #allocation4 [shape = 'f32[64,16]{1,0:T(8,128)}', space=vmem, size = 0x8000, scoped, tag = 'scratch operand']
  #allocation5 [shape = 'f32[16,16]{1,0:T(8,128)}', space=vmem, size = 0x2000, scoped, tag = 'scratch operand']
  #allocation6 [shape = 'f32[4,64]{1,0:T(4,128)}', space=vmem, size = 0x800, scoped, tag = 'scratch operand']
  %s0 = inlined_call_operand.vmem [shape: f32[8,32,8,54], index: 0, kind: input, shape index: {}]
  %s1 = inlined_call_operand.vmem [shape: f32[54,64], index: 1, kind: input, shape index: {}]
  %s2 = inlined_call_operand.vmem [shape: f32[1,64], index: 2, kind: input, shape index: {}]
  %s3 = inlined_call_operand.vmem [shape: f32[144,16], index: 3, kind: input, shape index: {}]
  %s4 = inlined_call_operand.vmem [shape: f32[1,16], index: 4, kind: input, shape index: {}]
  %s5 = inlined_call_operand.vmem [shape: f32[64,4], index: 5, kind: input, shape index: {}]
  %s6 = inlined_call_operand.vmem [shape: f32[1,4], index: 6, kind: input, shape index: {}]
  %s7 = inlined_call_operand.vmem [shape: f32[2,4,4], index: 7, kind: output, shape index: {}]
  %s8 = sld [smem:[#allocation0]]
  $region61: #{net_forward.1} parent=0
    _
  %s10 = ssub.s32 1, %s8
  %s11 = scalar_select 0, %s10, %s8
  loop: start=0, step=1, limit=4
  $region2: #{net_forward.1} parent=0 // loop_pre_header
    _
  $region3: #{net_forward.1} parent=0 // loop_header
    %s13 = sphi 0, %s17
    %p14 = scmp.ge.s32.totalorder %s13, 4
    %s23 = sphi 0, %s25
    %s26 = sphi 0, %s23
    %s27 = sphi 0, %s26
    %s43 = sphi 0, %s27
    %s47 = sphi 0, %s47
    %s49 = sphi 0, %s47
    %s50 = sphi 0, %s49
    %s64 = sphi 0, %s50
    %s68 = sphi 0, %s68
    %s70 = sphi 0, %s68
    %s71 = sphi 0, %s70
    %s85 = sphi 0, %s71
    %s89 = sphi 0, %s89
    %s91 = sphi 0, %s89
    %s92 = sphi 0, %s91
    %s106 = sphi 0, %s92
    %s110 = sphi 0, %s110
    %s112 = sphi 0, %s110
    %s113 = sphi 0, %s112
    %s127 = sphi 0, %s113
    %s131 = sphi 0, %s131
    %s133 = sphi 0, %s131
    %s134 = sphi 0, %s133
    %s148 = sphi 0, %s134
    %s152 = sphi 0, %s152
    %s154 = sphi 0, %s152
    %s155 = sphi 0, %s154
    %s169 = sphi 0, %s155
    %s175 = sphi 0, %s177
    %s178 = sphi 0, %s175
    %s179 = sphi 0, %s178
    %s195 = sphi 0, %s179
  $region4: #{net_forward.1} parent=0 // loop_header_branch
    %16 = sbr.rel (%p14) target = $region8
  $region5: #{net_forward.1} parent=0 // loop_body
    %s18 = ssub.s32 %s13, 1
    %s19 = ssub.s32 %s13, 2
    %s20 = sadd.s32 %s13, 1
    %s21 = ssub.s32 %s13, %s20
    %p22 = scmp.eq.s32.totalorder %s21, 0
    %s24 = sadd.s32 %s23, 1
    %s25 = scalar_select %p22, %s23, %s24
    %p28 = pneg %p22
    %p29 = scmp.eq.s32.totalorder %s13, 1
    %p30 = por %p28, %p29
    %p31 = scmp.ne.s32.totalorder %s23, %s26
    %p32 = scmp.eq.s32.totalorder %s13, 0
    %p33 = por %p31, %p32
    %p34 = scmp.ne.s32.totalorder %s23, %s26
    %p35 = scmp.eq.s32.totalorder %s18, 1
    %p36 = por %p34, %p35
    %p37 = scmp.ne.s32.totalorder %s26, %s27
    %p38 = scmp.eq.s32.totalorder %s18, 0
    %p39 = por %p37, %p38
    %p40 = scmp.ne.s32.totalorder %s26, %s27
    %p41 = scmp.eq.s32.totalorder %s19, 1
    %p42 = por %p40, %p41
    %p44 = scmp.ne.s32.totalorder %s27, %s43
    %p45 = scmp.eq.s32.totalorder %s19, 0
    %p46 = por %p44, %p45
    %s48 = sadd.s32 %s47, 1
    %p51 = scmp.eq.s32.totalorder %s13, 1
    %p52 = scmp.ne.s32.totalorder %s47, %s49
    %p53 = scmp.eq.s32.totalorder %s13, 0
    %p54 = por %p52, %p53
    %p55 = scmp.ne.s32.totalorder %s47, %s49
    %p56 = scmp.eq.s32.totalorder %s18, 1
    %p57 = por %p55, %p56
    %p58 = scmp.ne.s32.totalorder %s49, %s50
    %p59 = scmp.eq.s32.totalorder %s18, 0
    %p60 = por %p58, %p59
    %p61 = scmp.ne.s32.totalorder %s49, %s50
    %p62 = scmp.eq.s32.totalorder %s19, 1
    %p63 = por %p61, %p62
    %p65 = scmp.ne.s32.totalorder %s50, %s64
    %p66 = scmp.eq.s32.totalorder %s19, 0
    %p67 = por %p65, %p66
    %s69 = sadd.s32 %s68, 1
    %p72 = scmp.eq.s32.totalorder %s13, 1
    %p73 = scmp.ne.s32.totalorder %s68, %s70
    %p74 = scmp.eq.s32.totalorder %s13, 0
    %p75 = por %p73, %p74
    %p76 = scmp.ne.s32.totalorder %s68, %s70
    %p77 = scmp.eq.s32.totalorder %s18, 1
    %p78 = por %p76, %p77
    %p79 = scmp.ne.s32.totalorder %s70, %s71
    %p80 = scmp.eq.s32.totalorder %s18, 0
    %p81 = por %p79, %p80
    %p82 = scmp.ne.s32.totalorder %s70, %s71
    %p83 = scmp.eq.s32.totalorder %s19, 1
    %p84 = por %p82, %p83
    %p86 = scmp.ne.s32.totalorder %s71, %s85
    %p87 = scmp.eq.s32.totalorder %s19, 0
    %p88 = por %p86, %p87
    %s90 = sadd.s32 %s89, 1
    %p93 = scmp.eq.s32.totalorder %s13, 1
    %p94 = scmp.ne.s32.totalorder %s89, %s91
    %p95 = scmp.eq.s32.totalorder %s13, 0
    %p96 = por %p94, %p95
    %p97 = scmp.ne.s32.totalorder %s89, %s91
    %p98 = scmp.eq.s32.totalorder %s18, 1
    %p99 = por %p97, %p98
    %p100 = scmp.ne.s32.totalorder %s91, %s92
    %p101 = scmp.eq.s32.totalorder %s18, 0
    %p102 = por %p100, %p101
    %p103 = scmp.ne.s32.totalorder %s91, %s92
    %p104 = scmp.eq.s32.totalorder %s19, 1
    %p105 = por %p103, %p104
    %p107 = scmp.ne.s32.totalorder %s92, %s106
    %p108 = scmp.eq.s32.totalorder %s19, 0
    %p109 = por %p107, %p108
    %s111 = sadd.s32 %s110, 1
    %p114 = scmp.eq.s32.totalorder %s13, 1
    %p115 = scmp.ne.s32.totalorder %s110, %s112
    %p116 = scmp.eq.s32.totalorder %s13, 0
    %p117 = por %p115, %p116
    %p118 = scmp.ne.s32.totalorder %s110, %s112
    %p119 = scmp.eq.s32.totalorder %s18, 1
    %p120 = por %p118, %p119
    %p121 = scmp.ne.s32.totalorder %s112, %s113
    %p122 = scmp.eq.s32.totalorder %s18, 0
    %p123 = por %p121, %p122
    %p124 = scmp.ne.s32.totalorder %s112, %s113
    %p125 = scmp.eq.s32.totalorder %s19, 1
    %p126 = por %p124, %p125
    %p128 = scmp.ne.s32.totalorder %s113, %s127
    %p129 = scmp.eq.s32.totalorder %s19, 0
    %p130 = por %p128, %p129
    %s132 = sadd.s32 %s131, 1
    %p135 = scmp.eq.s32.totalorder %s13, 1
    %p136 = scmp.ne.s32.totalorder %s131, %s133
    %p137 = scmp.eq.s32.totalorder %s13, 0
    %p138 = por %p136, %p137
    %p139 = scmp.ne.s32.totalorder %s131, %s133
    %p140 = scmp.eq.s32.totalorder %s18, 1
    %p141 = por %p139, %p140
    %p142 = scmp.ne.s32.totalorder %s133, %s134
    %p143 = scmp.eq.s32.totalorder %s18, 0
    %p144 = por %p142, %p143
    %p145 = scmp.ne.s32.totalorder %s133, %s134
    %p146 = scmp.eq.s32.totalorder %s19, 1
    %p147 = por %p145, %p146
    %p149 = scmp.ne.s32.totalorder %s134, %s148
    %p150 = scmp.eq.s32.totalorder %s19, 0
    %p151 = por %p149, %p150
    %s153 = sadd.s32 %s152, 1
    %p156 = scmp.eq.s32.totalorder %s13, 1
    %p157 = scmp.ne.s32.totalorder %s152, %s154
    %p158 = scmp.eq.s32.totalorder %s13, 0
    %p159 = por %p157, %p158
    %p160 = scmp.ne.s32.totalorder %s152, %s154
    %p161 = scmp.eq.s32.totalorder %s18, 1
    %p162 = por %p160, %p161
    %p163 = scmp.ne.s32.totalorder %s154, %s155
    %p164 = scmp.eq.s32.totalorder %s18, 0
    %p165 = por %p163, %p164
    %p166 = scmp.ne.s32.totalorder %s154, %s155
    %p167 = scmp.eq.s32.totalorder %s19, 1
    %p168 = por %p166, %p167
    %p170 = scmp.ne.s32.totalorder %s155, %s169
    %p171 = scmp.eq.s32.totalorder %s19, 0
    %p172 = por %p170, %p171
    %s173 = ssub.s32 %s13, %s20
    %p174 = scmp.eq.s32.totalorder %s173, 0
    %s176 = sadd.s32 %s175, 1
    %s177 = scalar_select %p174, %s175, %s176
    %p180 = pneg %p174
    %p181 = scmp.eq.s32.totalorder %s13, 1
    %p182 = por %p180, %p181
    %p183 = scmp.ne.s32.totalorder %s175, %s178
    %p184 = scmp.eq.s32.totalorder %s13, 0
    %p185 = por %p183, %p184
    %p186 = scmp.ne.s32.totalorder %s175, %s178
    %p187 = scmp.eq.s32.totalorder %s18, 1
    %p188 = por %p186, %p187
    %p189 = scmp.ne.s32.totalorder %s178, %s179
    %p190 = scmp.eq.s32.totalorder %s18, 0
    %p191 = por %p189, %p190
    %p192 = scmp.ne.s32.totalorder %s178, %s179
    %p193 = scmp.eq.s32.totalorder %s19, 1
    %p194 = por %p192, %p193
    %p196 = scmp.ne.s32.totalorder %s179, %s195
    %p197 = scmp.eq.s32.totalorder %s19, 0
    %p198 = por %p196, %p197
    %p199 = scmp.le.s32.totalorder 1, %s13
    %p200 = scmp.lt.s32.totalorder %s13, 3
    %p201 = pnand %p199, %p200
    %p202 = pneg %p201
    // Predicated region
    $region9: #{net_forward.1} parent=5 // pred_check
      _
    $region10: #{net_forward.1} parent=5 // pred_check_branch
      %204 = sbr.rel (%p201) target = $region12
    $region11: #{net_forward.1} parent=5 // pred_region
      %s205 = ssub.s32 %s13, 1
      // Predicated region
      $region13: #{net_forward.1} parent=11 // pred_check
        %p206 = pneg %p60
      $region14: #{net_forward.1} parent=11 // pred_check_branch
        %208 = sbr.rel (%p206) target = $region16
      $region15: #{net_forward.1} parent=11 // pred_region
        _
      $region16: #{net_forward.1} parent=11 // pred_fallthru
        _
      // Predicated region
      $region17: #{net_forward.1} parent=11 // pred_check
        %p209 = pneg %p81
      $region18: #{net_forward.1} parent=11 // pred_check_branch
        %211 = sbr.rel (%p209) target = $region20
      $region19: #{net_forward.1} parent=11 // pred_region
        _
      $region20: #{net_forward.1} parent=11 // pred_fallthru
        _
      // Predicated region
      $region21: #{net_forward.1} parent=11 // pred_check
        %p212 = pneg %p102
      $region22: #{net_forward.1} parent=11 // pred_check_branch
        %214 = sbr.rel (%p212) target = $region24
      $region23: #{net_forward.1} parent=11 // pred_region
        _
      $region24: #{net_forward.1} parent=11 // pred_fallthru
        _
      // Predicated region
      $region25: #{net_forward.1} parent=11 // pred_check
        %p215 = pneg %p123
      $region26: #{net_forward.1} parent=11 // pred_check_branch
        %217 = sbr.rel (%p215) target = $region28
      $region27: #{net_forward.1} parent=11 // pred_region
        _
      $region28: #{net_forward.1} parent=11 // pred_fallthru
        _
      // Predicated region
      $region29: #{net_forward.1} parent=11 // pred_check
        %p218 = pneg %p144
      $region30: #{net_forward.1} parent=11 // pred_check_branch
        %220 = sbr.rel (%p218) target = $region32
      $region31: #{net_forward.1} parent=11 // pred_region
        _
      $region32: #{net_forward.1} parent=11 // pred_fallthru
        _
      // Predicated region
      $region33: #{net_forward.1} parent=11 // pred_check
        %p221 = pneg %p165
      $region34: #{net_forward.1} parent=11 // pred_check_branch
        %223 = sbr.rel (%p221) target = $region36
      $region35: #{net_forward.1} parent=11 // pred_region
        _
      $region36: #{net_forward.1} parent=11 // pred_fallthru
        _
    $region12: #{net_forward.1} parent=5 // pred_fallthru
      _
    %p224 = scmp.lt.s32.totalorder %s13, 2
    // Predicated region
    $region37: #{net_forward.1} parent=5 // pred_check
      %p225 = pneg %p224
    $region38: #{net_forward.1} parent=5 // pred_check_branch
      %227 = sbr.rel (%p225) target = $region40
    $region39: #{net_forward.1} parent=5 // pred_region
      // Predicated region
      $region41: #{net_forward.1} parent=39 // pred_check
        %p228 = pneg %p33
      $region42: #{net_forward.1} parent=39 // pred_check_branch
        %230 = sbr.rel (%p228) target = $region44
      $region43: #{net_forward.1} parent=39 // pred_region
        %s231 = smul.u32 4, %s13
        %p232 = scmp.lt.s32.totalorder %s231, 7
        %s233 = scalar_select %p232, %s231, 7
        %s234 = smul.addr %s233, 32
        %s235 = smul.addr %s234, 8
        %s236 = scalar_lea.vmem %s0, %s235
        %s237 = smul.u32 4, %s13
      $region44: #{net_forward.1} parent=39 // pred_fallthru
        _
    $region40: #{net_forward.1} parent=5 // pred_fallthru
      _
    %p238 = scmp.le.s32.totalorder 1, %s13
    %p239 = scmp.lt.s32.totalorder %s13, 3
    %p240 = pnand %p238, %p239
    %p241 = pneg %p240
    // Predicated region
    $region45: #{net_forward.1} parent=5 // pred_check
      _
    $region46: #{net_forward.1} parent=5 // pred_check_branch
      %243 = sbr.rel (%p240) target = $region48
    $region47: #{net_forward.1} parent=5 // pred_region
      %s244 = ssub.s32 %s13, 1
      %s245 = smul.u32 4, %s18
      %p246 = scmp.lt.s32.totalorder %s245, 7
      %s247 = scalar_select %p246, %s245, 7
      %s248 = smul.addr %s247, 32
      %s249 = smul.addr %s248, 8
      %s250 = scalar_lea.vmem %s0, %s249
      %p251 = pneg %p39
      %p252 = pneg %p36
      %p253 = pneg %p60
      %p254 = pneg %p57
      %p255 = pneg %p81
      %p256 = pneg %p78
      %p257 = pneg %p102
      %p258 = pneg %p99
      %p259 = pneg %p123
      %p260 = pneg %p120
      %p261 = pneg %p144
      %p262 = pneg %p141
      %p263 = pneg %p165
      %p264 = pneg %p162
      %p265 = pneg %p191
      %p266 = pneg %p188
      %p267 = scmp.lt.s32.totalorder %s18, 1
      %s268 = scalar_select %p267, %s18, 1
      %s269 = smul.addr %s268, 4
      %s270 = scalar_lea.vmem %s7, %s269
      %s271 = smul.u32 4, %s18
      %p272 = scmp.lt.s32.totalorder %s271, 7
      %s273 = scalar_select %p272, %s271, 7
      %s274 = smul.addr %s273, 32
      %s275 = smul.addr %s274, 8
      %s276 = scalar_lea.vmem %s0, %s275
      %s277 = smul.u32 4, %s18
      %p278 = scmp.lt.s32.totalorder %s18, 1
      %s279 = scalar_select %p278, %s18, 1
      %s280 = smul.addr %s279, 4
      %s281 = scalar_lea.vmem %s7, %s280
      %v282 = vld [vmem:[%s276] sm:$0xff]
      %v283 = vld [vmem:[%s276 + $0x8] sm:$0xff]
      %v284 = vld [vmem:[%s276 + $0x10] sm:$0xff]
      %v285 = vld [vmem:[%s276 + $0x18] sm:$0xff]
      %v286 = vld [vmem:[%s276 + $0x20] sm:$0xff]
      %v287 = vld [vmem:[%s276 + $0x28] sm:$0xff]
      %v288 = vld [vmem:[%s276 + $0x30] sm:$0xff]
      %v289 = vld [vmem:[%s276 + $0x38] sm:$0xff]
      %v290 = vld [vmem:[%s276 + $0x40] sm:$0xff]
      %v291 = vld [vmem:[%s276 + $0x48] sm:$0xff]
      %v292 = vld [vmem:[%s276 + $0x50] sm:$0xff]
      %v293 = vld [vmem:[%s276 + $0x58] sm:$0xff]
      %v294 = vld [vmem:[%s276 + $0x60] sm:$0xff]
      %v295 = vld [vmem:[%s276 + $0x68] sm:$0xff]
      %v296 = vld [vmem:[%s276 + $0x70] sm:$0xff]
      %v297 = vld [vmem:[%s276 + $0x78] sm:$0xff]
      %v298 = vld [vmem:[%s276 + $0x80] sm:$0xff]
      %v299 = vld [vmem:[%s276 + $0x88] sm:$0xff]
      %v300 = vld [vmem:[%s276 + $0x90] sm:$0xff]
      %v301 = vld [vmem:[%s276 + $0x98] sm:$0xff]
      %v302 = vld [vmem:[%s276 + $0xa0] sm:$0xff]
      %v303 = vld [vmem:[%s276 + $0xa8] sm:$0xff]
      %v304 = vld [vmem:[%s276 + $0xb0] sm:$0xff]
      %v305 = vld [vmem:[%s276 + $0xb8] sm:$0xff]
      %v306 = vld [vmem:[%s276 + $0xc0] sm:$0xff]
      %v307 = vld [vmem:[%s276 + $0xc8] sm:$0xff]
      %v308 = vld [vmem:[%s276 + $0xd0] sm:$0xff]
      %v309 = vld [vmem:[%s276 + $0xd8] sm:$0xff]
      %v310 = vld [vmem:[%s276 + $0xe0] sm:$0xff]
      %v311 = vld [vmem:[%s276 + $0xe8] sm:$0xff]
      %v312 = vld [vmem:[%s276 + $0xf0] sm:$0xff]
      %v313 = vld [vmem:[%s276 + $0xf8] sm:$0xff]
      %v314 = vld [vmem:[%s276 + $0x100] sm:$0xff]
      %v315 = vld [vmem:[%s276 + $0x108] sm:$0xff]
      %v316 = vld [vmem:[%s276 + $0x110] sm:$0xff]
      %v317 = vld [vmem:[%s276 + $0x118] sm:$0xff]
      %v318 = vld [vmem:[%s276 + $0x120] sm:$0xff]
      %v319 = vld [vmem:[%s276 + $0x128] sm:$0xff]
      %v320 = vld [vmem:[%s276 + $0x130] sm:$0xff]
      %v321 = vld [vmem:[%s276 + $0x138] sm:$0xff]
      %v322 = vld [vmem:[%s276 + $0x140] sm:$0xff]
      %v323 = vld [vmem:[%s276 + $0x148] sm:$0xff]
      %v324 = vld [vmem:[%s276 + $0x150] sm:$0xff]
      %v325 = vld [vmem:[%s276 + $0x158] sm:$0xff]
      %v326 = vld [vmem:[%s276 + $0x160] sm:$0xff]
      %v327 = vld [vmem:[%s276 + $0x168] sm:$0xff]
      %v328 = vld [vmem:[%s276 + $0x170] sm:$0xff]
      %v329 = vld [vmem:[%s276 + $0x178] sm:$0xff]
      %v330 = vld [vmem:[%s276 + $0x180] sm:$0xff]
      %v331 = vld [vmem:[%s276 + $0x188] sm:$0xff]
      %v332 = vld [vmem:[%s276 + $0x190] sm:$0xff]
      %v333 = vld [vmem:[%s276 + $0x198] sm:$0xff]
      %v334 = vld [vmem:[%s276 + $0x1a0] sm:$0xff]
      %v335 = vld [vmem:[%s276 + $0x1a8] sm:$0xff]
      %v336 = vld [vmem:[%s276 + $0x1b0] sm:$0xff]
      %v337 = vld [vmem:[%s276 + $0x1b8] sm:$0xff]
      %v338 = vld [vmem:[%s276 + $0x1c0] sm:$0xff]
      %v339 = vld [vmem:[%s276 + $0x1c8] sm:$0xff]
      %v340 = vld [vmem:[%s276 + $0x1d0] sm:$0xff]
      %v341 = vld [vmem:[%s276 + $0x1d8] sm:$0xff]
      %v342 = vld [vmem:[%s276 + $0x1e0] sm:$0xff]
      %v343 = vld [vmem:[%s276 + $0x1e8] sm:$0xff]
      %v344 = vld [vmem:[%s276 + $0x1f0] sm:$0xff]
      %v345 = vld [vmem:[%s276 + $0x1f8] sm:$0xff]
      %v346 = vld [vmem:[%s276 + $0x200] sm:$0xff]
      %v347 = vld [vmem:[%s276 + $0x208] sm:$0xff]
      %v348 = vld [vmem:[%s276 + $0x210] sm:$0xff]
      %v349 = vld [vmem:[%s276 + $0x218] sm:$0xff]
      %v350 = vld [vmem:[%s276 + $0x220] sm:$0xff]
      %v351 = vld [vmem:[%s276 + $0x228] sm:$0xff]
      %v352 = vld [vmem:[%s276 + $0x230] sm:$0xff]
      %v353 = vld [vmem:[%s276 + $0x238] sm:$0xff]
      %v354 = vld [vmem:[%s276 + $0x240] sm:$0xff]
      %v355 = vld [vmem:[%s276 + $0x248] sm:$0xff]
      %v356 = vld [vmem:[%s276 + $0x250] sm:$0xff]
      %v357 = vld [vmem:[%s276 + $0x258] sm:$0xff]
      %v358 = vld [vmem:[%s276 + $0x260] sm:$0xff]
      %v359 = vld [vmem:[%s276 + $0x268] sm:$0xff]
      %v360 = vld [vmem:[%s276 + $0x270] sm:$0xff]
      %v361 = vld [vmem:[%s276 + $0x278] sm:$0xff]
      %v362 = vld [vmem:[%s276 + $0x280] sm:$0xff]
      %v363 = vld [vmem:[%s276 + $0x288] sm:$0xff]
      %v364 = vld [vmem:[%s276 + $0x290] sm:$0xff]
      %v365 = vld [vmem:[%s276 + $0x298] sm:$0xff]
      %v366 = vld [vmem:[%s276 + $0x2a0] sm:$0xff]
      %v367 = vld [vmem:[%s276 + $0x2a8] sm:$0xff]
      %v368 = vld [vmem:[%s276 + $0x2b0] sm:$0xff]
      %v369 = vld [vmem:[%s276 + $0x2b8] sm:$0xff]
      %v370 = vld [vmem:[%s276 + $0x2c0] sm:$0xff]
      %v371 = vld [vmem:[%s276 + $0x2c8] sm:$0xff]
      %v372 = vld [vmem:[%s276 + $0x2d0] sm:$0xff]
      %v373 = vld [vmem:[%s276 + $0x2d8] sm:$0xff]
      %v374 = vld [vmem:[%s276 + $0x2e0] sm:$0xff]
      %v375 = vld [vmem:[%s276 + $0x2e8] sm:$0xff]
      %v376 = vld [vmem:[%s276 + $0x2f0] sm:$0xff]
      %v377 = vld [vmem:[%s276 + $0x2f8] sm:$0xff]
      %v378 = vld [vmem:[%s276 + $0x300] sm:$0xff]
      %v379 = vld [vmem:[%s276 + $0x308] sm:$0xff]
      %v380 = vld [vmem:[%s276 + $0x310] sm:$0xff]
      %v381 = vld [vmem:[%s276 + $0x318] sm:$0xff]
      %v382 = vld [vmem:[%s276 + $0x320] sm:$0xff]
      %v383 = vld [vmem:[%s276 + $0x328] sm:$0xff]
      %v384 = vld [vmem:[%s276 + $0x330] sm:$0xff]
      %v385 = vld [vmem:[%s276 + $0x338] sm:$0xff]
      %v386 = vld [vmem:[%s276 + $0x340] sm:$0xff]
      %v387 = vld [vmem:[%s276 + $0x348] sm:$0xff]
      %v388 = vld [vmem:[%s276 + $0x350] sm:$0xff]
      %v389 = vld [vmem:[%s276 + $0x358] sm:$0xff]
      %v390 = vld [vmem:[%s276 + $0x360] sm:$0xff]
      %v391 = vld [vmem:[%s276 + $0x368] sm:$0xff]
      %v392 = vld [vmem:[%s276 + $0x370] sm:$0xff]
      %v393 = vld [vmem:[%s276 + $0x378] sm:$0xff]
      %v394 = vld [vmem:[%s276 + $0x380] sm:$0xff]
      %v395 = vld [vmem:[%s276 + $0x388] sm:$0xff]
      %v396 = vld [vmem:[%s276 + $0x390] sm:$0xff]
      %v397 = vld [vmem:[%s276 + $0x398] sm:$0xff]
      %v398 = vld [vmem:[%s276 + $0x3a0] sm:$0xff]
      %v399 = vld [vmem:[%s276 + $0x3a8] sm:$0xff]
      %v400 = vld [vmem:[%s276 + $0x3b0] sm:$0xff]
      %v401 = vld [vmem:[%s276 + $0x3b8] sm:$0xff]
      %v402 = vld [vmem:[%s276 + $0x3c0] sm:$0xff]
      %v403 = vld [vmem:[%s276 + $0x3c8] sm:$0xff]
      %v404 = vld [vmem:[%s276 + $0x3d0] sm:$0xff]
      %v405 = vld [vmem:[%s276 + $0x3d8] sm:$0xff]
      %v406 = vld [vmem:[%s276 + $0x3e0] sm:$0xff]
      %v407 = vld [vmem:[%s276 + $0x3e8] sm:$0xff]
      %v408 = vld [vmem:[%s276 + $0x3f0] sm:$0xff]
      %v409 = vld [vmem:[%s276 + $0x3f8] sm:$0xff]
      %v410 = vld [vmem:[%s1] sm:$0xff]
      %v411 = vld [vmem:[%s1 + $0x8] sm:$0xff]
      %v412 = vld [vmem:[%s1 + $0x10] sm:$0xff]
      %v413 = vld [vmem:[%s1 + $0x18] sm:$0xff]
      %v414 = vld [vmem:[%s1 + $0x20] sm:$0xff]
      %v415 = vld [vmem:[%s1 + $0x28] sm:$0xff]
      %v416 = vld [vmem:[%s1 + $0x30] sm:$0x3f]
      %v417 = vld [vmem:[%s2] sm:$0x1]
      %v419 = vlaneseq
      %v420 = vshrl.u32 %v419, 7
      %v421 = vsub.s32 0, %v420
      %v422 = vrot.slane %v417, %v421
      %vm424 = vcmask 441344
      %v426 = vsel %vm424, %v282, 0
      %v429 = vsel %vm424, %v283, 0
      %v432 = vsel %vm424, %v284, 0
      %v435 = vsel %vm424, %v285, 0
      %v438 = vsel %vm424, %v286, 0
      %v441 = vsel %vm424, %v287, 0
      %v444 = vsel %vm424, %v288, 0
      %v447 = vsel %vm424, %v289, 0
      %v450 = vsel %vm424, %v290, 0
      %v453 = vsel %vm424, %v291, 0
      %v456 = vsel %vm424, %v292, 0
      %v459 = vsel %vm424, %v293, 0
      %v462 = vsel %vm424, %v294, 0
      %v465 = vsel %vm424, %v295, 0
      %v468 = vsel %vm424, %v296, 0
      %v471 = vsel %vm424, %v297, 0
      %v474 = vsel %vm424, %v298, 0
      %v477 = vsel %vm424, %v299, 0
      %v480 = vsel %vm424, %v300, 0
      %v483 = vsel %vm424, %v301, 0
      %v486 = vsel %vm424, %v302, 0
      %v489 = vsel %vm424, %v303, 0
      %v492 = vsel %vm424, %v304, 0
      %v495 = vsel %vm424, %v305, 0
      %v498 = vsel %vm424, %v306, 0
      %v501 = vsel %vm424, %v307, 0
      %v504 = vsel %vm424, %v308, 0
      %v507 = vsel %vm424, %v309, 0
      %v510 = vsel %vm424, %v310, 0
      %v513 = vsel %vm424, %v311, 0
      %v516 = vsel %vm424, %v312, 0
      %v519 = vsel %vm424, %v313, 0
      %v522 = vsel %vm424, %v314, 0
      %v525 = vsel %vm424, %v315, 0
      %v528 = vsel %vm424, %v316, 0
      %v531 = vsel %vm424, %v317, 0
      %v534 = vsel %vm424, %v318, 0
      %v537 = vsel %vm424, %v319, 0
      %v540 = vsel %vm424, %v320, 0
      %v543 = vsel %vm424, %v321, 0
      %v546 = vsel %vm424, %v322, 0
      %v549 = vsel %vm424, %v323, 0
      %v552 = vsel %vm424, %v324, 0
      %v555 = vsel %vm424, %v325, 0
      %v558 = vsel %vm424, %v326, 0
      %v561 = vsel %vm424, %v327, 0
      %v564 = vsel %vm424, %v328, 0
      %v567 = vsel %vm424, %v329, 0
      %v570 = vsel %vm424, %v330, 0
      %v573 = vsel %vm424, %v331, 0
      %v576 = vsel %vm424, %v332, 0
      %v579 = vsel %vm424, %v333, 0
      %v582 = vsel %vm424, %v334, 0
      %v585 = vsel %vm424, %v335, 0
      %v588 = vsel %vm424, %v336, 0
      %v591 = vsel %vm424, %v337, 0
      %v594 = vsel %vm424, %v338, 0
      %v597 = vsel %vm424, %v339, 0
      %v600 = vsel %vm424, %v340, 0
      %v603 = vsel %vm424, %v341, 0
      %v606 = vsel %vm424, %v342, 0
      %v609 = vsel %vm424, %v343, 0
      %v612 = vsel %vm424, %v344, 0
      %v615 = vsel %vm424, %v345, 0
      %v618 = vsel %vm424, %v346, 0
      %v621 = vsel %vm424, %v347, 0
      %v624 = vsel %vm424, %v348, 0
      %v627 = vsel %vm424, %v349, 0
      %v630 = vsel %vm424, %v350, 0
      %v633 = vsel %vm424, %v351, 0
      %v636 = vsel %vm424, %v352, 0
      %v639 = vsel %vm424, %v353, 0
      %v642 = vsel %vm424, %v354, 0
      %v645 = vsel %vm424, %v355, 0
      %v648 = vsel %vm424, %v356, 0
      %v651 = vsel %vm424, %v357, 0
      %v654 = vsel %vm424, %v358, 0
      %v657 = vsel %vm424, %v359, 0
      %v660 = vsel %vm424, %v360, 0
      %v663 = vsel %vm424, %v361, 0
      %v666 = vsel %vm424, %v362, 0
      %v669 = vsel %vm424, %v363, 0
      %v672 = vsel %vm424, %v364, 0
      %v675 = vsel %vm424, %v365, 0
      %v678 = vsel %vm424, %v366, 0
      %v681 = vsel %vm424, %v367, 0
      %v684 = vsel %vm424, %v368, 0
      %v687 = vsel %vm424, %v369, 0
      %v690 = vsel %vm424, %v370, 0
      %v693 = vsel %vm424, %v371, 0
      %v696 = vsel %vm424, %v372, 0
      %v699 = vsel %vm424, %v373, 0
      %v702 = vsel %vm424, %v374, 0
      %v705 = vsel %vm424, %v375, 0
      %v708 = vsel %vm424, %v376, 0
      %v711 = vsel %vm424, %v377, 0
      %v714 = vsel %vm424, %v378, 0
      %v717 = vsel %vm424, %v379, 0
      %v720 = vsel %vm424, %v380, 0
      %v723 = vsel %vm424, %v381, 0
      %v726 = vsel %vm424, %v382, 0
      %v729 = vsel %vm424, %v383, 0
      %v732 = vsel %vm424, %v384, 0
      %v735 = vsel %vm424, %v385, 0
      %v738 = vsel %vm424, %v386, 0
      %v741 = vsel %vm424, %v387, 0
      %v744 = vsel %vm424, %v388, 0
      %v747 = vsel %vm424, %v389, 0
      %v750 = vsel %vm424, %v390, 0
      %v753 = vsel %vm424, %v391, 0
      %v756 = vsel %vm424, %v392, 0
      %v759 = vsel %vm424, %v393, 0
      %v762 = vsel %vm424, %v394, 0
      %v765 = vsel %vm424, %v395, 0
      %v768 = vsel %vm424, %v396, 0
      %v771 = vsel %vm424, %v397, 0
      %v774 = vsel %vm424, %v398, 0
      %v777 = vsel %vm424, %v399, 0
      %v780 = vsel %vm424, %v400, 0
      %v783 = vsel %vm424, %v401, 0
      %v786 = vsel %vm424, %v402, 0
      %v789 = vsel %vm424, %v403, 0
      %v792 = vsel %vm424, %v404, 0
      %v795 = vsel %vm424, %v405, 0
      %v798 = vsel %vm424, %v406, 0
      %v801 = vsel %vm424, %v407, 0
      %v804 = vsel %vm424, %v408, 0
      %v807 = vsel %vm424, %v409, 0
      %vm809 = vcmask 1045504
      %v811 = vsel %vm809, %v416, 0
      %813 = vmatprep.subr.mxu0 0.0
      %814 = vmatpush1.msra.mxu0 %v410
      %815 = vmatprep.subr.mxu0 0.0
      %816 = vmatpush1.msra.mxu0 %v411
      %817 = vmatprep.subr.mxu0 0.0
      %818 = vmatpush1.msra.mxu0 %v412
      %819 = vmatprep.subr.mxu0 0.0
      %820 = vmatpush1.msra.mxu0 %v413
      %821 = vmatprep.subr.mxu0 0.0
      %822 = vmatpush1.msra.mxu0 %v414
      %823 = vmatprep.subr.mxu0 0.0
      %824 = vmatpush1.msra.mxu0 %v415
      %825 = vmatprep.subr.mxu0 0.0
      %826 = vmatpush1.msra.mxu0 %v811
      %827 = vmatprep.subr.mxu0 0.0
      %828 = vmatpush1.msra.mxu0 0.0
      %829 = vmatprep.subr.mxu0 0.0
      %830 = vmatpush1.msra.mxu0 0.0
      %831 = vmatprep.subr.mxu0 0.0
      %832 = vmatpush1.msra.mxu0 0.0
      %833 = vmatprep.subr.mxu0 0.0
      %834 = vmatpush1.msra.mxu0 0.0
      %835 = vmatprep.subr.mxu0 0.0
      %836 = vmatpush1.msra.mxu0 0.0
      %837 = vmatprep.subr.mxu0 0.0
      %838 = vmatpush1.msra.mxu0 0.0
      %839 = vmatprep.subr.mxu0 0.0
      %840 = vmatpush1.msra.mxu0 0.0
      %841 = vmatprep.subr.mxu0 0.0
      %842 = vmatpush1.msra.mxu0 0.0
      %843 = vmatprep.subr.mxu0 0.0
      %844 = vmatpush1.msra.mxu0 0.0
      %845 = vmatprep.subr.mxu0 0.0
      %846 = vmatpush1.msra.mxu0 0.0
      %847 = vmatprep.subr.mxu0 0.0
      %848 = vmatpush1.msra.mxu0 0.0
      %849 = vmatprep.subr.mxu0 0.0
      %850 = vmatpush1.msra.mxu0 0.0
      %851 = vmatprep.subr.mxu0 0.0
      %852 = vmatpush1.msra.mxu0 0.0
      %853 = vmatprep.subr.mxu0 0.0
      %854 = vmatpush1.msra.mxu0 0.0
      %855 = vmatprep.subr.mxu0 0.0
      %856 = vmatpush1.msra.mxu0 0.0
      %857 = vmatprep.subr.mxu0 0.0
      %858 = vmatpush1.msra.mxu0 0.0
      %859 = vmatprep.subr.mxu0 0.0
      %860 = vmatpush1.msra.mxu0 0.0
      %861 = vmatprep.subr.mxu0 0.0
      %862 = vmatpush1.msra.mxu0 0.0
      %863 = vmatprep.subr.mxu0 0.0
      %864 = vmatpush1.msra.mxu0 0.0
      %865 = vmatprep.subr.mxu0 0.0
      %866 = vmatpush1.msra.mxu0 0.0
      %867 = vmatprep.subr.mxu0 0.0
      %868 = vmatpush1.msra.mxu0 0.0
      %869 = vmatprep.subr.mxu0 0.0
      %870 = vmatpush1.msra.mxu0 0.0
      %871 = vmatprep.subr.mxu0 0.0
      %872 = vmatpush1.msra.mxu0 0.0
      %873 = vmatprep.subr.mxu0 0.0
      %874 = vmatpush1.msra.mxu0 0.0
      %875 = vmatprep.subr.mxu0 0.0
      %876 = vmatpush1.msra.mxu0 0.0
      %877 = vmatprep.mubr.f32.mxu0 0.0
      %878 = vmatmul.mubr.f32.gmra.mrb[0].mxu0 %v426
      %v879 = vpop.f32.mrb[0].mxu0
      %v880 = vadd.f32 %v422, %v879
      %v881 = vpop.f32.mrb[0].mxu0
      %882 = vmatprep.mubr.f32.mxu0 0.0
      %883 = vmatmul.mubr.f32.gmra.mrb[0].mxu0 %v429
      %v884 = vpop.f32.mrb[0].mxu0
      %v885 = vadd.f32 %v422, %v884
      %v886 = vpop.f32.mrb[0].mxu0
      %887 = vmatprep.mubr.f32.mxu0 0.0
      %888 = vmatmul.mubr.f32.gmra.mrb[0].mxu0 %v432
      %v889 = vpop.f32.mrb[0].mxu0
      %v890 = vadd.f32 %v422, %v889
      %v891 = vpop.f32.mrb[0].mxu0
      %892 = vmatprep.mubr.f32.mxu0 0.0
      %893 = vmatmul.mubr.f32.gmra.mrb[0].mxu0 %v435
      %v894 = vpop.f32.mrb[0].mxu0
      %v895 = vadd.f32 %v422, %v894
      %v896 = vpop.f32.mrb[0].mxu0
      %897 = vmatprep.mubr.f32.mxu0 0.0
      %898 = vmatmul.mubr.f32.gmra.mrb[0].mxu0 %v438
      %v899 = vpop.f32.mrb[0].mxu0
      %v900 = vadd.f32 %v422, %v899
      %v901 = vpop.f32.mrb[0].mxu0
      %902 = vmatprep.mubr.f32.mxu0 0.0
      %903 = vmatmul.mubr.f32.gmra.mrb[0].mxu0 %v441
      %v904 = vpop.f32.mrb[0].mxu0
      %v905 = vadd.f32 %v422, %v904
      %v906 = vpop.f32.mrb[0].mxu0
      %907 = vmatprep.mubr.f32.mxu0 0.0
      %908 = vmatmul.mubr.f32.gmra.mrb[0].mxu0 %v444
      %v909 = vpop.f32.mrb[0].mxu0
      %v910 = vadd.f32 %v422, %v909
      %v911 = vpop.f32.mrb[0].mxu0
      %912 = vmatprep.mubr.f32.mxu0 0.0
      %913 = vmatmul.mubr.f32.gmra.mrb[0].mxu0 %v447
      %v914 = vpop.f32.mrb[0].mxu0
      %v915 = vadd.f32 %v422, %v914
      %v916 = vpop.f32.mrb[0].mxu0
      %917 = vmatprep.mubr.f32.mxu0 0.0
      %918 = vmatmul.mubr.f32.gmra.mrb[0].mxu0 %v450
      %v919 = vpop.f32.mrb[0].mxu0
      %v920 = vadd.f32 %v422, %v919
      %v921 = vpop.f32.mrb[0].mxu0
      %922 = vmatprep.mubr.f32.mxu0 0.0
      %923 = vmatmul.mubr.f32.gmra.mrb[0].mxu0 %v453
      %v924 = vpop.f32.mrb[0].mxu0
      %v925 = vadd.f32 %v422, %v924
      %v926 = vpop.f32.mrb[0].mxu0
      %927 = vmatprep.mubr.f32.mxu0 0.0
      %928 = vmatmul.mubr.f32.gmra.mrb[0].mxu0 %v456
      %v929 = vpop.f32.mrb[0].mxu0
      %v930 = vadd.f32 %v422, %v929
      %v931 = vpop.f32.mrb[0].mxu0
      %932 = vmatprep.mubr.f32.mxu0 0.0
      %933 = vmatmul.mubr.f32.gmra.mrb[0].mxu0 %v459
      %v934 = vpop.f32.mrb[0].mxu0
      %v935 = vadd.f32 %v422, %v934
      %v936 = vpop.f32.mrb[0].mxu0
      %937 = vmatprep.mubr.f32.mxu0 0.0
      %938 = vmatmul.mubr.f32.gmra.mrb[0].mxu0 %v462
      %v939 = vpop.f32.mrb[0].mxu0
      %v940 = vadd.f32 %v422, %v939
      %v941 = vpop.f32.mrb[0].mxu0
      %942 = vmatprep.mubr.f32.mxu0 0.0
      %943 = vmatmul.mubr.f32.gmra.mrb[0].mxu0 %v465
      %v944 = vpop.f32.mrb[0].mxu0
      %v945 = vadd.f32 %v422, %v944
      %v946 = vpop.f32.mrb[0].mxu0
      %947 = vmatprep.mubr.f32.mxu0 0.0
      %948 = vmatmul.mubr.f32.gmra.mrb[0].mxu0 %v468
      %v949 = vpop.f32.mrb[0].mxu0
      %v950 = vadd.f32 %v422, %v949
      %v951 = vpop.f32.mrb[0].mxu0
      %952 = vmatprep.mubr.f32.mxu0 0.0
      %953 = vmatmul.mubr.f32.gmra.mrb[0].mxu0 %v471
      %v954 = vpop.f32.mrb[0].mxu0
      %v955 = vadd.f32 %v422, %v954
      %v956 = vpop.f32.mrb[0].mxu0
      %957 = vmatprep.mubr.f32.mxu0 0.0
      %958 = vmatmul.mubr.f32.gmra.mrb[0].mxu0 %v474
      %v959 = vpop.f32.mrb[0].mxu0
      %v960 = vadd.f32 %v422, %v959
      %v961 = vpop.f32.mrb[0].mxu0
      %962 = vmatprep.mubr.f32.mxu0 0.0
      %963 = vmatmul.mubr.f32.gmra.mrb[0].mxu0 %v477
      %v964 = vpop.f32.mrb[0].mxu0
      %v965 = vadd.f32 %v422, %v964
      %v966 = vpop.f32.mrb[0].mxu0
      %967 = vmatprep.mubr.f32.mxu0 0.0
      %968 = vmatmul.mubr.f32.gmra.mrb[0].mxu0 %v480
      %v969 = vpop.f32.mrb[0].mxu0
      %v970 = vadd.f32 %v422, %v969
      %v971 = vpop.f32.mrb[0].mxu0
      %972 = vmatprep.mubr.f32.mxu0 0.0
      %973 = vmatmul.mubr.f32.gmra.mrb[0].mxu0 %v483
      %v974 = vpop.f32.mrb[0].mxu0
      %v975 = vadd.f32 %v422, %v974
      %v976 = vpop.f32.mrb[0].mxu0
      %977 = vmatprep.mubr.f32.mxu0 0.0
      %978 = vmatmul.mubr.f32.gmra.mrb[0].mxu0 %v486
      %v979 = vpop.f32.mrb[0].mxu0
      %v980 = vadd.f32 %v422, %v979
      %v981 = vpop.f32.mrb[0].mxu0
      %982 = vmatprep.mubr.f32.mxu0 0.0
      %983 = vmatmul.mubr.f32.gmra.mrb[0].mxu0 %v489
      %v984 = vpop.f32.mrb[0].mxu0
      %v985 = vadd.f32 %v422, %v984
      %v986 = vpop.f32.mrb[0].mxu0
      %987 = vmatprep.mubr.f32.mxu0 0.0
      %988 = vmatmul.mubr.f32.gmra.mrb[0].mxu0 %v492
      %v989 = vpop.f32.mrb[0].mxu0
      %v990 = vadd.f32 %v422, %v989
      %v991 = vpop.f32.mrb[0].mxu0
      %992 = vmatprep.mubr.f32.mxu0 0.0
      %993 = vmatmul.mubr.f32.gmra.mrb[0].mxu0 %v495
      %v994 = vpop.f32.mrb[0].mxu0
      %v995 = vadd.f32 %v422, %v994
      %v996 = vpop.f32.mrb[0].mxu0
      %997 = vmatprep.mubr.f32.mxu0 0.0
      %998 = vmatmul.mubr.f32.gmra.mrb[0].mxu0 %v498
      %v999 = vpop.f32.mrb[0].mxu0
      %v1000 = vadd.f32 %v422, %v999
      %v1001 = vpop.f32.mrb[0].mxu0
      %1002 = vmatprep.mubr.f32.mxu0 0.0
      %1003 = vmatmul.mubr.f32.gmra.mrb[0].mxu0 %v501
      %v1004 = vpop.f32.mrb[0].mxu0
      %v1005 = vadd.f32 %v422, %v1004
      %v1006 = vpop.f32.mrb[0].mxu0
      %1007 = vmatprep.mubr.f32.mxu0 0.0
      %1008 = vmatmul.mubr.f32.gmra.mrb[0].mxu0 %v504
      %v1009 = vpop.f32.mrb[0].mxu0
      %v1010 = vadd.f32 %v422, %v1009
      %v1011 = vpop.f32.mrb[0].mxu0
      %1012 = vmatprep.mubr.f32.mxu0 0.0
      %1013 = vmatmul.mubr.f32.gmra.mrb[0].mxu0 %v507
      %v1014 = vpop.f32.mrb[0].mxu0
      %v1015 = vadd.f32 %v422, %v1014
      %v1016 = vpop.f32.mrb[0].mxu0
      %1017 = vmatprep.mubr.f32.mxu0 0.0
      %1018 = vmatmul.mubr.f32.gmra.mrb[0].mxu0 %v510
      %v1019 = vpop.f32.mrb[0].mxu0
      %v1020 = vadd.f32 %v422, %v1019
      %v1021 = vpop.f32.mrb[0].mxu0
      %1022 = vmatprep.mubr.f32.mxu0 0.0
      %1023 = vmatmul.mubr.f32.gmra.mrb[0].mxu0 %v513
      %v1024 = vpop.f32.mrb[0].mxu0
      %v1025 = vadd.f32 %v422, %v1024
      %v1026 = vpop.f32.mrb[0].mxu0
      %1027 = vmatprep.mubr.f32.mxu0 0.0
      %1028 = vmatmul.mubr.f32.gmra.mrb[0].mxu0 %v516
      %v1029 = vpop.f32.mrb[0].mxu0
      %v1030 = vadd.f32 %v422, %v1029
      %v1031 = vpop.f32.mrb[0].mxu0
      %1032 = vmatprep.mubr.f32.mxu0 0.0
      %1033 = vmatmul.mubr.f32.gmra.mrb[0].mxu0 %v519
      %v1034 = vpop.f32.mrb[0].mxu0
      %v1035 = vadd.f32 %v422, %v1034
      %v1036 = vpop.f32.mrb[0].mxu0
      %1037 = vmatprep.mubr.f32.mxu0 0.0
      %1038 = vmatmul.mubr.f32.gmra.mrb[0].mxu0 %v522
      %v1039 = vpop.f32.mrb[0].mxu0
      %v1040 = vadd.f32 %v422, %v1039
      %v1041 = vpop.f32.mrb[0].mxu0
      %1042 = vmatprep.mubr.f32.mxu0 0.0
      %1043 = vmatmul.mubr.f32.gmra.mrb[0].mxu0 %v525
      %v1044 = vpop.f32.mrb[0].mxu0
      %v1045 = vadd.f32 %v422, %v1044
      %v1046 = vpop.f32.mrb[0].mxu0
      %1047 = vmatprep.mubr.f32.mxu0 0.0
      %1048 = vmatmul.mubr.f32.gmra.mrb[0].mxu0 %v528
      %v1049 = vpop.f32.mrb[0].mxu0
      %v1050 = vadd.f32 %v422, %v1049
      %v1051 = vpop.f32.mrb[0].mxu0
      %1052 = vmatprep.mubr.f32.mxu0 0.0
      %1053 = vmatmul.mubr.f32.gmra.mrb[0].mxu0 %v531
      %v1054 = vpop.f32.mrb[0].mxu0
      %v1055 = vadd.f32 %v422, %v1054
      %v1056 = vpop.f32.mrb[0].mxu0
      %1057 = vmatprep.mubr.f32.mxu0 0.0
      %1058 = vmatmul.mubr.f32.gmra.mrb[0].mxu0 %v534
      %v1059 = vpop.f32.mrb[0].mxu0
      %v1060 = vadd.f32 %v422, %v1059
      %v1061 = vpop.f32.mrb[0].mxu0
      %1062 = vmatprep.mubr.f32.mxu0 0.0
      %1063 = vmatmul.mubr.f32.gmra.mrb[0].mxu0 %v537
      %v1064 = vpop.f32.mrb[0].mxu0
      %v1065 = vadd.f32 %v422, %v1064
      %v1066 = vpop.f32.mrb[0].mxu0
      %1067 = vmatprep.mubr.f32.mxu0 0.0
      %1068 = vmatmul.mubr.f32.gmra.mrb[0].mxu0 %v540
      %v1069 = vpop.f32.mrb[0].mxu0
      %v1070 = vadd.f32 %v422, %v1069
      %v1071 = vpop.f32.mrb[0].mxu0
      %1072 = vmatprep.mubr.f32.mxu0 0.0
      %1073 = vmatmul.mubr.f32.gmra.mrb[0].mxu0 %v543
      %v1074 = vpop.f32.mrb[0].mxu0
      %v1075 = vadd.f32 %v422, %v1074
      %v1076 = vpop.f32.mrb[0].mxu0
      %1077 = vmatprep.mubr.f32.mxu0 0.0
      %1078 = vmatmul.mubr.f32.gmra.mrb[0].mxu0 %v546
      %v1079 = vpop.f32.mrb[0].mxu0
      %v1080 = vadd.f32 %v422, %v1079
      %v1081 = vpop.f32.mrb[0].mxu0
      %1082 = vmatprep.mubr.f32.mxu0 0.0
      %1083 = vmatmul.mubr.f32.gmra.mrb[0].mxu0 %v549
      %v1084 = vpop.f32.mrb[0].mxu0
      %v1085 = vadd.f32 %v422, %v1084
      %v1086 = vpop.f32.mrb[0].mxu0
      %1087 = vmatprep.mubr.f32.mxu0 0.0
      %1088 = vmatmul.mubr.f32.gmra.mrb[0].mxu0 %v552
      %v1089 = vpop.f32.mrb[0].mxu0
      %v1090 = vadd.f32 %v422, %v1089
      %v1091 = vpop.f32.mrb[0].mxu0
      %1092 = vmatprep.mubr.f32.mxu0 0.0
      %1093 = vmatmul.mubr.f32.gmra.mrb[0].mxu0 %v555
      %v1094 = vpop.f32.mrb[0].mxu0
      %v1095 = vadd.f32 %v422, %v1094
      %v1096 = vpop.f32.mrb[0].mxu0
      %1097 = vmatprep.mubr.f32.mxu0 0.0
      %1098 = vmatmul.mubr.f32.gmra.mrb[0].mxu0 %v558
      %v1099 = vpop.f32.mrb[0].mxu0
      %v1100 = vadd.f32 %v422, %v1099
      %v1101 = vpop.f32.mrb[0].mxu0
      %1102 = vmatprep.mubr.f32.mxu0 0.0
      %1103 = vmatmul.mubr.f32.gmra.mrb[0].mxu0 %v561
      %v1104 = vpop.f32.mrb[0].mxu0
      %v1105 = vadd.f32 %v422, %v1104
      %v1106 = vpop.f32.mrb[0].mxu0
      %1107 = vmatprep.mubr.f32.mxu0 0.0
      %1108 = vmatmul.mubr.f32.gmra.mrb[0].mxu0 %v564
      %v1109 = vpop.f32.mrb[0].mxu0
      %v1110 = vadd.f32 %v422, %v1109
      %v1111 = vpop.f32.mrb[0].mxu0
      %1112 = vmatprep.mubr.f32.mxu0 0.0
      %1113 = vmatmul.mubr.f32.gmra.mrb[0].mxu0 %v567
      %v1114 = vpop.f32.mrb[0].mxu0
      %v1115 = vadd.f32 %v422, %v1114
      %v1116 = vpop.f32.mrb[0].mxu0
      %1117 = vmatprep.mubr.f32.mxu0 0.0
      %1118 = vmatmul.mubr.f32.gmra.mrb[0].mxu0 %v570
      %v1119 = vpop.f32.mrb[0].mxu0
      %v1120 = vadd.f32 %v422, %v1119
      %v1121 = vpop.f32.mrb[0].mxu0
      %1122 = vmatprep.mubr.f32.mxu0 0.0
      %1123 = vmatmul.mubr.f32.gmra.mrb[0].mxu0 %v573
      %v1124 = vpop.f32.mrb[0].mxu0
      %v1125 = vadd.f32 %v422, %v1124
      %v1126 = vpop.f32.mrb[0].mxu0
      %1127 = vmatprep.mubr.f32.mxu0 0.0
      %1128 = vmatmul.mubr.f32.gmra.mrb[0].mxu0 %v576
      %v1129 = vpop.f32.mrb[0].mxu0
      %v1130 = vadd.f32 %v422, %v1129
      %v1131 = vpop.f32.mrb[0].mxu0
      %1132 = vmatprep.mubr.f32.mxu0 0.0
      %1133 = vmatmul.mubr.f32.gmra.mrb[0].mxu0 %v579
      %v1134 = vpop.f32.mrb[0].mxu0
      %v1135 = vadd.f32 %v422, %v1134
      %v1136 = vpop.f32.mrb[0].mxu0
      %1137 = vmatprep.mubr.f32.mxu0 0.0
      %1138 = vmatmul.mubr.f32.gmra.mrb[0].mxu0 %v582
      %v1139 = vpop.f32.mrb[0].mxu0
      %v1140 = vadd.f32 %v422, %v1139
      %v1141 = vpop.f32.mrb[0].mxu0
      %1142 = vmatprep.mubr.f32.mxu0 0.0
      %1143 = vmatmul.mubr.f32.gmra.mrb[0].mxu0 %v585
      %v1144 = vpop.f32.mrb[0].mxu0
      %v1145 = vadd.f32 %v422, %v1144
      %v1146 = vpop.f32.mrb[0].mxu0
      %1147 = vmatprep.mubr.f32.mxu0 0.0
      %1148 = vmatmul.mubr.f32.gmra.mrb[0].mxu0 %v588
      %v1149 = vpop.f32.mrb[0].mxu0
      %v1150 = vadd.f32 %v422, %v1149
      %v1151 = vpop.f32.mrb[0].mxu0
      %1152 = vmatprep.mubr.f32.mxu0 0.0
      %1153 = vmatmul.mubr.f32.gmra.mrb[0].mxu0 %v591
      %v1154 = vpop.f32.mrb[0].mxu0
      %v1155 = vadd.f32 %v422, %v1154
      %v1156 = vpop.f32.mrb[0].mxu0
      %1157 = vmatprep.mubr.f32.mxu0 0.0
      %1158 = vmatmul.mubr.f32.gmra.mrb[0].mxu0 %v594
      %v1159 = vpop.f32.mrb[0].mxu0
      %v1160 = vadd.f32 %v422, %v1159
      %v1161 = vpop.f32.mrb[0].mxu0
      %1162 = vmatprep.mubr.f32.mxu0 0.0
      %1163 = vmatmul.mubr.f32.gmra.mrb[0].mxu0 %v597
      %v1164 = vpop.f32.mrb[0].mxu0
      %v1165 = vadd.f32 %v422, %v1164
      %v1166 = vpop.f32.mrb[0].mxu0
      %1167 = vmatprep.mubr.f32.mxu0 0.0
      %1168 = vmatmul.mubr.f32.gmra.mrb[0].mxu0 %v600
      %v1169 = vpop.f32.mrb[0].mxu0
      %v1170 = vadd.f32 %v422, %v1169
      %v1171 = vpop.f32.mrb[0].mxu0
      %1172 = vmatprep.mubr.f32.mxu0 0.0
      %1173 = vmatmul.mubr.f32.gmra.mrb[0].mxu0 %v603
      %v1174 = vpop.f32.mrb[0].mxu0
      %v1175 = vadd.f32 %v422, %v1174
      %v1176 = vpop.f32.mrb[0].mxu0
      %1177 = vmatprep.mubr.f32.mxu0 0.0
      %1178 = vmatmul.mubr.f32.gmra.mrb[0].mxu0 %v606
      %v1179 = vpop.f32.mrb[0].mxu0
      %v1180 = vadd.f32 %v422, %v1179
      %v1181 = vpop.f32.mrb[0].mxu0
      %1182 = vmatprep.mubr.f32.mxu0 0.0
      %1183 = vmatmul.mubr.f32.gmra.mrb[0].mxu0 %v609
      %v1184 = vpop.f32.mrb[0].mxu0
      %v1185 = vadd.f32 %v422, %v1184
      %v1186 = vpop.f32.mrb[0].mxu0
      %1187 = vmatprep.mubr.f32.mxu0 0.0
      %1188 = vmatmul.mubr.f32.gmra.mrb[0].mxu0 %v612
      %v1189 = vpop.f32.mrb[0].mxu0
      %v1190 = vadd.f32 %v422, %v1189
      %v1191 = vpop.f32.mrb[0].mxu0
      %1192 = vmatprep.mubr.f32.mxu0 0.0
      %1193 = vmatmul.mubr.f32.gmra.mrb[0].mxu0 %v615
      %v1194 = vpop.f32.mrb[0].mxu0
      %v1195 = vadd.f32 %v422, %v1194
      %v1196 = vpop.f32.mrb[0].mxu0
      %1197 = vmatprep.mubr.f32.mxu0 0.0
      %1198 = vmatmul.mubr.f32.gmra.mrb[0].mxu0 %v618
      %v1199 = vpop.f32.mrb[0].mxu0
      %v1200 = vadd.f32 %v422, %v1199
      %v1201 = vpop.f32.mrb[0].mxu0
      %1202 = vmatprep.mubr.f32.mxu0 0.0
      %1203 = vmatmul.mubr.f32.gmra.mrb[0].mxu0 %v621
      %v1204 = vpop.f32.mrb[0].mxu0
      %v1205 = vadd.f32 %v422, %v1204
      %v1206 = vpop.f32.mrb[0].mxu0
      %1207 = vmatprep.mubr.f32.mxu0 0.0
      %1208 = vmatmul.mubr.f32.gmra.mrb[0].mxu0 %v624
      %v1209 = vpop.f32.mrb[0].mxu0
      %v1210 = vadd.f32 %v422, %v1209
      %v1211 = vpop.f32.mrb[0].mxu0
      %1212 = vmatprep.mubr.f32.mxu0 0.0
      %1213 = vmatmul.mubr.f32.gmra.mrb[0].mxu0 %v627
      %v1214 = vpop.f32.mrb[0].mxu0
      %v1215 = vadd.f32 %v422, %v1214
      %v1216 = vpop.f32.mrb[0].mxu0
      %1217 = vmatprep.mubr.f32.mxu0 0.0
      %1218 = vmatmul.mubr.f32.gmra.mrb[0].mxu0 %v630
      %v1219 = vpop.f32.mrb[0].mxu0
      %v1220 = vadd.f32 %v422, %v1219
      %v1221 = vpop.f32.mrb[0].mxu0
      %1222 = vmatprep.mubr.f32.mxu0 0.0
      %1223 = vmatmul.mubr.f32.gmra.mrb[0].mxu0 %v633
      %v1224 = vpop.f32.mrb[0].mxu0
      %v1225 = vadd.f32 %v422, %v1224
      %v1226 = vpop.f32.mrb[0].mxu0
      %1227 = vmatprep.mubr.f32.mxu0 0.0
      %1228 = vmatmul.mubr.f32.gmra.mrb[0].mxu0 %v636
      %v1229 = vpop.f32.mrb[0].mxu0
      %v1230 = vadd.f32 %v422, %v1229
      %v1231 = vpop.f32.mrb[0].mxu0
      %1232 = vmatprep.mubr.f32.mxu0 0.0
      %1233 = vmatmul.mubr.f32.gmra.mrb[0].mxu0 %v639
      %v1234 = vpop.f32.mrb[0].mxu0
      %v1235 = vadd.f32 %v422, %v1234
      %v1236 = vpop.f32.mrb[0].mxu0
      %1237 = vmatprep.mubr.f32.mxu0 0.0
      %1238 = vmatmul.mubr.f32.gmra.mrb[0].mxu0 %v642
      %v1239 = vpop.f32.mrb[0].mxu0
      %v1240 = vadd.f32 %v422, %v1239
      %v1241 = vpop.f32.mrb[0].mxu0
      %1242 = vmatprep.mubr.f32.mxu0 0.0
      %1243 = vmatmul.mubr.f32.gmra.mrb[0].mxu0 %v645
      %v1244 = vpop.f32.mrb[0].mxu0
      %v1245 = vadd.f32 %v422, %v1244
      %v1246 = vpop.f32.mrb[0].mxu0
      %1247 = vmatprep.mubr.f32.mxu0 0.0
      %1248 = vmatmul.mubr.f32.gmra.mrb[0].mxu0 %v648
      %v1249 = vpop.f32.mrb[0].mxu0
      %v1250 = vadd.f32 %v422, %v1249
      %v1251 = vpop.f32.mrb[0].mxu0
      %1252 = vmatprep.mubr.f32.mxu0 0.0
      %1253 = vmatmul.mubr.f32.gmra.mrb[0].mxu0 %v651
      %v1254 = vpop.f32.mrb[0].mxu0
      %v1255 = vadd.f32 %v422, %v1254
      %v1256 = vpop.f32.mrb[0].mxu0
      %1257 = vmatprep.mubr.f32.mxu0 0.0
      %1258 = vmatmul.mubr.f32.gmra.mrb[0].mxu0 %v654
      %v1259 = vpop.f32.mrb[0].mxu0
      %v1260 = vadd.f32 %v422, %v1259
      %v1261 = vpop.f32.mrb[0].mxu0
      %1262 = vmatprep.mubr.f32.mxu0 0.0
      %1263 = vmatmul.mubr.f32.gmra.mrb[0].mxu0 %v657
      %v1264 = vpop.f32.mrb[0].mxu0
      %v1265 = vadd.f32 %v422, %v1264
      %v1266 = vpop.f32.mrb[0].mxu0
      %1267 = vmatprep.mubr.f32.mxu0 0.0
      %1268 = vmatmul.mubr.f32.gmra.mrb[0].mxu0 %v660
      %v1269 = vpop.f32.mrb[0].mxu0
      %v1270 = vadd.f32 %v422, %v1269
      %v1271 = vpop.f32.mrb[0].mxu0
      %1272 = vmatprep.mubr.f32.mxu0 0.0
      %1273 = vmatmul.mubr.f32.gmra.mrb[0].mxu0 %v663
      %v1274 = vpop.f32.mrb[0].mxu0
      %v1275 = vadd.f32 %v422, %v1274
      %v1276 = vpop.f32.mrb[0].mxu0
      %1277 = vmatprep.mubr.f32.mxu0 0.0
      %1278 = vmatmul.mubr.f32.gmra.mrb[0].mxu0 %v666
      %v1279 = vpop.f32.mrb[0].mxu0
      %v1280 = vadd.f32 %v422, %v1279
      %v1281 = vpop.f32.mrb[0].mxu0
      %1282 = vmatprep.mubr.f32.mxu0 0.0
      %1283 = vmatmul.mubr.f32.gmra.mrb[0].mxu0 %v669
      %v1284 = vpop.f32.mrb[0].mxu0
      %v1285 = vadd.f32 %v422, %v1284
      %v1286 = vpop.f32.mrb[0].mxu0
      %1287 = vmatprep.mubr.f32.mxu0 0.0
      %1288 = vmatmul.mubr.f32.gmra.mrb[0].mxu0 %v672
      %v1289 = vpop.f32.mrb[0].mxu0
      %v1290 = vadd.f32 %v422, %v1289
      %v1291 = vpop.f32.mrb[0].mxu0
      %1292 = vmatprep.mubr.f32.mxu0 0.0
      %1293 = vmatmul.mubr.f32.gmra.mrb[0].mxu0 %v675
      %v1294 = vpop.f32.mrb[0].mxu0
      %v1295 = vadd.f32 %v422, %v1294
      %v1296 = vpop.f32.mrb[0].mxu0
      %1297 = vmatprep.mubr.f32.mxu0 0.0
      %1298 = vmatmul.mubr.f32.gmra.mrb[0].mxu0 %v678
      %v1299 = vpop.f32.mrb[0].mxu0
      %v1300 = vadd.f32 %v422, %v1299
      %v1301 = vpop.f32.mrb[0].mxu0
      %1302 = vmatprep.mubr.f32.mxu0 0.0
      %1303 = vmatmul.mubr.f32.gmra.mrb[0].mxu0 %v681
      %v1304 = vpop.f32.mrb[0].mxu0
      %v1305 = vadd.f32 %v422, %v1304
      %v1306 = vpop.f32.mrb[0].mxu0
      %1307 = vmatprep.mubr.f32.mxu0 0.0
      %1308 = vmatmul.mubr.f32.gmra.mrb[0].mxu0 %v684
      %v1309 = vpop.f32.mrb[0].mxu0
      %v1310 = vadd.f32 %v422, %v1309
      %v1311 = vpop.f32.mrb[0].mxu0
      %1312 = vmatprep.mubr.f32.mxu0 0.0
      %1313 = vmatmul.mubr.f32.gmra.mrb[0].mxu0 %v687
      %v1314 = vpop.f32.mrb[0].mxu0
      %v1315 = vadd.f32 %v422, %v1314
      %v1316 = vpop.f32.mrb[0].mxu0
      %1317 = vmatprep.mubr.f32.mxu0 0.0
      %1318 = vmatmul.mubr.f32.gmra.mrb[0].mxu0 %v690
      %v1319 = vpop.f32.mrb[0].mxu0
      %v1320 = vadd.f32 %v422, %v1319
      %v1321 = vpop.f32.mrb[0].mxu0
      %1322 = vmatprep.mubr.f32.mxu0 0.0
      %1323 = vmatmul.mubr.f32.gmra.mrb[0].mxu0 %v693
      %v1324 = vpop.f32.mrb[0].mxu0
      %v1325 = vadd.f32 %v422, %v1324
      %v1326 = vpop.f32.mrb[0].mxu0
      %1327 = vmatprep.mubr.f32.mxu0 0.0
      %1328 = vmatmul.mubr.f32.gmra.mrb[0].mxu0 %v696
      %v1329 = vpop.f32.mrb[0].mxu0
      %v1330 = vadd.f32 %v422, %v1329
      %v1331 = vpop.f32.mrb[0].mxu0
      %1332 = vmatprep.mubr.f32.mxu0 0.0
      %1333 = vmatmul.mubr.f32.gmra.mrb[0].mxu0 %v699
      %v1334 = vpop.f32.mrb[0].mxu0
      %v1335 = vadd.f32 %v422, %v1334
      %v1336 = vpop.f32.mrb[0].mxu0
      %1337 = vmatprep.mubr.f32.mxu0 0.0
      %1338 = vmatmul.mubr.f32.gmra.mrb[0].mxu0 %v702
      %v1339 = vpop.f32.mrb[0].mxu0
      %v1340 = vadd.f32 %v422, %v1339
      %v1341 = vpop.f32.mrb[0].mxu0
      %1342 = vmatprep.mubr.f32.mxu0 0.0
      %1343 = vmatmul.mubr.f32.gmra.mrb[0].mxu0 %v705
      %v1344 = vpop.f32.mrb[0].mxu0
      %v1345 = vadd.f32 %v422, %v1344
      %v1346 = vpop.f32.mrb[0].mxu0
      %1347 = vmatprep.mubr.f32.mxu0 0.0
      %1348 = vmatmul.mubr.f32.gmra.mrb[0].mxu0 %v708
      %v1349 = vpop.f32.mrb[0].mxu0
      %v1350 = vadd.f32 %v422, %v1349
      %v1351 = vpop.f32.mrb[0].mxu0
      %1352 = vmatprep.mubr.f32.mxu0 0.0
      %1353 = vmatmul.mubr.f32.gmra.mrb[0].mxu0 %v711
      %v1354 = vpop.f32.mrb[0].mxu0
      %v1355 = vadd.f32 %v422, %v1354
      %v1356 = vpop.f32.mrb[0].mxu0
      %1357 = vmatprep.mubr.f32.mxu0 0.0
      %1358 = vmatmul.mubr.f32.gmra.mrb[0].mxu0 %v714
      %v1359 = vpop.f32.mrb[0].mxu0
      %v1360 = vadd.f32 %v422, %v1359
      %v1361 = vpop.f32.mrb[0].mxu0
      %1362 = vmatprep.mubr.f32.mxu0 0.0
      %1363 = vmatmul.mubr.f32.gmra.mrb[0].mxu0 %v717
      %v1364 = vpop.f32.mrb[0].mxu0
      %v1365 = vadd.f32 %v422, %v1364
      %v1366 = vpop.f32.mrb[0].mxu0
      %1367 = vmatprep.mubr.f32.mxu0 0.0
      %1368 = vmatmul.mubr.f32.gmra.mrb[0].mxu0 %v720
      %v1369 = vpop.f32.mrb[0].mxu0
      %v1370 = vadd.f32 %v422, %v1369
      %v1371 = vpop.f32.mrb[0].mxu0
      %1372 = vmatprep.mubr.f32.mxu0 0.0
      %1373 = vmatmul.mubr.f32.gmra.mrb[0].mxu0 %v723
      %v1374 = vpop.f32.mrb[0].mxu0
      %v1375 = vadd.f32 %v422, %v1374
      %v1376 = vpop.f32.mrb[0].mxu0
      %1377 = vmatprep.mubr.f32.mxu0 0.0
      %1378 = vmatmul.mubr.f32.gmra.mrb[0].mxu0 %v726
      %v1379 = vpop.f32.mrb[0].mxu0
      %v1380 = vadd.f32 %v422, %v1379
      %v1381 = vpop.f32.mrb[0].mxu0
      %1382 = vmatprep.mubr.f32.mxu0 0.0
      %1383 = vmatmul.mubr.f32.gmra.mrb[0].mxu0 %v729
      %v1384 = vpop.f32.mrb[0].mxu0
      %v1385 = vadd.f32 %v422, %v1384
      %v1386 = vpop.f32.mrb[0].mxu0
      %1387 = vmatprep.mubr.f32.mxu0 0.0
      %1388 = vmatmul.mubr.f32.gmra.mrb[0].mxu0 %v732
      %v1389 = vpop.f32.mrb[0].mxu0
      %v1390 = vadd.f32 %v422, %v1389
      %v1391 = vpop.f32.mrb[0].mxu0
      %1392 = vmatprep.mubr.f32.mxu0 0.0
      %1393 = vmatmul.mubr.f32.gmra.mrb[0].mxu0 %v735
      %v1394 = vpop.f32.mrb[0].mxu0
      %v1395 = vadd.f32 %v422, %v1394
      %v1396 = vpop.f32.mrb[0].mxu0
      %1397 = vmatprep.mubr.f32.mxu0 0.0
      %1398 = vmatmul.mubr.f32.gmra.mrb[0].mxu0 %v738
      %v1399 = vpop.f32.mrb[0].mxu0
      %v1400 = vadd.f32 %v422, %v1399
      %v1401 = vpop.f32.mrb[0].mxu0
      %1402 = vmatprep.mubr.f32.mxu0 0.0
      %1403 = vmatmul.mubr.f32.gmra.mrb[0].mxu0 %v741
      %v1404 = vpop.f32.mrb[0].mxu0
      %v1405 = vadd.f32 %v422, %v1404
      %v1406 = vpop.f32.mrb[0].mxu0
      %1407 = vmatprep.mubr.f32.mxu0 0.0
      %1408 = vmatmul.mubr.f32.gmra.mrb[0].mxu0 %v744
      %v1409 = vpop.f32.mrb[0].mxu0
      %v1410 = vadd.f32 %v422, %v1409
      %v1411 = vpop.f32.mrb[0].mxu0
      %1412 = vmatprep.mubr.f32.mxu0 0.0
      %1413 = vmatmul.mubr.f32.gmra.mrb[0].mxu0 %v747
      %v1414 = vpop.f32.mrb[0].mxu0
      %v1415 = vadd.f32 %v422, %v1414
      %v1416 = vpop.f32.mrb[0].mxu0
      %1417 = vmatprep.mubr.f32.mxu0 0.0
      %1418 = vmatmul.mubr.f32.gmra.mrb[0].mxu0 %v750
      %v1419 = vpop.f32.mrb[0].mxu0
      %v1420 = vadd.f32 %v422, %v1419
      %v1421 = vpop.f32.mrb[0].mxu0
      %1422 = vmatprep.mubr.f32.mxu0 0.0
      %1423 = vmatmul.mubr.f32.gmra.mrb[0].mxu0 %v753
      %v1424 = vpop.f32.mrb[0].mxu0
      %v1425 = vadd.f32 %v422, %v1424
      %v1426 = vpop.f32.mrb[0].mxu0
      %1427 = vmatprep.mubr.f32.mxu0 0.0
      %1428 = vmatmul.mubr.f32.gmra.mrb[0].mxu0 %v756
      %v1429 = vpop.f32.mrb[0].mxu0
      %v1430 = vadd.f32 %v422, %v1429
      %v1431 = vpop.f32.mrb[0].mxu0
      %1432 = vmatprep.mubr.f32.mxu0 0.0
      %1433 = vmatmul.mubr.f32.gmra.mrb[0].mxu0 %v759
      %v1434 = vpop.f32.mrb[0].mxu0
      %v1435 = vadd.f32 %v422, %v1434
      %v1436 = vpop.f32.mrb[0].mxu0
      %1437 = vmatprep.mubr.f32.mxu0 0.0
      %1438 = vmatmul.mubr.f32.gmra.mrb[0].mxu0 %v762
      %v1439 = vpop.f32.mrb[0].mxu0
      %v1440 = vadd.f32 %v422, %v1439
      %v1441 = vpop.f32.mrb[0].mxu0
      %1442 = vmatprep.mubr.f32.mxu0 0.0
      %1443 = vmatmul.mubr.f32.gmra.mrb[0].mxu0 %v765
      %v1444 = vpop.f32.mrb[0].mxu0
      %v1445 = vadd.f32 %v422, %v1444
      %v1446 = vpop.f32.mrb[0].mxu0
      %1447 = vmatprep.mubr.f32.mxu0 0.0
      %1448 = vmatmul.mubr.f32.gmra.mrb[0].mxu0 %v768
      %v1449 = vpop.f32.mrb[0].mxu0
      %v1450 = vadd.f32 %v422, %v1449
      %v1451 = vpop.f32.mrb[0].mxu0
      %1452 = vmatprep.mubr.f32.mxu0 0.0
      %1453 = vmatmul.mubr.f32.gmra.mrb[0].mxu0 %v771
      %v1454 = vpop.f32.mrb[0].mxu0
      %v1455 = vadd.f32 %v422, %v1454
      %v1456 = vpop.f32.mrb[0].mxu0
      %1457 = vmatprep.mubr.f32.mxu0 0.0
      %1458 = vmatmul.mubr.f32.gmra.mrb[0].mxu0 %v774
      %v1459 = vpop.f32.mrb[0].mxu0
      %v1460 = vadd.f32 %v422, %v1459
      %v1461 = vpop.f32.mrb[0].mxu0
      %1462 = vmatprep.mubr.f32.mxu0 0.0
      %1463 = vmatmul.mubr.f32.gmra.mrb[0].mxu0 %v777
      %v1464 = vpop.f32.mrb[0].mxu0
      %v1465 = vadd.f32 %v422, %v1464
      %v1466 = vpop.f32.mrb[0].mxu0
      %1467 = vmatprep.mubr.f32.mxu0 0.0
      %1468 = vmatmul.mubr.f32.gmra.mrb[0].mxu0 %v780
      %v1469 = vpop.f32.mrb[0].mxu0
      %v1470 = vadd.f32 %v422, %v1469
      %v1471 = vpop.f32.mrb[0].mxu0
      %1472 = vmatprep.mubr.f32.mxu0 0.0
      %1473 = vmatmul.mubr.f32.gmra.mrb[0].mxu0 %v783
      %v1474 = vpop.f32.mrb[0].mxu0
      %v1475 = vadd.f32 %v422, %v1474
      %v1476 = vpop.f32.mrb[0].mxu0
      %1477 = vmatprep.mubr.f32.mxu0 0.0
      %1478 = vmatmul.mubr.f32.gmra.mrb[0].mxu0 %v786
      %v1479 = vpop.f32.mrb[0].mxu0
      %v1480 = vadd.f32 %v422, %v1479
      %v1481 = vpop.f32.mrb[0].mxu0
      %1482 = vmatprep.mubr.f32.mxu0 0.0
      %1483 = vmatmul.mubr.f32.gmra.mrb[0].mxu0 %v789
      %v1484 = vpop.f32.mrb[0].mxu0
      %v1485 = vadd.f32 %v422, %v1484
      %v1486 = vpop.f32.mrb[0].mxu0
      %1487 = vmatprep.mubr.f32.mxu0 0.0
      %1488 = vmatmul.mubr.f32.gmra.mrb[0].mxu0 %v792
      %v1489 = vpop.f32.mrb[0].mxu0
      %v1490 = vadd.f32 %v422, %v1489
      %v1491 = vpop.f32.mrb[0].mxu0
      %1492 = vmatprep.mubr.f32.mxu0 0.0
      %1493 = vmatmul.mubr.f32.gmra.mrb[0].mxu0 %v795
      %v1494 = vpop.f32.mrb[0].mxu0
      %v1495 = vadd.f32 %v422, %v1494
      %v1496 = vpop.f32.mrb[0].mxu0
      %1497 = vmatprep.mubr.f32.mxu0 0.0
      %1498 = vmatmul.mubr.f32.gmra.mrb[0].mxu0 %v798
      %v1499 = vpop.f32.mrb[0].mxu0
      %v1500 = vadd.f32 %v422, %v1499
      %v1501 = vpop.f32.mrb[0].mxu0
      %1502 = vmatprep.mubr.f32.mxu0 0.0
      %1503 = vmatmul.mubr.f32.gmra.mrb[0].mxu0 %v801
      %v1504 = vpop.f32.mrb[0].mxu0
      %v1505 = vadd.f32 %v422, %v1504
      %v1506 = vpop.f32.mrb[0].mxu0
      %1507 = vmatprep.mubr.f32.mxu0 0.0
      %1508 = vmatmul.mubr.f32.gmra.mrb[0].mxu0 %v804
      %v1509 = vpop.f32.mrb[0].mxu0
      %v1510 = vadd.f32 %v422, %v1509
      %v1511 = vpop.f32.mrb[0].mxu0
      %1512 = vmatprep.mubr.f32.mxu0 0.0
      %1513 = vmatmul.mubr.f32.gmra.mrb[0].mxu0 %v807
      %v1514 = vpop.f32.mrb[0].mxu0
      %v1515 = vadd.f32 %v422, %v1514
      %v1516 = vpop.f32.mrb[0].mxu0
      %1517 = vdwg.mxu0
      %1646 = vrot.lane.b32.xlu0 %v880, 96
      %v1647 = vpop.permute.xlu0 %1646
      %1648 = vrot.lane.b32.xlu0 %v885, 96
      %v1649 = vpop.permute.xlu0 %1648
      %1650 = vrot.lane.b32.xlu0 %v890, 96
      %v1651 = vpop.permute.xlu0 %1650
      %1652 = vrot.lane.b32.xlu0 %v895, 96
      %v1653 = vpop.permute.xlu0 %1652
      %1654 = vrot.lane.b32.xlu0 %v900, 96
      %v1655 = vpop.permute.xlu0 %1654
      %1656 = vrot.lane.b32.xlu0 %v905, 96
      %v1657 = vpop.permute.xlu0 %1656
      %1658 = vrot.lane.b32.xlu0 %v910, 96
      %v1659 = vpop.permute.xlu0 %1658
      %1660 = vrot.lane.b32.xlu0 %v915, 96
      %v1661 = vpop.permute.xlu0 %1660
      %1662 = vrot.lane.b32.xlu0 %v920, 96
      %v1663 = vpop.permute.xlu0 %1662
      %1664 = vrot.lane.b32.xlu0 %v925, 96
      %v1665 = vpop.permute.xlu0 %1664
      %1666 = vrot.lane.b32.xlu0 %v930, 96
      %v1667 = vpop.permute.xlu0 %1666
      %1668 = vrot.lane.b32.xlu0 %v935, 96
      %v1669 = vpop.permute.xlu0 %1668
      %1670 = vrot.lane.b32.xlu0 %v940, 96
      %v1671 = vpop.permute.xlu0 %1670
      %1672 = vrot.lane.b32.xlu0 %v945, 96
      %v1673 = vpop.permute.xlu0 %1672
      %1674 = vrot.lane.b32.xlu0 %v950, 96
      %v1675 = vpop.permute.xlu0 %1674
      %1676 = vrot.lane.b32.xlu0 %v955, 96
      %v1677 = vpop.permute.xlu0 %1676
      %1678 = vrot.lane.b32.xlu0 %v960, 96
      %v1679 = vpop.permute.xlu0 %1678
      %1680 = vrot.lane.b32.xlu0 %v965, 96
      %v1681 = vpop.permute.xlu0 %1680
      %1682 = vrot.lane.b32.xlu0 %v970, 96
      %v1683 = vpop.permute.xlu0 %1682
      %1684 = vrot.lane.b32.xlu0 %v975, 96
      %v1685 = vpop.permute.xlu0 %1684
      %1686 = vrot.lane.b32.xlu0 %v980, 96
      %v1687 = vpop.permute.xlu0 %1686
      %1688 = vrot.lane.b32.xlu0 %v985, 96
      %v1689 = vpop.permute.xlu0 %1688
      %1690 = vrot.lane.b32.xlu0 %v990, 96
      %v1691 = vpop.permute.xlu0 %1690
      %1692 = vrot.lane.b32.xlu0 %v995, 96
      %v1693 = vpop.permute.xlu0 %1692
      %1694 = vrot.lane.b32.xlu0 %v1000, 96
      %v1695 = vpop.permute.xlu0 %1694
      %1696 = vrot.lane.b32.xlu0 %v1005, 96
      %v1697 = vpop.permute.xlu0 %1696
      %1698 = vrot.lane.b32.xlu0 %v1010, 96
      %v1699 = vpop.permute.xlu0 %1698
      %1700 = vrot.lane.b32.xlu0 %v1015, 96
      %v1701 = vpop.permute.xlu0 %1700
      %1702 = vrot.lane.b32.xlu0 %v1020, 96
      %v1703 = vpop.permute.xlu0 %1702
      %1704 = vrot.lane.b32.xlu0 %v1025, 96
      %v1705 = vpop.permute.xlu0 %1704
      %1706 = vrot.lane.b32.xlu0 %v1030, 96
      %v1707 = vpop.permute.xlu0 %1706
      %1708 = vrot.lane.b32.xlu0 %v1035, 96
      %v1709 = vpop.permute.xlu0 %1708
      %1710 = vrot.lane.b32.xlu0 %v1040, 96
      %v1711 = vpop.permute.xlu0 %1710
      %1712 = vrot.lane.b32.xlu0 %v1045, 96
      %v1713 = vpop.permute.xlu0 %1712
      %1714 = vrot.lane.b32.xlu0 %v1050, 96
      %v1715 = vpop.permute.xlu0 %1714
      %1716 = vrot.lane.b32.xlu0 %v1055, 96
      %v1717 = vpop.permute.xlu0 %1716
      %1718 = vrot.lane.b32.xlu0 %v1060, 96
      %v1719 = vpop.permute.xlu0 %1718
      %1720 = vrot.lane.b32.xlu0 %v1065, 96
      %v1721 = vpop.permute.xlu0 %1720
      %1722 = vrot.lane.b32.xlu0 %v1070, 96
      %v1723 = vpop.permute.xlu0 %1722
      %1724 = vrot.lane.b32.xlu0 %v1075, 96
      %v1725 = vpop.permute.xlu0 %1724
      %1726 = vrot.lane.b32.xlu0 %v1080, 96
      %v1727 = vpop.permute.xlu0 %1726
      %1728 = vrot.lane.b32.xlu0 %v1085, 96
      %v1729 = vpop.permute.xlu0 %1728
      %1730 = vrot.lane.b32.xlu0 %v1090, 96
      %v1731 = vpop.permute.xlu0 %1730
      %1732 = vrot.lane.b32.xlu0 %v1095, 96
      %v1733 = vpop.permute.xlu0 %1732
      %1734 = vrot.lane.b32.xlu0 %v1100, 96
      %v1735 = vpop.permute.xlu0 %1734
      %1736 = vrot.lane.b32.xlu0 %v1105, 96
      %v1737 = vpop.permute.xlu0 %1736
      %1738 = vrot.lane.b32.xlu0 %v1110, 96
      %v1739 = vpop.permute.xlu0 %1738
      %1740 = vrot.lane.b32.xlu0 %v1115, 96
      %v1741 = vpop.permute.xlu0 %1740
      %1742 = vrot.lane.b32.xlu0 %v1120, 96
      %v1743 = vpop.permute.xlu0 %1742
      %1744 = vrot.lane.b32.xlu0 %v1125, 96
      %v1745 = vpop.permute.xlu0 %1744
      %1746 = vrot.lane.b32.xlu0 %v1130, 96
      %v1747 = vpop.permute.xlu0 %1746
      %1748 = vrot.lane.b32.xlu0 %v1135, 96
      %v1749 = vpop.permute.xlu0 %1748
      %1750 = vrot.lane.b32.xlu0 %v1140, 96
      %v1751 = vpop.permute.xlu0 %1750
      %1752 = vrot.lane.b32.xlu0 %v1145, 96
      %v1753 = vpop.permute.xlu0 %1752
      %1754 = vrot.lane.b32.xlu0 %v1150, 96
      %v1755 = vpop.permute.xlu0 %1754
      %1756 = vrot.lane.b32.xlu0 %v1155, 96
      %v1757 = vpop.permute.xlu0 %1756
      %1758 = vrot.lane.b32.xlu0 %v1160, 96
      %v1759 = vpop.permute.xlu0 %1758
      %1760 = vrot.lane.b32.xlu0 %v1165, 96
      %v1761 = vpop.permute.xlu0 %1760
      %1762 = vrot.lane.b32.xlu0 %v1170, 96
      %v1763 = vpop.permute.xlu0 %1762
      %1764 = vrot.lane.b32.xlu0 %v1175, 96
      %v1765 = vpop.permute.xlu0 %1764
      %1766 = vrot.lane.b32.xlu0 %v1180, 96
      %v1767 = vpop.permute.xlu0 %1766
      %1768 = vrot.lane.b32.xlu0 %v1185, 96
      %v1769 = vpop.permute.xlu0 %1768
      %1770 = vrot.lane.b32.xlu0 %v1190, 96
      %v1771 = vpop.permute.xlu0 %1770
      %1772 = vrot.lane.b32.xlu0 %v1195, 96
      %v1773 = vpop.permute.xlu0 %1772
      %1774 = vrot.lane.b32.xlu0 %v1200, 96
      %v1775 = vpop.permute.xlu0 %1774
      %1776 = vrot.lane.b32.xlu0 %v1205, 96
      %v1777 = vpop.permute.xlu0 %1776
      %1778 = vrot.lane.b32.xlu0 %v1210, 96
      %v1779 = vpop.permute.xlu0 %1778
      %1780 = vrot.lane.b32.xlu0 %v1215, 96
      %v1781 = vpop.permute.xlu0 %1780
      %1782 = vrot.lane.b32.xlu0 %v1220, 96
      %v1783 = vpop.permute.xlu0 %1782
      %1784 = vrot.lane.b32.xlu0 %v1225, 96
      %v1785 = vpop.permute.xlu0 %1784
      %1786 = vrot.lane.b32.xlu0 %v1230, 96
      %v1787 = vpop.permute.xlu0 %1786
      %1788 = vrot.lane.b32.xlu0 %v1235, 96
      %v1789 = vpop.permute.xlu0 %1788
      %1790 = vrot.lane.b32.xlu0 %v1240, 96
      %v1791 = vpop.permute.xlu0 %1790
      %1792 = vrot.lane.b32.xlu0 %v1245, 96
      %v1793 = vpop.permute.xlu0 %1792
      %1794 = vrot.lane.b32.xlu0 %v1250, 96
      %v1795 = vpop.permute.xlu0 %1794
      %1796 = vrot.lane.b32.xlu0 %v1255, 96
      %v1797 = vpop.permute.xlu0 %1796
      %1798 = vrot.lane.b32.xlu0 %v1260, 96
      %v1799 = vpop.permute.xlu0 %1798
      %1800 = vrot.lane.b32.xlu0 %v1265, 96
      %v1801 = vpop.permute.xlu0 %1800
      %1802 = vrot.lane.b32.xlu0 %v1270, 96
      %v1803 = vpop.permute.xlu0 %1802
      %1804 = vrot.lane.b32.xlu0 %v1275, 96
      %v1805 = vpop.permute.xlu0 %1804
      %1806 = vrot.lane.b32.xlu0 %v1280, 96
      %v1807 = vpop.permute.xlu0 %1806
      %1808 = vrot.lane.b32.xlu0 %v1285, 96
      %v1809 = vpop.permute.xlu0 %1808
      %1810 = vrot.lane.b32.xlu0 %v1290, 96
      %v1811 = vpop.permute.xlu0 %1810
      %1812 = vrot.lane.b32.xlu0 %v1295, 96
      %v1813 = vpop.permute.xlu0 %1812
      %1814 = vrot.lane.b32.xlu0 %v1300, 96
      %v1815 = vpop.permute.xlu0 %1814
      %1816 = vrot.lane.b32.xlu0 %v1305, 96
      %v1817 = vpop.permute.xlu0 %1816
      %1818 = vrot.lane.b32.xlu0 %v1310, 96
      %v1819 = vpop.permute.xlu0 %1818
      %1820 = vrot.lane.b32.xlu0 %v1315, 96
      %v1821 = vpop.permute.xlu0 %1820
      %1822 = vrot.lane.b32.xlu0 %v1320, 96
      %v1823 = vpop.permute.xlu0 %1822
      %1824 = vrot.lane.b32.xlu0 %v1325, 96
      %v1825 = vpop.permute.xlu0 %1824
      %1826 = vrot.lane.b32.xlu0 %v1330, 96
      %v1827 = vpop.permute.xlu0 %1826
      %1828 = vrot.lane.b32.xlu0 %v1335, 96
      %v1829 = vpop.permute.xlu0 %1828
      %1830 = vrot.lane.b32.xlu0 %v1340, 96
      %v1831 = vpop.permute.xlu0 %1830
      %1832 = vrot.lane.b32.xlu0 %v1345, 96
      %v1833 = vpop.permute.xlu0 %1832
      %1834 = vrot.lane.b32.xlu0 %v1350, 96
      %v1835 = vpop.permute.xlu0 %1834
      %1836 = vrot.lane.b32.xlu0 %v1355, 96
      %v1837 = vpop.permute.xlu0 %1836
      %1838 = vrot.lane.b32.xlu0 %v1360, 96
      %v1839 = vpop.permute.xlu0 %1838
      %1840 = vrot.lane.b32.xlu0 %v1365, 96
      %v1841 = vpop.permute.xlu0 %1840
      %1842 = vrot.lane.b32.xlu0 %v1370, 96
      %v1843 = vpop.permute.xlu0 %1842
      %1844 = vrot.lane.b32.xlu0 %v1375, 96
      %v1845 = vpop.permute.xlu0 %1844
      %1846 = vrot.lane.b32.xlu0 %v1380, 96
      %v1847 = vpop.permute.xlu0 %1846
      %1848 = vrot.lane.b32.xlu0 %v1385, 96
      %v1849 = vpop.permute.xlu0 %1848
      %1850 = vrot.lane.b32.xlu0 %v1390, 96
      %v1851 = vpop.permute.xlu0 %1850
      %1852 = vrot.lane.b32.xlu0 %v1395, 96
      %v1853 = vpop.permute.xlu0 %1852
      %1854 = vrot.lane.b32.xlu0 %v1400, 96
      %v1855 = vpop.permute.xlu0 %1854
      %1856 = vrot.lane.b32.xlu0 %v1405, 96
      %v1857 = vpop.permute.xlu0 %1856
      %1858 = vrot.lane.b32.xlu0 %v1410, 96
      %v1859 = vpop.permute.xlu0 %1858
      %1860 = vrot.lane.b32.xlu0 %v1415, 96
      %v1861 = vpop.permute.xlu0 %1860
      %1862 = vrot.lane.b32.xlu0 %v1420, 96
      %v1863 = vpop.permute.xlu0 %1862
      %1864 = vrot.lane.b32.xlu0 %v1425, 96
      %v1865 = vpop.permute.xlu0 %1864
      %1866 = vrot.lane.b32.xlu0 %v1430, 96
      %v1867 = vpop.permute.xlu0 %1866
      %1868 = vrot.lane.b32.xlu0 %v1435, 96
      %v1869 = vpop.permute.xlu0 %1868
      %1870 = vrot.lane.b32.xlu0 %v1440, 96
      %v1871 = vpop.permute.xlu0 %1870
      %1872 = vrot.lane.b32.xlu0 %v1445, 96
      %v1873 = vpop.permute.xlu0 %1872
      %1874 = vrot.lane.b32.xlu0 %v1450, 96
      %v1875 = vpop.permute.xlu0 %1874
      %1876 = vrot.lane.b32.xlu0 %v1455, 96
      %v1877 = vpop.permute.xlu0 %1876
      %1878 = vrot.lane.b32.xlu0 %v1460, 96
      %v1879 = vpop.permute.xlu0 %1878
      %1880 = vrot.lane.b32.xlu0 %v1465, 96
      %v1881 = vpop.permute.xlu0 %1880
      %1882 = vrot.lane.b32.xlu0 %v1470, 96
      %v1883 = vpop.permute.xlu0 %1882
      %1884 = vrot.lane.b32.xlu0 %v1475, 96
      %v1885 = vpop.permute.xlu0 %1884
      %1886 = vrot.lane.b32.xlu0 %v1480, 96
      %v1887 = vpop.permute.xlu0 %1886
      %1888 = vrot.lane.b32.xlu0 %v1485, 96
      %v1889 = vpop.permute.xlu0 %1888
      %1890 = vrot.lane.b32.xlu0 %v1490, 96
      %v1891 = vpop.permute.xlu0 %1890
      %1892 = vrot.lane.b32.xlu0 %v1495, 96
      %v1893 = vpop.permute.xlu0 %1892
      %1894 = vrot.lane.b32.xlu0 %v1500, 96
      %v1895 = vpop.permute.xlu0 %1894
      %1896 = vrot.lane.b32.xlu0 %v1505, 96
      %v1897 = vpop.permute.xlu0 %1896
      %1898 = vrot.lane.b32.xlu0 %v1510, 96
      %v1899 = vpop.permute.xlu0 %1898
      %1900 = vrot.lane.b32.xlu0 %v1515, 96
      %v1901 = vpop.permute.xlu0 %1900
      %v2030 = vmax.f32 %v880, %v1647
      %v2031 = vmax.f32 %v885, %v1649
      %v2032 = vmax.f32 %v890, %v1651
      %v2033 = vmax.f32 %v895, %v1653
      %v2034 = vmax.f32 %v900, %v1655
      %v2035 = vmax.f32 %v905, %v1657
      %v2036 = vmax.f32 %v910, %v1659
      %v2037 = vmax.f32 %v915, %v1661
      %v2038 = vmax.f32 %v920, %v1663
      %v2039 = vmax.f32 %v925, %v1665
      %v2040 = vmax.f32 %v930, %v1667
      %v2041 = vmax.f32 %v935, %v1669
      %v2042 = vmax.f32 %v940, %v1671
      %v2043 = vmax.f32 %v945, %v1673
      %v2044 = vmax.f32 %v950, %v1675
      %v2045 = vmax.f32 %v955, %v1677
      %v2046 = vmax.f32 %v960, %v1679
      %v2047 = vmax.f32 %v965, %v1681
      %v2048 = vmax.f32 %v970, %v1683
      %v2049 = vmax.f32 %v975, %v1685
      %v2050 = vmax.f32 %v980, %v1687
      %v2051 = vmax.f32 %v985, %v1689
      %v2052 = vmax.f32 %v990, %v1691
      %v2053 = vmax.f32 %v995, %v1693
      %v2054 = vmax.f32 %v1000, %v1695
      %v2055 = vmax.f32 %v1005, %v1697
      %v2056 = vmax.f32 %v1010, %v1699
      %v2057 = vmax.f32 %v1015, %v1701
      %v2058 = vmax.f32 %v1020, %v1703
      %v2059 = vmax.f32 %v1025, %v1705
      %v2060 = vmax.f32 %v1030, %v1707
      %v2061 = vmax.f32 %v1035, %v1709
      %v2062 = vmax.f32 %v1040, %v1711
      %v2063 = vmax.f32 %v1045, %v1713
      %v2064 = vmax.f32 %v1050, %v1715
      %v2065 = vmax.f32 %v1055, %v1717
      %v2066 = vmax.f32 %v1060, %v1719
      %v2067 = vmax.f32 %v1065, %v1721
      %v2068 = vmax.f32 %v1070, %v1723
      %v2069 = vmax.f32 %v1075, %v1725
      %v2070 = vmax.f32 %v1080, %v1727
      %v2071 = vmax.f32 %v1085, %v1729
      %v2072 = vmax.f32 %v1090, %v1731
      %v2073 = vmax.f32 %v1095, %v1733
      %v2074 = vmax.f32 %v1100, %v1735
      %v2075 = vmax.f32 %v1105, %v1737
      %v2076 = vmax.f32 %v1110, %v1739
      %v2077 = vmax.f32 %v1115, %v1741
      %v2078 = vmax.f32 %v1120, %v1743
      %v2079 = vmax.f32 %v1125, %v1745
      %v2080 = vmax.f32 %v1130, %v1747
      %v2081 = vmax.f32 %v1135, %v1749
      %v2082 = vmax.f32 %v1140, %v1751
      %v2083 = vmax.f32 %v1145, %v1753
      %v2084 = vmax.f32 %v1150, %v1755
      %v2085 = vmax.f32 %v1155, %v1757
      %v2086 = vmax.f32 %v1160, %v1759
      %v2087 = vmax.f32 %v1165, %v1761
      %v2088 = vmax.f32 %v1170, %v1763
      %v2089 = vmax.f32 %v1175, %v1765
      %v2090 = vmax.f32 %v1180, %v1767
      %v2091 = vmax.f32 %v1185, %v1769
      %v2092 = vmax.f32 %v1190, %v1771
      %v2093 = vmax.f32 %v1195, %v1773
      %v2094 = vmax.f32 %v1200, %v1775
      %v2095 = vmax.f32 %v1205, %v1777
      %v2096 = vmax.f32 %v1210, %v1779
      %v2097 = vmax.f32 %v1215, %v1781
      %v2098 = vmax.f32 %v1220, %v1783
      %v2099 = vmax.f32 %v1225, %v1785
      %v2100 = vmax.f32 %v1230, %v1787
      %v2101 = vmax.f32 %v1235, %v1789
      %v2102 = vmax.f32 %v1240, %v1791
      %v2103 = vmax.f32 %v1245, %v1793
      %v2104 = vmax.f32 %v1250, %v1795
      %v2105 = vmax.f32 %v1255, %v1797
      %v2106 = vmax.f32 %v1260, %v1799
      %v2107 = vmax.f32 %v1265, %v1801
      %v2108 = vmax.f32 %v1270, %v1803
      %v2109 = vmax.f32 %v1275, %v1805
      %v2110 = vmax.f32 %v1280, %v1807
      %v2111 = vmax.f32 %v1285, %v1809
      %v2112 = vmax.f32 %v1290, %v1811
      %v2113 = vmax.f32 %v1295, %v1813
      %v2114 = vmax.f32 %v1300, %v1815
      %v2115 = vmax.f32 %v1305, %v1817
      %v2116 = vmax.f32 %v1310, %v1819
      %v2117 = vmax.f32 %v1315, %v1821
      %v2118 = vmax.f32 %v1320, %v1823
      %v2119 = vmax.f32 %v1325, %v1825
      %v2120 = vmax.f32 %v1330, %v1827
      %v2121 = vmax.f32 %v1335, %v1829
      %v2122 = vmax.f32 %v1340, %v1831
      %v2123 = vmax.f32 %v1345, %v1833
      %v2124 = vmax.f32 %v1350, %v1835
      %v2125 = vmax.f32 %v1355, %v1837
      %v2126 = vmax.f32 %v1360, %v1839
      %v2127 = vmax.f32 %v1365, %v1841
      %v2128 = vmax.f32 %v1370, %v1843
      %v2129 = vmax.f32 %v1375, %v1845
      %v2130 = vmax.f32 %v1380, %v1847
      %v2131 = vmax.f32 %v1385, %v1849
      %v2132 = vmax.f32 %v1390, %v1851
      %v2133 = vmax.f32 %v1395, %v1853
      %v2134 = vmax.f32 %v1400, %v1855
      %v2135 = vmax.f32 %v1405, %v1857
      %v2136 = vmax.f32 %v1410, %v1859
      %v2137 = vmax.f32 %v1415, %v1861
      %v2138 = vmax.f32 %v1420, %v1863
      %v2139 = vmax.f32 %v1425, %v1865
      %v2140 = vmax.f32 %v1430, %v1867
      %v2141 = vmax.f32 %v1435, %v1869
      %v2142 = vmax.f32 %v1440, %v1871
      %v2143 = vmax.f32 %v1445, %v1873
      %v2144 = vmax.f32 %v1450, %v1875
      %v2145 = vmax.f32 %v1455, %v1877
      %v2146 = vmax.f32 %v1460, %v1879
      %v2147 = vmax.f32 %v1465, %v1881
      %v2148 = vmax.f32 %v1470, %v1883
      %v2149 = vmax.f32 %v1475, %v1885
      %v2150 = vmax.f32 %v1480, %v1887
      %v2151 = vmax.f32 %v1485, %v1889
      %v2152 = vmax.f32 %v1490, %v1891
      %v2153 = vmax.f32 %v1495, %v1893
      %v2154 = vmax.f32 %v1500, %v1895
      %v2155 = vmax.f32 %v1505, %v1897
      %v2156 = vmax.f32 %v1510, %v1899
      %v2157 = vmax.f32 %v1515, %v1901
      %2286 = vrot.lane.b32.xlu0 %v2030, 112
      %v2287 = vpop.permute.xlu0 %2286
      %2288 = vrot.lane.b32.xlu0 %v2031, 112
      %v2289 = vpop.permute.xlu0 %2288
      %2290 = vrot.lane.b32.xlu0 %v2032, 112
      %v2291 = vpop.permute.xlu0 %2290
      %2292 = vrot.lane.b32.xlu0 %v2033, 112
      %v2293 = vpop.permute.xlu0 %2292
      %2294 = vrot.lane.b32.xlu0 %v2034, 112
      %v2295 = vpop.permute.xlu0 %2294
      %2296 = vrot.lane.b32.xlu0 %v2035, 112
      %v2297 = vpop.permute.xlu0 %2296
      %2298 = vrot.lane.b32.xlu0 %v2036, 112
      %v2299 = vpop.permute.xlu0 %2298
      %2300 = vrot.lane.b32.xlu0 %v2037, 112
      %v2301 = vpop.permute.xlu0 %2300
      %2302 = vrot.lane.b32.xlu0 %v2038, 112
      %v2303 = vpop.permute.xlu0 %2302
      %2304 = vrot.lane.b32.xlu0 %v2039, 112
      %v2305 = vpop.permute.xlu0 %2304
      %2306 = vrot.lane.b32.xlu0 %v2040, 112
      %v2307 = vpop.permute.xlu0 %2306
      %2308 = vrot.lane.b32.xlu0 %v2041, 112
      %v2309 = vpop.permute.xlu0 %2308
      %2310 = vrot.lane.b32.xlu0 %v2042, 112
      %v2311 = vpop.permute.xlu0 %2310
      %2312 = vrot.lane.b32.xlu0 %v2043, 112
      %v2313 = vpop.permute.xlu0 %2312
      %2314 = vrot.lane.b32.xlu0 %v2044, 112
      %v2315 = vpop.permute.xlu0 %2314
      %2316 = vrot.lane.b32.xlu0 %v2045, 112
      %v2317 = vpop.permute.xlu0 %2316
      %2318 = vrot.lane.b32.xlu0 %v2046, 112
      %v2319 = vpop.permute.xlu0 %2318
      %2320 = vrot.lane.b32.xlu0 %v2047, 112
      %v2321 = vpop.permute.xlu0 %2320
      %2322 = vrot.lane.b32.xlu0 %v2048, 112
      %v2323 = vpop.permute.xlu0 %2322
      %2324 = vrot.lane.b32.xlu0 %v2049, 112
      %v2325 = vpop.permute.xlu0 %2324
      %2326 = vrot.lane.b32.xlu0 %v2050, 112
      %v2327 = vpop.permute.xlu0 %2326
      %2328 = vrot.lane.b32.xlu0 %v2051, 112
      %v2329 = vpop.permute.xlu0 %2328
      %2330 = vrot.lane.b32.xlu0 %v2052, 112
      %v2331 = vpop.permute.xlu0 %2330
      %2332 = vrot.lane.b32.xlu0 %v2053, 112
      %v2333 = vpop.permute.xlu0 %2332
      %2334 = vrot.lane.b32.xlu0 %v2054, 112
      %v2335 = vpop.permute.xlu0 %2334
      %2336 = vrot.lane.b32.xlu0 %v2055, 112
      %v2337 = vpop.permute.xlu0 %2336
      %2338 = vrot.lane.b32.xlu0 %v2056, 112
      %v2339 = vpop.permute.xlu0 %2338
      %2340 = vrot.lane.b32.xlu0 %v2057, 112
      %v2341 = vpop.permute.xlu0 %2340
      %2342 = vrot.lane.b32.xlu0 %v2058, 112
      %v2343 = vpop.permute.xlu0 %2342
      %2344 = vrot.lane.b32.xlu0 %v2059, 112
      %v2345 = vpop.permute.xlu0 %2344
      %2346 = vrot.lane.b32.xlu0 %v2060, 112
      %v2347 = vpop.permute.xlu0 %2346
      %2348 = vrot.lane.b32.xlu0 %v2061, 112
      %v2349 = vpop.permute.xlu0 %2348
      %2350 = vrot.lane.b32.xlu0 %v2062, 112
      %v2351 = vpop.permute.xlu0 %2350
      %2352 = vrot.lane.b32.xlu0 %v2063, 112
      %v2353 = vpop.permute.xlu0 %2352
      %2354 = vrot.lane.b32.xlu0 %v2064, 112
      %v2355 = vpop.permute.xlu0 %2354
      %2356 = vrot.lane.b32.xlu0 %v2065, 112
      %v2357 = vpop.permute.xlu0 %2356
      %2358 = vrot.lane.b32.xlu0 %v2066, 112
      %v2359 = vpop.permute.xlu0 %2358
      %2360 = vrot.lane.b32.xlu0 %v2067, 112
      %v2361 = vpop.permute.xlu0 %2360
      %2362 = vrot.lane.b32.xlu0 %v2068, 112
      %v2363 = vpop.permute.xlu0 %2362
      %2364 = vrot.lane.b32.xlu0 %v2069, 112
      %v2365 = vpop.permute.xlu0 %2364
      %2366 = vrot.lane.b32.xlu0 %v2070, 112
      %v2367 = vpop.permute.xlu0 %2366
      %2368 = vrot.lane.b32.xlu0 %v2071, 112
      %v2369 = vpop.permute.xlu0 %2368
      %2370 = vrot.lane.b32.xlu0 %v2072, 112
      %v2371 = vpop.permute.xlu0 %2370
      %2372 = vrot.lane.b32.xlu0 %v2073, 112
      %v2373 = vpop.permute.xlu0 %2372
      %2374 = vrot.lane.b32.xlu0 %v2074, 112
      %v2375 = vpop.permute.xlu0 %2374
      %2376 = vrot.lane.b32.xlu0 %v2075, 112
      %v2377 = vpop.permute.xlu0 %2376
      %2378 = vrot.lane.b32.xlu0 %v2076, 112
      %v2379 = vpop.permute.xlu0 %2378
      %2380 = vrot.lane.b32.xlu0 %v2077, 112
      %v2381 = vpop.permute.xlu0 %2380
      %2382 = vrot.lane.b32.xlu0 %v2078, 112
      %v2383 = vpop.permute.xlu0 %2382
      %2384 = vrot.lane.b32.xlu0 %v2079, 112
      %v2385 = vpop.permute.xlu0 %2384
      %2386 = vrot.lane.b32.xlu0 %v2080, 112
      %v2387 = vpop.permute.xlu0 %2386
      %2388 = vrot.lane.b32.xlu0 %v2081, 112
      %v2389 = vpop.permute.xlu0 %2388
      %2390 = vrot.lane.b32.xlu0 %v2082, 112
      %v2391 = vpop.permute.xlu0 %2390
      %2392 = vrot.lane.b32.xlu0 %v2083, 112
      %v2393 = vpop.permute.xlu0 %2392
      %2394 = vrot.lane.b32.xlu0 %v2084, 112
      %v2395 = vpop.permute.xlu0 %2394
      %2396 = vrot.lane.b32.xlu0 %v2085, 112
      %v2397 = vpop.permute.xlu0 %2396
      %2398 = vrot.lane.b32.xlu0 %v2086, 112
      %v2399 = vpop.permute.xlu0 %2398
      %2400 = vrot.lane.b32.xlu0 %v2087, 112
      %v2401 = vpop.permute.xlu0 %2400
      %2402 = vrot.lane.b32.xlu0 %v2088, 112
      %v2403 = vpop.permute.xlu0 %2402
      %2404 = vrot.lane.b32.xlu0 %v2089, 112
      %v2405 = vpop.permute.xlu0 %2404
      %2406 = vrot.lane.b32.xlu0 %v2090, 112
      %v2407 = vpop.permute.xlu0 %2406
      %2408 = vrot.lane.b32.xlu0 %v2091, 112
      %v2409 = vpop.permute.xlu0 %2408
      %2410 = vrot.lane.b32.xlu0 %v2092, 112
      %v2411 = vpop.permute.xlu0 %2410
      %2412 = vrot.lane.b32.xlu0 %v2093, 112
      %v2413 = vpop.permute.xlu0 %2412
      %2414 = vrot.lane.b32.xlu0 %v2094, 112
      %v2415 = vpop.permute.xlu0 %2414
      %2416 = vrot.lane.b32.xlu0 %v2095, 112
      %v2417 = vpop.permute.xlu0 %2416
      %2418 = vrot.lane.b32.xlu0 %v2096, 112
      %v2419 = vpop.permute.xlu0 %2418
      %2420 = vrot.lane.b32.xlu0 %v2097, 112
      %v2421 = vpop.permute.xlu0 %2420
      %2422 = vrot.lane.b32.xlu0 %v2098, 112
      %v2423 = vpop.permute.xlu0 %2422
      %2424 = vrot.lane.b32.xlu0 %v2099, 112
      %v2425 = vpop.permute.xlu0 %2424
      %2426 = vrot.lane.b32.xlu0 %v2100, 112
      %v2427 = vpop.permute.xlu0 %2426
      %2428 = vrot.lane.b32.xlu0 %v2101, 112
      %v2429 = vpop.permute.xlu0 %2428
      %2430 = vrot.lane.b32.xlu0 %v2102, 112
      %v2431 = vpop.permute.xlu0 %2430
      %2432 = vrot.lane.b32.xlu0 %v2103, 112
      %v2433 = vpop.permute.xlu0 %2432
      %2434 = vrot.lane.b32.xlu0 %v2104, 112
      %v2435 = vpop.permute.xlu0 %2434
      %2436 = vrot.lane.b32.xlu0 %v2105, 112
      %v2437 = vpop.permute.xlu0 %2436
      %2438 = vrot.lane.b32.xlu0 %v2106, 112
      %v2439 = vpop.permute.xlu0 %2438
      %2440 = vrot.lane.b32.xlu0 %v2107, 112
      %v2441 = vpop.permute.xlu0 %2440
      %2442 = vrot.lane.b32.xlu0 %v2108, 112
      %v2443 = vpop.permute.xlu0 %2442
      %2444 = vrot.lane.b32.xlu0 %v2109, 112
      %v2445 = vpop.permute.xlu0 %2444
      %2446 = vrot.lane.b32.xlu0 %v2110, 112
      %v2447 = vpop.permute.xlu0 %2446
      %2448 = vrot.lane.b32.xlu0 %v2111, 112
      %v2449 = vpop.permute.xlu0 %2448
      %2450 = vrot.lane.b32.xlu0 %v2112, 112
      %v2451 = vpop.permute.xlu0 %2450
      %2452 = vrot.lane.b32.xlu0 %v2113, 112
      %v2453 = vpop.permute.xlu0 %2452
      %2454 = vrot.lane.b32.xlu0 %v2114, 112
      %v2455 = vpop.permute.xlu0 %2454
      %2456 = vrot.lane.b32.xlu0 %v2115, 112
      %v2457 = vpop.permute.xlu0 %2456
      %2458 = vrot.lane.b32.xlu0 %v2116, 112
      %v2459 = vpop.permute.xlu0 %2458
      %2460 = vrot.lane.b32.xlu0 %v2117, 112
      %v2461 = vpop.permute.xlu0 %2460
      %2462 = vrot.lane.b32.xlu0 %v2118, 112
      %v2463 = vpop.permute.xlu0 %2462
      %2464 = vrot.lane.b32.xlu0 %v2119, 112
      %v2465 = vpop.permute.xlu0 %2464
      %2466 = vrot.lane.b32.xlu0 %v2120, 112
      %v2467 = vpop.permute.xlu0 %2466
      %2468 = vrot.lane.b32.xlu0 %v2121, 112
      %v2469 = vpop.permute.xlu0 %2468
      %2470 = vrot.lane.b32.xlu0 %v2122, 112
      %v2471 = vpop.permute.xlu0 %2470
      %2472 = vrot.lane.b32.xlu0 %v2123, 112
      %v2473 = vpop.permute.xlu0 %2472
      %2474 = vrot.lane.b32.xlu0 %v2124, 112
      %v2475 = vpop.permute.xlu0 %2474
      %2476 = vrot.lane.b32.xlu0 %v2125, 112
      %v2477 = vpop.permute.xlu0 %2476
      %2478 = vrot.lane.b32.xlu0 %v2126, 112
      %v2479 = vpop.permute.xlu0 %2478
      %2480 = vrot.lane.b32.xlu0 %v2127, 112
      %v2481 = vpop.permute.xlu0 %2480
      %2482 = vrot.lane.b32.xlu0 %v2128, 112
      %v2483 = vpop.permute.xlu0 %2482
      %2484 = vrot.lane.b32.xlu0 %v2129, 112
      %v2485 = vpop.permute.xlu0 %2484
      %2486 = vrot.lane.b32.xlu0 %v2130, 112
      %v2487 = vpop.permute.xlu0 %2486
      %2488 = vrot.lane.b32.xlu0 %v2131, 112
      %v2489 = vpop.permute.xlu0 %2488
      %2490 = vrot.lane.b32.xlu0 %v2132, 112
      %v2491 = vpop.permute.xlu0 %2490
      %2492 = vrot.lane.b32.xlu0 %v2133, 112
      %v2493 = vpop.permute.xlu0 %2492
      %2494 = vrot.lane.b32.xlu0 %v2134, 112
      %v2495 = vpop.permute.xlu0 %2494
      %2496 = vrot.lane.b32.xlu0 %v2135, 112
      %v2497 = vpop.permute.xlu0 %2496
      %2498 = vrot.lane.b32.xlu0 %v2136, 112
      %v2499 = vpop.permute.xlu0 %2498
      %2500 = vrot.lane.b32.xlu0 %v2137, 112
      %v2501 = vpop.permute.xlu0 %2500
      %2502 = vrot.lane.b32.xlu0 %v2138, 112
      %v2503 = vpop.permute.xlu0 %2502
      %2504 = vrot.lane.b32.xlu0 %v2139, 112
      %v2505 = vpop.permute.xlu0 %2504
      %2506 = vrot.lane.b32.xlu0 %v2140, 112
      %v2507 = vpop.permute.xlu0 %2506
      %2508 = vrot.lane.b32.xlu0 %v2141, 112
      %v2509 = vpop.permute.xlu0 %2508
      %2510 = vrot.lane.b32.xlu0 %v2142, 112
      %v2511 = vpop.permute.xlu0 %2510
      %2512 = vrot.lane.b32.xlu0 %v2143, 112
      %v2513 = vpop.permute.xlu0 %2512
      %2514 = vrot.lane.b32.xlu0 %v2144, 112
      %v2515 = vpop.permute.xlu0 %2514
      %2516 = vrot.lane.b32.xlu0 %v2145, 112
      %v2517 = vpop.permute.xlu0 %2516
      %2518 = vrot.lane.b32.xlu0 %v2146, 112
      %v2519 = vpop.permute.xlu0 %2518
      %2520 = vrot.lane.b32.xlu0 %v2147, 112
      %v2521 = vpop.permute.xlu0 %2520
      %2522 = vrot.lane.b32.xlu0 %v2148, 112
      %v2523 = vpop.permute.xlu0 %2522
      %2524 = vrot.lane.b32.xlu0 %v2149, 112
      %v2525 = vpop.permute.xlu0 %2524
      %2526 = vrot.lane.b32.xlu0 %v2150, 112
      %v2527 = vpop.permute.xlu0 %2526
      %2528 = vrot.lane.b32.xlu0 %v2151, 112
      %v2529 = vpop.permute.xlu0 %2528
      %2530 = vrot.lane.b32.xlu0 %v2152, 112
      %v2531 = vpop.permute.xlu0 %2530
      %2532 = vrot.lane.b32.xlu0 %v2153, 112
      %v2533 = vpop.permute.xlu0 %2532
      %2534 = vrot.lane.b32.xlu0 %v2154, 112
      %v2535 = vpop.permute.xlu0 %2534
      %2536 = vrot.lane.b32.xlu0 %v2155, 112
      %v2537 = vpop.permute.xlu0 %2536
      %2538 = vrot.lane.b32.xlu0 %v2156, 112
      %v2539 = vpop.permute.xlu0 %2538
      %2540 = vrot.lane.b32.xlu0 %v2157, 112
      %v2541 = vpop.permute.xlu0 %2540
      %v2670 = vmax.f32 %v2030, %v2287
      %v2671 = vmax.f32 %v2031, %v2289
      %v2672 = vmax.f32 %v2032, %v2291
      %v2673 = vmax.f32 %v2033, %v2293
      %v2674 = vmax.f32 %v2034, %v2295
      %v2675 = vmax.f32 %v2035, %v2297
      %v2676 = vmax.f32 %v2036, %v2299
      %v2677 = vmax.f32 %v2037, %v2301
      %v2678 = vmax.f32 %v2038, %v2303
      %v2679 = vmax.f32 %v2039, %v2305
      %v2680 = vmax.f32 %v2040, %v2307
      %v2681 = vmax.f32 %v2041, %v2309
      %v2682 = vmax.f32 %v2042, %v2311
      %v2683 = vmax.f32 %v2043, %v2313
      %v2684 = vmax.f32 %v2044, %v2315
      %v2685 = vmax.f32 %v2045, %v2317
      %v2686 = vmax.f32 %v2046, %v2319
      %v2687 = vmax.f32 %v2047, %v2321
      %v2688 = vmax.f32 %v2048, %v2323
      %v2689 = vmax.f32 %v2049, %v2325
      %v2690 = vmax.f32 %v2050, %v2327
      %v2691 = vmax.f32 %v2051, %v2329
      %v2692 = vmax.f32 %v2052, %v2331
      %v2693 = vmax.f32 %v2053, %v2333
      %v2694 = vmax.f32 %v2054, %v2335
      %v2695 = vmax.f32 %v2055, %v2337
      %v2696 = vmax.f32 %v2056, %v2339
      %v2697 = vmax.f32 %v2057, %v2341
      %v2698 = vmax.f32 %v2058, %v2343
      %v2699 = vmax.f32 %v2059, %v2345
      %v2700 = vmax.f32 %v2060, %v2347
      %v2701 = vmax.f32 %v2061, %v2349
      %v2702 = vmax.f32 %v2062, %v2351
      %v2703 = vmax.f32 %v2063, %v2353
      %v2704 = vmax.f32 %v2064, %v2355
      %v2705 = vmax.f32 %v2065, %v2357
      %v2706 = vmax.f32 %v2066, %v2359
      %v2707 = vmax.f32 %v2067, %v2361
      %v2708 = vmax.f32 %v2068, %v2363
      %v2709 = vmax.f32 %v2069, %v2365
      %v2710 = vmax.f32 %v2070, %v2367
      %v2711 = vmax.f32 %v2071, %v2369
      %v2712 = vmax.f32 %v2072, %v2371
      %v2713 = vmax.f32 %v2073, %v2373
      %v2714 = vmax.f32 %v2074, %v2375
      %v2715 = vmax.f32 %v2075, %v2377
      %v2716 = vmax.f32 %v2076, %v2379
      %v2717 = vmax.f32 %v2077, %v2381
      %v2718 = vmax.f32 %v2078, %v2383
      %v2719 = vmax.f32 %v2079, %v2385
      %v2720 = vmax.f32 %v2080, %v2387
      %v2721 = vmax.f32 %v2081, %v2389
      %v2722 = vmax.f32 %v2082, %v2391
      %v2723 = vmax.f32 %v2083, %v2393
      %v2724 = vmax.f32 %v2084, %v2395
      %v2725 = vmax.f32 %v2085, %v2397
      %v2726 = vmax.f32 %v2086, %v2399
      %v2727 = vmax.f32 %v2087, %v2401
      %v2728 = vmax.f32 %v2088, %v2403
      %v2729 = vmax.f32 %v2089, %v2405
      %v2730 = vmax.f32 %v2090, %v2407
      %v2731 = vmax.f32 %v2091, %v2409
      %v2732 = vmax.f32 %v2092, %v2411
      %v2733 = vmax.f32 %v2093, %v2413
      %v2734 = vmax.f32 %v2094, %v2415
      %v2735 = vmax.f32 %v2095, %v2417
      %v2736 = vmax.f32 %v2096, %v2419
      %v2737 = vmax.f32 %v2097, %v2421
      %v2738 = vmax.f32 %v2098, %v2423
      %v2739 = vmax.f32 %v2099, %v2425
      %v2740 = vmax.f32 %v2100, %v2427
      %v2741 = vmax.f32 %v2101, %v2429
      %v2742 = vmax.f32 %v2102, %v2431
      %v2743 = vmax.f32 %v2103, %v2433
      %v2744 = vmax.f32 %v2104, %v2435
      %v2745 = vmax.f32 %v2105, %v2437
      %v2746 = vmax.f32 %v2106, %v2439
      %v2747 = vmax.f32 %v2107, %v2441
      %v2748 = vmax.f32 %v2108, %v2443
      %v2749 = vmax.f32 %v2109, %v2445
      %v2750 = vmax.f32 %v2110, %v2447
      %v2751 = vmax.f32 %v2111, %v2449
      %v2752 = vmax.f32 %v2112, %v2451
      %v2753 = vmax.f32 %v2113, %v2453
      %v2754 = vmax.f32 %v2114, %v2455
      %v2755 = vmax.f32 %v2115, %v2457
      %v2756 = vmax.f32 %v2116, %v2459
      %v2757 = vmax.f32 %v2117, %v2461
      %v2758 = vmax.f32 %v2118, %v2463
      %v2759 = vmax.f32 %v2119, %v2465
      %v2760 = vmax.f32 %v2120, %v2467
      %v2761 = vmax.f32 %v2121, %v2469
      %v2762 = vmax.f32 %v2122, %v2471
      %v2763 = vmax.f32 %v2123, %v2473
      %v2764 = vmax.f32 %v2124, %v2475
      %v2765 = vmax.f32 %v2125, %v2477
      %v2766 = vmax.f32 %v2126, %v2479
      %v2767 = vmax.f32 %v2127, %v2481
      %v2768 = vmax.f32 %v2128, %v2483
      %v2769 = vmax.f32 %v2129, %v2485
      %v2770 = vmax.f32 %v2130, %v2487
      %v2771 = vmax.f32 %v2131, %v2489
      %v2772 = vmax.f32 %v2132, %v2491
      %v2773 = vmax.f32 %v2133, %v2493
      %v2774 = vmax.f32 %v2134, %v2495
      %v2775 = vmax.f32 %v2135, %v2497
      %v2776 = vmax.f32 %v2136, %v2499
      %v2777 = vmax.f32 %v2137, %v2501
      %v2778 = vmax.f32 %v2138, %v2503
      %v2779 = vmax.f32 %v2139, %v2505
      %v2780 = vmax.f32 %v2140, %v2507
      %v2781 = vmax.f32 %v2141, %v2509
      %v2782 = vmax.f32 %v2142, %v2511
      %v2783 = vmax.f32 %v2143, %v2513
      %v2784 = vmax.f32 %v2144, %v2515
      %v2785 = vmax.f32 %v2145, %v2517
      %v2786 = vmax.f32 %v2146, %v2519
      %v2787 = vmax.f32 %v2147, %v2521
      %v2788 = vmax.f32 %v2148, %v2523
      %v2789 = vmax.f32 %v2149, %v2525
      %v2790 = vmax.f32 %v2150, %v2527
      %v2791 = vmax.f32 %v2151, %v2529
      %v2792 = vmax.f32 %v2152, %v2531
      %v2793 = vmax.f32 %v2153, %v2533
      %v2794 = vmax.f32 %v2154, %v2535
      %v2795 = vmax.f32 %v2155, %v2537
      %v2796 = vmax.f32 %v2156, %v2539
      %v2797 = vmax.f32 %v2157, %v2541
      %v2798 = vmax.f32 %v2670, %v2671
      %v2799 = vmax.f32 %v2674, %v2675
      %v2800 = vmax.f32 %v2678, %v2679
      %v2801 = vmax.f32 %v2682, %v2683
      %v2802 = vmax.f32 %v2686, %v2687
      %v2803 = vmax.f32 %v2690, %v2691
      %v2804 = vmax.f32 %v2694, %v2695
      %v2805 = vmax.f32 %v2698, %v2699
      %v2806 = vmax.f32 %v2702, %v2703
      %v2807 = vmax.f32 %v2706, %v2707
      %v2808 = vmax.f32 %v2710, %v2711
      %v2809 = vmax.f32 %v2714, %v2715
      %v2810 = vmax.f32 %v2718, %v2719
      %v2811 = vmax.f32 %v2722, %v2723
      %v2812 = vmax.f32 %v2726, %v2727
      %v2813 = vmax.f32 %v2730, %v2731
      %v2814 = vmax.f32 %v2734, %v2735
      %v2815 = vmax.f32 %v2738, %v2739
      %v2816 = vmax.f32 %v2742, %v2743
      %v2817 = vmax.f32 %v2746, %v2747
      %v2818 = vmax.f32 %v2750, %v2751
      %v2819 = vmax.f32 %v2754, %v2755
      %v2820 = vmax.f32 %v2758, %v2759
      %v2821 = vmax.f32 %v2762, %v2763
      %v2822 = vmax.f32 %v2766, %v2767
      %v2823 = vmax.f32 %v2770, %v2771
      %v2824 = vmax.f32 %v2774, %v2775
      %v2825 = vmax.f32 %v2778, %v2779
      %v2826 = vmax.f32 %v2782, %v2783
      %v2827 = vmax.f32 %v2786, %v2787
      %v2828 = vmax.f32 %v2790, %v2791
      %v2829 = vmax.f32 %v2794, %v2795
      %v2830 = vmax.f32 %v2672, %v2673
      %v2831 = vmax.f32 %v2676, %v2677
      %v2832 = vmax.f32 %v2680, %v2681
      %v2833 = vmax.f32 %v2684, %v2685
      %v2834 = vmax.f32 %v2688, %v2689
      %v2835 = vmax.f32 %v2692, %v2693
      %v2836 = vmax.f32 %v2696, %v2697
      %v2837 = vmax.f32 %v2700, %v2701
      %v2838 = vmax.f32 %v2704, %v2705
      %v2839 = vmax.f32 %v2708, %v2709
      %v2840 = vmax.f32 %v2712, %v2713
      %v2841 = vmax.f32 %v2716, %v2717
      %v2842 = vmax.f32 %v2720, %v2721
      %v2843 = vmax.f32 %v2724, %v2725
      %v2844 = vmax.f32 %v2728, %v2729
      %v2845 = vmax.f32 %v2732, %v2733
      %v2846 = vmax.f32 %v2736, %v2737
      %v2847 = vmax.f32 %v2740, %v2741
      %v2848 = vmax.f32 %v2744, %v2745
      %v2849 = vmax.f32 %v2748, %v2749
      %v2850 = vmax.f32 %v2752, %v2753
      %v2851 = vmax.f32 %v2756, %v2757
      %v2852 = vmax.f32 %v2760, %v2761
      %v2853 = vmax.f32 %v2764, %v2765
      %v2854 = vmax.f32 %v2768, %v2769
      %v2855 = vmax.f32 %v2772, %v2773
      %v2856 = vmax.f32 %v2776, %v2777
      %v2857 = vmax.f32 %v2780, %v2781
      %v2858 = vmax.f32 %v2784, %v2785
      %v2859 = vmax.f32 %v2788, %v2789
      %v2860 = vmax.f32 %v2792, %v2793
      %v2861 = vmax.f32 %v2796, %v2797
      %v2862 = vmax.f32 %v2798, %v2830
      %v2863 = vmax.f32 %v2799, %v2831
      %v2864 = vmax.f32 %v2800, %v2832
      %v2865 = vmax.f32 %v2801, %v2833
      %v2866 = vmax.f32 %v2802, %v2834
      %v2867 = vmax.f32 %v2803, %v2835
      %v2868 = vmax.f32 %v2804, %v2836
      %v2869 = vmax.f32 %v2805, %v2837
      %v2870 = vmax.f32 %v2806, %v2838
      %v2871 = vmax.f32 %v2807, %v2839
      %v2872 = vmax.f32 %v2808, %v2840
      %v2873 = vmax.f32 %v2809, %v2841
      %v2874 = vmax.f32 %v2810, %v2842
      %v2875 = vmax.f32 %v2811, %v2843
      %v2876 = vmax.f32 %v2812, %v2844
      %v2877 = vmax.f32 %v2813, %v2845
      %v2878 = vmax.f32 %v2814, %v2846
      %v2879 = vmax.f32 %v2815, %v2847
      %v2880 = vmax.f32 %v2816, %v2848
      %v2881 = vmax.f32 %v2817, %v2849
      %v2882 = vmax.f32 %v2818, %v2850
      %v2883 = vmax.f32 %v2819, %v2851
      %v2884 = vmax.f32 %v2820, %v2852
      %v2885 = vmax.f32 %v2821, %v2853
      %v2886 = vmax.f32 %v2822, %v2854
      %v2887 = vmax.f32 %v2823, %v2855
      %v2888 = vmax.f32 %v2824, %v2856
      %v2889 = vmax.f32 %v2825, %v2857
      %v2890 = vmax.f32 %v2826, %v2858
      %v2891 = vmax.f32 %v2827, %v2859
      %v2892 = vmax.f32 %v2828, %v2860
      %v2893 = vmax.f32 %v2829, %v2861
      %v2894 = vmax.f32 %v2862, 0.0
      %v2895 = vmax.f32 %v2863, 0.0
      %v2896 = vmax.f32 %v2864, 0.0
      %v2897 = vmax.f32 %v2865, 0.0
      %v2898 = vmax.f32 %v2866, 0.0
      %v2899 = vmax.f32 %v2867, 0.0
      %v2900 = vmax.f32 %v2868, 0.0
      %v2901 = vmax.f32 %v2869, 0.0
      %v2902 = vmax.f32 %v2870, 0.0
      %v2903 = vmax.f32 %v2871, 0.0
      %v2904 = vmax.f32 %v2872, 0.0
      %v2905 = vmax.f32 %v2873, 0.0
      %v2906 = vmax.f32 %v2874, 0.0
      %v2907 = vmax.f32 %v2875, 0.0
      %v2908 = vmax.f32 %v2876, 0.0
      %v2909 = vmax.f32 %v2877, 0.0
      %v2910 = vmax.f32 %v2878, 0.0
      %v2911 = vmax.f32 %v2879, 0.0
      %v2912 = vmax.f32 %v2880, 0.0
      %v2913 = vmax.f32 %v2881, 0.0
      %v2914 = vmax.f32 %v2882, 0.0
      %v2915 = vmax.f32 %v2883, 0.0
      %v2916 = vmax.f32 %v2884, 0.0
      %v2917 = vmax.f32 %v2885, 0.0
      %v2918 = vmax.f32 %v2886, 0.0
      %v2919 = vmax.f32 %v2887, 0.0
      %v2920 = vmax.f32 %v2888, 0.0
      %v2921 = vmax.f32 %v2889, 0.0
      %v2922 = vmax.f32 %v2890, 0.0
      %v2923 = vmax.f32 %v2891, 0.0
      %v2924 = vmax.f32 %v2892, 0.0
      %v2925 = vmax.f32 %v2893, 0.0
      %vm2926 = vcmask 130048
      %2927 = vst.msk [vmem:[#allocation2] sm:$0xff] %vm2926, 0.0
      %vm2928 = vcmask 123904
      %2929 = vst.msk [vmem:[#allocation2 + $0x8] sm:$0x3] %vm2928, 0.0
      %2930 = vst.msk [vmem:[#allocation2 + $0xa0] sm:$0xff] %vm2926, 0.0
      %2931 = vst.msk [vmem:[#allocation2 + $0xa8] sm:$0x3] %vm2928, 0.0
      %2932 = vst.msk [vmem:[#allocation2 + $0x140] sm:$0xff] %vm2926, 0.0
      %2933 = vst.msk [vmem:[#allocation2 + $0x148] sm:$0x3] %vm2928, 0.0
      %2934 = vst.msk [vmem:[#allocation2 + $0x1e0] sm:$0xff] %vm2926, 0.0
      %2935 = vst.msk [vmem:[#allocation2 + $0x1e8] sm:$0x3] %vm2928, 0.0
      %s2936 = scalar_lea.vmem [#allocation2], 144
      %2937 = vst.msk [vmem:[%s2936] sm:$0xff] %vm2926, 0.0
      %2938 = vst.msk [vmem:[%s2936 + $0x8] sm:$0x3] %vm2928, 0.0
      %2939 = vst.msk [vmem:[%s2936 + $0xa0] sm:$0xff] %vm2926, 0.0
      %2940 = vst.msk [vmem:[%s2936 + $0xa8] sm:$0x3] %vm2928, 0.0
      %2941 = vst.msk [vmem:[%s2936 + $0x140] sm:$0xff] %vm2926, 0.0
      %2942 = vst.msk [vmem:[%s2936 + $0x148] sm:$0x3] %vm2928, 0.0
      %2943 = vst.msk [vmem:[%s2936 + $0x1e0] sm:$0xff] %vm2926, 0.0
      %2944 = vst.msk [vmem:[%s2936 + $0x1e8] sm:$0x3] %vm2928, 0.0
      %s2945 = scalar_lea.vmem [#allocation2], 16
      %vm2946 = vcmask 122880
      %2947 = vst.msk [vmem:[%s2945] sm:$0x1] %vm2946, 0.0
      %2948 = vst.msk [vmem:[%s2945 + $0x10] sm:$0x1] %vm2946, 0.0
      %2949 = vst.msk [vmem:[%s2945 + $0x20] sm:$0x1] %vm2946, 0.0
      %2950 = vst.msk [vmem:[%s2945 + $0x30] sm:$0x1] %vm2946, 0.0
      %2951 = vst.msk [vmem:[%s2945 + $0x40] sm:$0x1] %vm2946, 0.0
      %2952 = vst.msk [vmem:[%s2945 + $0x50] sm:$0x1] %vm2946, 0.0
      %2953 = vst.msk [vmem:[%s2945 + $0x60] sm:$0x1] %vm2946, 0.0
      %2954 = vst.msk [vmem:[%s2945 + $0x70] sm:$0x1] %vm2946, 0.0
      %2955 = vst.msk [vmem:[%s2945 + $0xa0] sm:$0x1] %vm2946, 0.0
      %2956 = vst.msk [vmem:[%s2945 + $0xb0] sm:$0x1] %vm2946, 0.0
      %2957 = vst.msk [vmem:[%s2945 + $0xc0] sm:$0x1] %vm2946, 0.0
      %2958 = vst.msk [vmem:[%s2945 + $0xd0] sm:$0x1] %vm2946, 0.0
      %2959 = vst.msk [vmem:[%s2945 + $0xe0] sm:$0x1] %vm2946, 0.0
      %2960 = vst.msk [vmem:[%s2945 + $0xf0] sm:$0x1] %vm2946, 0.0
      %2961 = vst.msk [vmem:[%s2945 + $0x100] sm:$0x1] %vm2946, 0.0
      %2962 = vst.msk [vmem:[%s2945 + $0x110] sm:$0x1] %vm2946, 0.0
      %2963 = vst.msk [vmem:[%s2945 + $0x140] sm:$0x1] %vm2946, 0.0
      %2964 = vst.msk [vmem:[%s2945 + $0x150] sm:$0x1] %vm2946, 0.0
      %2965 = vst.msk [vmem:[%s2945 + $0x160] sm:$0x1] %vm2946, 0.0
      %2966 = vst.msk [vmem:[%s2945 + $0x170] sm:$0x1] %vm2946, 0.0
      %2967 = vst.msk [vmem:[%s2945 + $0x180] sm:$0x1] %vm2946, 0.0
      %2968 = vst.msk [vmem:[%s2945 + $0x190] sm:$0x1] %vm2946, 0.0
      %2969 = vst.msk [vmem:[%s2945 + $0x1a0] sm:$0x1] %vm2946, 0.0
      %2970 = vst.msk [vmem:[%s2945 + $0x1b0] sm:$0x1] %vm2946, 0.0
      %2971 = vst.msk [vmem:[%s2945 + $0x1e0] sm:$0x1] %vm2946, 0.0
      %2972 = vst.msk [vmem:[%s2945 + $0x1f0] sm:$0x1] %vm2946, 0.0
      %2973 = vst.msk [vmem:[%s2945 + $0x200] sm:$0x1] %vm2946, 0.0
      %2974 = vst.msk [vmem:[%s2945 + $0x210] sm:$0x1] %vm2946, 0.0
      %2975 = vst.msk [vmem:[%s2945 + $0x220] sm:$0x1] %vm2946, 0.0
      %2976 = vst.msk [vmem:[%s2945 + $0x230] sm:$0x1] %vm2946, 0.0
      %2977 = vst.msk [vmem:[%s2945 + $0x240] sm:$0x1] %vm2946, 0.0
      %2978 = vst.msk [vmem:[%s2945 + $0x250] sm:$0x1] %vm2946, 0.0
      %2979 = vst.msk [vmem:[%s2945 + $0x9] sm:$0x1] %vm2946, 0.0
      %2980 = vst.msk [vmem:[%s2945 + $0x19] sm:$0x1] %vm2946, 0.0
      %2981 = vst.msk [vmem:[%s2945 + $0x29] sm:$0x1] %vm2946, 0.0
      %2982 = vst.msk [vmem:[%s2945 + $0x39] sm:$0x1] %vm2946, 0.0
      %2983 = vst.msk [vmem:[%s2945 + $0x49] sm:$0x1] %vm2946, 0.0
      %2984 = vst.msk [vmem:[%s2945 + $0x59] sm:$0x1] %vm2946, 0.0
      %2985 = vst.msk [vmem:[%s2945 + $0x69] sm:$0x1] %vm2946, 0.0
      %2986 = vst.msk [vmem:[%s2945 + $0x79] sm:$0x1] %vm2946, 0.0
      %2987 = vst.msk [vmem:[%s2945 + $0xa9] sm:$0x1] %vm2946, 0.0
      %2988 = vst.msk [vmem:[%s2945 + $0xb9] sm:$0x1] %vm2946, 0.0
      %2989 = vst.msk [vmem:[%s2945 + $0xc9] sm:$0x1] %vm2946, 0.0
      %2990 = vst.msk [vmem:[%s2945 + $0xd9] sm:$0x1] %vm2946, 0.0
      %2991 = vst.msk [vmem:[%s2945 + $0xe9] sm:$0x1] %vm2946, 0.0
      %2992 = vst.msk [vmem:[%s2945 + $0xf9] sm:$0x1] %vm2946, 0.0
      %2993 = vst.msk [vmem:[%s2945 + $0x109] sm:$0x1] %vm2946, 0.0
      %2994 = vst.msk [vmem:[%s2945 + $0x119] sm:$0x1] %vm2946, 0.0
      %2995 = vst.msk [vmem:[%s2945 + $0x149] sm:$0x1] %vm2946, 0.0
      %2996 = vst.msk [vmem:[%s2945 + $0x159] sm:$0x1] %vm2946, 0.0
      %2997 = vst.msk [vmem:[%s2945 + $0x169] sm:$0x1] %vm2946, 0.0
      %2998 = vst.msk [vmem:[%s2945 + $0x179] sm:$0x1] %vm2946, 0.0
      %2999 = vst.msk [vmem:[%s2945 + $0x189] sm:$0x1] %vm2946, 0.0
      %3000 = vst.msk [vmem:[%s2945 + $0x199] sm:$0x1] %vm2946, 0.0
      %3001 = vst.msk [vmem:[%s2945 + $0x1a9] sm:$0x1] %vm2946, 0.0
      %3002 = vst.msk [vmem:[%s2945 + $0x1b9] sm:$0x1] %vm2946, 0.0
      %3003 = vst.msk [vmem:[%s2945 + $0x1e9] sm:$0x1] %vm2946, 0.0
      %3004 = vst.msk [vmem:[%s2945 + $0x1f9] sm:$0x1] %vm2946, 0.0
      %3005 = vst.msk [vmem:[%s2945 + $0x209] sm:$0x1] %vm2946, 0.0
      %3006 = vst.msk [vmem:[%s2945 + $0x219] sm:$0x1] %vm2946, 0.0
      %3007 = vst.msk [vmem:[%s2945 + $0x229] sm:$0x1] %vm2946, 0.0
      %3008 = vst.msk [vmem:[%s2945 + $0x239] sm:$0x1] %vm2946, 0.0
      %3009 = vst.msk [vmem:[%s2945 + $0x249] sm:$0x1] %vm2946, 0.0
      %3010 = vst.msk [vmem:[%s2945 + $0x259] sm:$0x1] %vm2946, 0.0
      %3011 = vst.msk [vmem:[%s2945 + $0x1] sm:$0xff] %vm2926, %v2894
      %3012 = vst.msk [vmem:[%s2945 + $0x11] sm:$0xff] %vm2926, %v2895
      %3013 = vst.msk [vmem:[%s2945 + $0x21] sm:$0xff] %vm2926, %v2896
      %3014 = vst.msk [vmem:[%s2945 + $0x31] sm:$0xff] %vm2926, %v2897
      %3015 = vst.msk [vmem:[%s2945 + $0x41] sm:$0xff] %vm2926, %v2898
      %3016 = vst.msk [vmem:[%s2945 + $0x51] sm:$0xff] %vm2926, %v2899
      %3017 = vst.msk [vmem:[%s2945 + $0x61] sm:$0xff] %vm2926, %v2900
      %3018 = vst.msk [vmem:[%s2945 + $0x71] sm:$0xff] %vm2926, %v2901
      %3019 = vst.msk [vmem:[%s2945 + $0xa1] sm:$0xff] %vm2926, %v2902
      %3020 = vst.msk [vmem:[%s2945 + $0xb1] sm:$0xff] %vm2926, %v2903
      %3021 = vst.msk [vmem:[%s2945 + $0xc1] sm:$0xff] %vm2926, %v2904
      %3022 = vst.msk [vmem:[%s2945 + $0xd1] sm:$0xff] %vm2926, %v2905
      %3023 = vst.msk [vmem:[%s2945 + $0xe1] sm:$0xff] %vm2926, %v2906
      %3024 = vst.msk [vmem:[%s2945 + $0xf1] sm:$0xff] %vm2926, %v2907
      %3025 = vst.msk [vmem:[%s2945 + $0x101] sm:$0xff] %vm2926, %v2908
      %3026 = vst.msk [vmem:[%s2945 + $0x111] sm:$0xff] %vm2926, %v2909
      %3027 = vst.msk [vmem:[%s2945 + $0x141] sm:$0xff] %vm2926, %v2910
      %3028 = vst.msk [vmem:[%s2945 + $0x151] sm:$0xff] %vm2926, %v2911
      %3029 = vst.msk [vmem:[%s2945 + $0x161] sm:$0xff] %vm2926, %v2912
      %3030 = vst.msk [vmem:[%s2945 + $0x171] sm:$0xff] %vm2926, %v2913
      %3031 = vst.msk [vmem:[%s2945 + $0x181] sm:$0xff] %vm2926, %v2914
      %3032 = vst.msk [vmem:[%s2945 + $0x191] sm:$0xff] %vm2926, %v2915
      %3033 = vst.msk [vmem:[%s2945 + $0x1a1] sm:$0xff] %vm2926, %v2916
      %3034 = vst.msk [vmem:[%s2945 + $0x1b1] sm:$0xff] %vm2926, %v2917
      %3035 = vst.msk [vmem:[%s2945 + $0x1e1] sm:$0xff] %vm2926, %v2918
      %3036 = vst.msk [vmem:[%s2945 + $0x1f1] sm:$0xff] %vm2926, %v2919
      %3037 = vst.msk [vmem:[%s2945 + $0x201] sm:$0xff] %vm2926, %v2920
      %3038 = vst.msk [vmem:[%s2945 + $0x211] sm:$0xff] %vm2926, %v2921
      %3039 = vst.msk [vmem:[%s2945 + $0x221] sm:$0xff] %vm2926, %v2922
      %3040 = vst.msk [vmem:[%s2945 + $0x231] sm:$0xff] %vm2926, %v2923
      %3041 = vst.msk [vmem:[%s2945 + $0x241] sm:$0xff] %vm2926, %v2924
      %3042 = vst.msk [vmem:[%s2945 + $0x251] sm:$0xff] %vm2926, %v2925
      %v3043 = vld [vmem:[#allocation2] sm:$0xff]
      %v3044 = vld [vmem:[#allocation2 + $0x10] sm:$0xff]
      %v3045 = vld [vmem:[#allocation2 + $0x20] sm:$0xff]
      %v3046 = vld [vmem:[#allocation2 + $0x30] sm:$0xff]
      %v3047 = vld [vmem:[#allocation2 + $0x40] sm:$0xff]
      %v3048 = vld [vmem:[#allocation2 + $0x50] sm:$0xff]
      %v3049 = vld [vmem:[#allocation2 + $0x60] sm:$0xff]
      %v3050 = vld [vmem:[#allocation2 + $0x70] sm:$0xff]
      %v3051 = vld [vmem:[#allocation2 + $0xa0] sm:$0xff]
      %v3052 = vld [vmem:[#allocation2 + $0xb0] sm:$0xff]
      %v3053 = vld [vmem:[#allocation2 + $0xc0] sm:$0xff]
      %v3054 = vld [vmem:[#allocation2 + $0xd0] sm:$0xff]
      %v3055 = vld [vmem:[#allocation2 + $0xe0] sm:$0xff]
      %v3056 = vld [vmem:[#allocation2 + $0xf0] sm:$0xff]
      %v3057 = vld [vmem:[#allocation2 + $0x100] sm:$0xff]
      %v3058 = vld [vmem:[#allocation2 + $0x110] sm:$0xff]
      %v3059 = vld [vmem:[#allocation2 + $0x140] sm:$0xff]
      %v3060 = vld [vmem:[#allocation2 + $0x150] sm:$0xff]
      %v3061 = vld [vmem:[#allocation2 + $0x160] sm:$0xff]
      %v3062 = vld [vmem:[#allocation2 + $0x170] sm:$0xff]
      %v3063 = vld [vmem:[#allocation2 + $0x180] sm:$0xff]
      %v3064 = vld [vmem:[#allocation2 + $0x190] sm:$0xff]
      %v3065 = vld [vmem:[#allocation2 + $0x1a0] sm:$0xff]
      %v3066 = vld [vmem:[#allocation2 + $0x1b0] sm:$0xff]
      %v3067 = vld [vmem:[#allocation2 + $0x1e0] sm:$0xff]
      %v3068 = vld [vmem:[#allocation2 + $0x1f0] sm:$0xff]
      %v3069 = vld [vmem:[#allocation2 + $0x200] sm:$0xff]
      %v3070 = vld [vmem:[#allocation2 + $0x210] sm:$0xff]
      %v3071 = vld [vmem:[#allocation2 + $0x220] sm:$0xff]
      %v3072 = vld [vmem:[#allocation2 + $0x230] sm:$0xff]
      %v3073 = vld [vmem:[#allocation2 + $0x240] sm:$0xff]
      %v3074 = vld [vmem:[#allocation2 + $0x250] sm:$0xff]
      %3075 = vst.msk [vmem:[#allocation3] sm:$0xff] %vm2926, %v3043
      %3076 = vst.msk [vmem:[#allocation3 + $0x10] sm:$0xff] %vm2926, %v3044
      %3077 = vst.msk [vmem:[#allocation3 + $0x20] sm:$0xff] %vm2926, %v3045
      %3078 = vst.msk [vmem:[#allocation3 + $0x30] sm:$0xff] %vm2926, %v3046
      %3079 = vst.msk [vmem:[#allocation3 + $0x40] sm:$0xff] %vm2926, %v3047
      %3080 = vst.msk [vmem:[#allocation3 + $0x50] sm:$0xff] %vm2926, %v3048
      %3081 = vst.msk [vmem:[#allocation3 + $0x60] sm:$0xff] %vm2926, %v3049
      %3082 = vst.msk [vmem:[#allocation3 + $0x70] sm:$0xff] %vm2926, %v3050
      %3083 = vst.msk [vmem:[#allocation3 + $0x80] sm:$0xff] %vm2926, %v3051
      %3084 = vst.msk [vmem:[#allocation3 + $0x90] sm:$0xff] %vm2926, %v3052
      %3085 = vst.msk [vmem:[#allocation3 + $0xa0] sm:$0xff] %vm2926, %v3053
      %3086 = vst.msk [vmem:[#allocation3 + $0xb0] sm:$0xff] %vm2926, %v3054
      %3087 = vst.msk [vmem:[#allocation3 + $0xc0] sm:$0xff] %vm2926, %v3055
      %3088 = vst.msk [vmem:[#allocation3 + $0xd0] sm:$0xff] %vm2926, %v3056
      %3089 = vst.msk [vmem:[#allocation3 + $0xe0] sm:$0xff] %vm2926, %v3057
      %3090 = vst.msk [vmem:[#allocation3 + $0xf0] sm:$0xff] %vm2926, %v3058
      %3091 = vst.msk [vmem:[#allocation3 + $0x100] sm:$0xff] %vm2926, %v3059
      %3092 = vst.msk [vmem:[#allocation3 + $0x110] sm:$0xff] %vm2926, %v3060
      %3093 = vst.msk [vmem:[#allocation3 + $0x120] sm:$0xff] %vm2926, %v3061
      %3094 = vst.msk [vmem:[#allocation3 + $0x130] sm:$0xff] %vm2926, %v3062
      %3095 = vst.msk [vmem:[#allocation3 + $0x140] sm:$0xff] %vm2926, %v3063
      %3096 = vst.msk [vmem:[#allocation3 + $0x150] sm:$0xff] %vm2926, %v3064
      %3097 = vst.msk [vmem:[#allocation3 + $0x160] sm:$0xff] %vm2926, %v3065
      %3098 = vst.msk [vmem:[#allocation3 + $0x170] sm:$0xff] %vm2926, %v3066
      %3099 = vst.msk [vmem:[#allocation3 + $0x180] sm:$0xff] %vm2926, %v3067
      %3100 = vst.msk [vmem:[#allocation3 + $0x190] sm:$0xff] %vm2926, %v3068
      %3101 = vst.msk [vmem:[#allocation3 + $0x1a0] sm:$0xff] %vm2926, %v3069
      %3102 = vst.msk [vmem:[#allocation3 + $0x1b0] sm:$0xff] %vm2926, %v3070
      %3103 = vst.msk [vmem:[#allocation3 + $0x1c0] sm:$0xff] %vm2926, %v3071
      %3104 = vst.msk [vmem:[#allocation3 + $0x1d0] sm:$0xff] %vm2926, %v3072
      %3105 = vst.msk [vmem:[#allocation3 + $0x1e0] sm:$0xff] %vm2926, %v3073
      %3106 = vst.msk [vmem:[#allocation3 + $0x1f0] sm:$0xff] %vm2926, %v3074
      %v3107 = vld [vmem:[#allocation2 + $0x1] sm:$0xff]
      %v3108 = vld [vmem:[#allocation2 + $0x11] sm:$0xff]
      %v3109 = vld [vmem:[#allocation2 + $0x21] sm:$0xff]
      %v3110 = vld [vmem:[#allocation2 + $0x31] sm:$0xff]
      %v3111 = vld [vmem:[#allocation2 + $0x41] sm:$0xff]
      %v3112 = vld [vmem:[#allocation2 + $0x51] sm:$0xff]
      %v3113 = vld [vmem:[#allocation2 + $0x61] sm:$0xff]
      %v3114 = vld [vmem:[#allocation2 + $0x71] sm:$0xff]
      %v3115 = vld [vmem:[#allocation2 + $0xa1] sm:$0xff]
      %v3116 = vld [vmem:[#allocation2 + $0xb1] sm:$0xff]
      %v3117 = vld [vmem:[#allocation2 + $0xc1] sm:$0xff]
      %v3118 = vld [vmem:[#allocation2 + $0xd1] sm:$0xff]
      %v3119 = vld [vmem:[#allocation2 + $0xe1] sm:$0xff]
      %v3120 = vld [vmem:[#allocation2 + $0xf1] sm:$0xff]
      %v3121 = vld [vmem:[#allocation2 + $0x101] sm:$0xff]
      %v3122 = vld [vmem:[#allocation2 + $0x111] sm:$0xff]
      %v3123 = vld [vmem:[#allocation2 + $0x141] sm:$0xff]
      %v3124 = vld [vmem:[#allocation2 + $0x151] sm:$0xff]
      %v3125 = vld [vmem:[#allocation2 + $0x161] sm:$0xff]
      %v3126 = vld [vmem:[#allocation2 + $0x171] sm:$0xff]
      %v3127 = vld [vmem:[#allocation2 + $0x181] sm:$0xff]
      %v3128 = vld [vmem:[#allocation2 + $0x191] sm:$0xff]
      %v3129 = vld [vmem:[#allocation2 + $0x1a1] sm:$0xff]
      %v3130 = vld [vmem:[#allocation2 + $0x1b1] sm:$0xff]
      %v3131 = vld [vmem:[#allocation2 + $0x1e1] sm:$0xff]
      %v3132 = vld [vmem:[#allocation2 + $0x1f1] sm:$0xff]
      %v3133 = vld [vmem:[#allocation2 + $0x201] sm:$0xff]
      %v3134 = vld [vmem:[#allocation2 + $0x211] sm:$0xff]
      %v3135 = vld [vmem:[#allocation2 + $0x221] sm:$0xff]
      %v3136 = vld [vmem:[#allocation2 + $0x231] sm:$0xff]
      %v3137 = vld [vmem:[#allocation2 + $0x241] sm:$0xff]
      %v3138 = vld [vmem:[#allocation2 + $0x251] sm:$0xff]
      %3171 = vrot.lane.b32.xlu0 %v3107, 16
      %v3172 = vpop.permute.xlu0 %3171
      %3173 = vrot.lane.b32.xlu0 %v3108, 16
      %v3174 = vpop.permute.xlu0 %3173
      %3175 = vrot.lane.b32.xlu0 %v3109, 16
      %v3176 = vpop.permute.xlu0 %3175
      %3177 = vrot.lane.b32.xlu0 %v3110, 16
      %v3178 = vpop.permute.xlu0 %3177
      %3179 = vrot.lane.b32.xlu0 %v3111, 16
      %v3180 = vpop.permute.xlu0 %3179
      %3181 = vrot.lane.b32.xlu0 %v3112, 16
      %v3182 = vpop.permute.xlu0 %3181
      %3183 = vrot.lane.b32.xlu0 %v3113, 16
      %v3184 = vpop.permute.xlu0 %3183
      %3185 = vrot.lane.b32.xlu0 %v3114, 16
      %v3186 = vpop.permute.xlu0 %3185
      %3187 = vrot.lane.b32.xlu0 %v3115, 16
      %v3188 = vpop.permute.xlu0 %3187
      %3189 = vrot.lane.b32.xlu0 %v3116, 16
      %v3190 = vpop.permute.xlu0 %3189
      %3191 = vrot.lane.b32.xlu0 %v3117, 16
      %v3192 = vpop.permute.xlu0 %3191
      %3193 = vrot.lane.b32.xlu0 %v3118, 16
      %v3194 = vpop.permute.xlu0 %3193
      %3195 = vrot.lane.b32.xlu0 %v3119, 16
      %v3196 = vpop.permute.xlu0 %3195
      %3197 = vrot.lane.b32.xlu0 %v3120, 16
      %v3198 = vpop.permute.xlu0 %3197
      %3199 = vrot.lane.b32.xlu0 %v3121, 16
      %v3200 = vpop.permute.xlu0 %3199
      %3201 = vrot.lane.b32.xlu0 %v3122, 16
      %v3202 = vpop.permute.xlu0 %3201
      %3203 = vrot.lane.b32.xlu0 %v3123, 16
      %v3204 = vpop.permute.xlu0 %3203
      %3205 = vrot.lane.b32.xlu0 %v3124, 16
      %v3206 = vpop.permute.xlu0 %3205
      %3207 = vrot.lane.b32.xlu0 %v3125, 16
      %v3208 = vpop.permute.xlu0 %3207
      %3209 = vrot.lane.b32.xlu0 %v3126, 16
      %v3210 = vpop.permute.xlu0 %3209
      %3211 = vrot.lane.b32.xlu0 %v3127, 16
      %v3212 = vpop.permute.xlu0 %3211
      %3213 = vrot.lane.b32.xlu0 %v3128, 16
      %v3214 = vpop.permute.xlu0 %3213
      %3215 = vrot.lane.b32.xlu0 %v3129, 16
      %v3216 = vpop.permute.xlu0 %3215
      %3217 = vrot.lane.b32.xlu0 %v3130, 16
      %v3218 = vpop.permute.xlu0 %3217
      %3219 = vrot.lane.b32.xlu0 %v3131, 16
      %v3220 = vpop.permute.xlu0 %3219
      %3221 = vrot.lane.b32.xlu0 %v3132, 16
      %v3222 = vpop.permute.xlu0 %3221
      %3223 = vrot.lane.b32.xlu0 %v3133, 16
      %v3224 = vpop.permute.xlu0 %3223
      %3225 = vrot.lane.b32.xlu0 %v3134, 16
      %v3226 = vpop.permute.xlu0 %3225
      %3227 = vrot.lane.b32.xlu0 %v3135, 16
      %v3228 = vpop.permute.xlu0 %3227
      %3229 = vrot.lane.b32.xlu0 %v3136, 16
      %v3230 = vpop.permute.xlu0 %3229
      %3231 = vrot.lane.b32.xlu0 %v3137, 16
      %v3232 = vpop.permute.xlu0 %3231
      %3233 = vrot.lane.b32.xlu0 %v3138, 16
      %v3234 = vpop.permute.xlu0 %3233
      %vm3267 = vcmask 261248
      %3268 = vst.msk [vmem:[#allocation3] sm:$0xff] %vm3267, %v3172
      %3269 = vst.msk [vmem:[#allocation3 + $0x10] sm:$0xff] %vm3267, %v3174
      %3270 = vst.msk [vmem:[#allocation3 + $0x20] sm:$0xff] %vm3267, %v3176
      %3271 = vst.msk [vmem:[#allocation3 + $0x30] sm:$0xff] %vm3267, %v3178
      %3272 = vst.msk [vmem:[#allocation3 + $0x40] sm:$0xff] %vm3267, %v3180
      %3273 = vst.msk [vmem:[#allocation3 + $0x50] sm:$0xff] %vm3267, %v3182
      %3274 = vst.msk [vmem:[#allocation3 + $0x60] sm:$0xff] %vm3267, %v3184
      %3275 = vst.msk [vmem:[#allocation3 + $0x70] sm:$0xff] %vm3267, %v3186
      %3276 = vst.msk [vmem:[#allocation3 + $0x80] sm:$0xff] %vm3267, %v3188
      %3277 = vst.msk [vmem:[#allocation3 + $0x90] sm:$0xff] %vm3267, %v3190
      %3278 = vst.msk [vmem:[#allocation3 + $0xa0] sm:$0xff] %vm3267, %v3192
      %3279 = vst.msk [vmem:[#allocation3 + $0xb0] sm:$0xff] %vm3267, %v3194
      %3280 = vst.msk [vmem:[#allocation3 + $0xc0] sm:$0xff] %vm3267, %v3196
      %3281 = vst.msk [vmem:[#allocation3 + $0xd0] sm:$0xff] %vm3267, %v3198
      %3282 = vst.msk [vmem:[#allocation3 + $0xe0] sm:$0xff] %vm3267, %v3200
      %3283 = vst.msk [vmem:[#allocation3 + $0xf0] sm:$0xff] %vm3267, %v3202
      %3284 = vst.msk [vmem:[#allocation3 + $0x100] sm:$0xff] %vm3267, %v3204
      %3285 = vst.msk [vmem:[#allocation3 + $0x110] sm:$0xff] %vm3267, %v3206
      %3286 = vst.msk [vmem:[#allocation3 + $0x120] sm:$0xff] %vm3267, %v3208
      %3287 = vst.msk [vmem:[#allocation3 + $0x130] sm:$0xff] %vm3267, %v3210
      %3288 = vst.msk [vmem:[#allocation3 + $0x140] sm:$0xff] %vm3267, %v3212
      %3289 = vst.msk [vmem:[#allocation3 + $0x150] sm:$0xff] %vm3267, %v3214
      %3290 = vst.msk [vmem:[#allocation3 + $0x160] sm:$0xff] %vm3267, %v3216
      %3291 = vst.msk [vmem:[#allocation3 + $0x170] sm:$0xff] %vm3267, %v3218
      %3292 = vst.msk [vmem:[#allocation3 + $0x180] sm:$0xff] %vm3267, %v3220
      %3293 = vst.msk [vmem:[#allocation3 + $0x190] sm:$0xff] %vm3267, %v3222
      %3294 = vst.msk [vmem:[#allocation3 + $0x1a0] sm:$0xff] %vm3267, %v3224
      %3295 = vst.msk [vmem:[#allocation3 + $0x1b0] sm:$0xff] %vm3267, %v3226
      %3296 = vst.msk [vmem:[#allocation3 + $0x1c0] sm:$0xff] %vm3267, %v3228
      %3297 = vst.msk [vmem:[#allocation3 + $0x1d0] sm:$0xff] %vm3267, %v3230
      %3298 = vst.msk [vmem:[#allocation3 + $0x1e0] sm:$0xff] %vm3267, %v3232
      %3299 = vst.msk [vmem:[#allocation3 + $0x1f0] sm:$0xff] %vm3267, %v3234
      %v3300 = vld [vmem:[#allocation2 + $0x2] sm:$0xff]
      %v3301 = vld [vmem:[#allocation2 + $0x12] sm:$0xff]
      %v3302 = vld [vmem:[#allocation2 + $0x22] sm:$0xff]
      %v3303 = vld [vmem:[#allocation2 + $0x32] sm:$0xff]
      %v3304 = vld [vmem:[#allocation2 + $0x42] sm:$0xff]
      %v3305 = vld [vmem:[#allocation2 + $0x52] sm:$0xff]
      %v3306 = vld [vmem:[#allocation2 + $0x62] sm:$0xff]
      %v3307 = vld [vmem:[#allocation2 + $0x72] sm:$0xff]
      %v3308 = vld [vmem:[#allocation2 + $0xa2] sm:$0xff]
      %v3309 = vld [vmem:[#allocation2 + $0xb2] sm:$0xff]
      %v3310 = vld [vmem:[#allocation2 + $0xc2] sm:$0xff]
      %v3311 = vld [vmem:[#allocation2 + $0xd2] sm:$0xff]
      %v3312 = vld [vmem:[#allocation2 + $0xe2] sm:$0xff]
      %v3313 = vld [vmem:[#allocation2 + $0xf2] sm:$0xff]
      %v3314 = vld [vmem:[#allocation2 + $0x102] sm:$0xff]
      %v3315 = vld [vmem:[#allocation2 + $0x112] sm:$0xff]
      %v3316 = vld [vmem:[#allocation2 + $0x142] sm:$0xff]
      %v3317 = vld [vmem:[#allocation2 + $0x152] sm:$0xff]
      %v3318 = vld [vmem:[#allocation2 + $0x162] sm:$0xff]
      %v3319 = vld [vmem:[#allocation2 + $0x172] sm:$0xff]
      %v3320 = vld [vmem:[#allocation2 + $0x182] sm:$0xff]
      %v3321 = vld [vmem:[#allocation2 + $0x192] sm:$0xff]
      %v3322 = vld [vmem:[#allocation2 + $0x1a2] sm:$0xff]
      %v3323 = vld [vmem:[#allocation2 + $0x1b2] sm:$0xff]
      %v3324 = vld [vmem:[#allocation2 + $0x1e2] sm:$0xff]
      %v3325 = vld [vmem:[#allocation2 + $0x1f2] sm:$0xff]
      %v3326 = vld [vmem:[#allocation2 + $0x202] sm:$0xff]
      %v3327 = vld [vmem:[#allocation2 + $0x212] sm:$0xff]
      %v3328 = vld [vmem:[#allocation2 + $0x222] sm:$0xff]
      %v3329 = vld [vmem:[#allocation2 + $0x232] sm:$0xff]
      %v3330 = vld [vmem:[#allocation2 + $0x242] sm:$0xff]
      %v3331 = vld [vmem:[#allocation2 + $0x252] sm:$0xff]
      %3364 = vrot.lane.b32.xlu0 %v3300, 32
      %v3365 = vpop.permute.xlu0 %3364
      %3366 = vrot.lane.b32.xlu0 %v3301, 32
      %v3367 = vpop.permute.xlu0 %3366
      %3368 = vrot.lane.b32.xlu0 %v3302, 32
      %v3369 = vpop.permute.xlu0 %3368
      %3370 = vrot.lane.b32.xlu0 %v3303, 32
      %v3371 = vpop.permute.xlu0 %3370
      %3372 = vrot.lane.b32.xlu0 %v3304, 32
      %v3373 = vpop.permute.xlu0 %3372
      %3374 = vrot.lane.b32.xlu0 %v3305, 32
      %v3375 = vpop.permute.xlu0 %3374
      %3376 = vrot.lane.b32.xlu0 %v3306, 32
      %v3377 = vpop.permute.xlu0 %3376
      %3378 = vrot.lane.b32.xlu0 %v3307, 32
      %v3379 = vpop.permute.xlu0 %3378
      %3380 = vrot.lane.b32.xlu0 %v3308, 32
      %v3381 = vpop.permute.xlu0 %3380
      %3382 = vrot.lane.b32.xlu0 %v3309, 32
      %v3383 = vpop.permute.xlu0 %3382
      %3384 = vrot.lane.b32.xlu0 %v3310, 32
      %v3385 = vpop.permute.xlu0 %3384
      %3386 = vrot.lane.b32.xlu0 %v3311, 32
      %v3387 = vpop.permute.xlu0 %3386
      %3388 = vrot.lane.b32.xlu0 %v3312, 32
      %v3389 = vpop.permute.xlu0 %3388
      %3390 = vrot.lane.b32.xlu0 %v3313, 32
      %v3391 = vpop.permute.xlu0 %3390
      %3392 = vrot.lane.b32.xlu0 %v3314, 32
      %v3393 = vpop.permute.xlu0 %3392
      %3394 = vrot.lane.b32.xlu0 %v3315, 32
      %v3395 = vpop.permute.xlu0 %3394
      %3396 = vrot.lane.b32.xlu0 %v3316, 32
      %v3397 = vpop.permute.xlu0 %3396
      %3398 = vrot.lane.b32.xlu0 %v3317, 32
      %v3399 = vpop.permute.xlu0 %3398
      %3400 = vrot.lane.b32.xlu0 %v3318, 32
      %v3401 = vpop.permute.xlu0 %3400
      %3402 = vrot.lane.b32.xlu0 %v3319, 32
      %v3403 = vpop.permute.xlu0 %3402
      %3404 = vrot.lane.b32.xlu0 %v3320, 32
      %v3405 = vpop.permute.xlu0 %3404
      %3406 = vrot.lane.b32.xlu0 %v3321, 32
      %v3407 = vpop.permute.xlu0 %3406
      %3408 = vrot.lane.b32.xlu0 %v3322, 32
      %v3409 = vpop.permute.xlu0 %3408
      %3410 = vrot.lane.b32.xlu0 %v3323, 32
      %v3411 = vpop.permute.xlu0 %3410
      %3412 = vrot.lane.b32.xlu0 %v3324, 32
      %v3413 = vpop.permute.xlu0 %3412
      %3414 = vrot.lane.b32.xlu0 %v3325, 32
      %v3415 = vpop.permute.xlu0 %3414
      %3416 = vrot.lane.b32.xlu0 %v3326, 32
      %v3417 = vpop.permute.xlu0 %3416
      %3418 = vrot.lane.b32.xlu0 %v3327, 32
      %v3419 = vpop.permute.xlu0 %3418
      %3420 = vrot.lane.b32.xlu0 %v3328, 32
      %v3421 = vpop.permute.xlu0 %3420
      %3422 = vrot.lane.b32.xlu0 %v3329, 32
      %v3423 = vpop.permute.xlu0 %3422
      %3424 = vrot.lane.b32.xlu0 %v3330, 32
      %v3425 = vpop.permute.xlu0 %3424
      %3426 = vrot.lane.b32.xlu0 %v3331, 32
      %v3427 = vpop.permute.xlu0 %3426
      %vm3460 = vcmask 392448
      %3461 = vst.msk [vmem:[#allocation3] sm:$0xff] %vm3460, %v3365
      %3462 = vst.msk [vmem:[#allocation3 + $0x10] sm:$0xff] %vm3460, %v3367
      %3463 = vst.msk [vmem:[#allocation3 + $0x20] sm:$0xff] %vm3460, %v3369
      %3464 = vst.msk [vmem:[#allocation3 + $0x30] sm:$0xff] %vm3460, %v3371
      %3465 = vst.msk [vmem:[#allocation3 + $0x40] sm:$0xff] %vm3460, %v3373
      %3466 = vst.msk [vmem:[#allocation3 + $0x50] sm:$0xff] %vm3460, %v3375
      %3467 = vst.msk [vmem:[#allocation3 + $0x60] sm:$0xff] %vm3460, %v3377
      %3468 = vst.msk [vmem:[#allocation3 + $0x70] sm:$0xff] %vm3460, %v3379
      %3469 = vst.msk [vmem:[#allocation3 + $0x80] sm:$0xff] %vm3460, %v3381
      %3470 = vst.msk [vmem:[#allocation3 + $0x90] sm:$0xff] %vm3460, %v3383
      %3471 = vst.msk [vmem:[#allocation3 + $0xa0] sm:$0xff] %vm3460, %v3385
      %3472 = vst.msk [vmem:[#allocation3 + $0xb0] sm:$0xff] %vm3460, %v3387
      %3473 = vst.msk [vmem:[#allocation3 + $0xc0] sm:$0xff] %vm3460, %v3389
      %3474 = vst.msk [vmem:[#allocation3 + $0xd0] sm:$0xff] %vm3460, %v3391
      %3475 = vst.msk [vmem:[#allocation3 + $0xe0] sm:$0xff] %vm3460, %v3393
      %3476 = vst.msk [vmem:[#allocation3 + $0xf0] sm:$0xff] %vm3460, %v3395
      %3477 = vst.msk [vmem:[#allocation3 + $0x100] sm:$0xff] %vm3460, %v3397
      %3478 = vst.msk [vmem:[#allocation3 + $0x110] sm:$0xff] %vm3460, %v3399
      %3479 = vst.msk [vmem:[#allocation3 + $0x120] sm:$0xff] %vm3460, %v3401
      %3480 = vst.msk [vmem:[#allocation3 + $0x130] sm:$0xff] %vm3460, %v3403
      %3481 = vst.msk [vmem:[#allocation3 + $0x140] sm:$0xff] %vm3460, %v3405
      %3482 = vst.msk [vmem:[#allocation3 + $0x150] sm:$0xff] %vm3460, %v3407
      %3483 = vst.msk [vmem:[#allocation3 + $0x160] sm:$0xff] %vm3460, %v3409
      %3484 = vst.msk [vmem:[#allocation3 + $0x170] sm:$0xff] %vm3460, %v3411
      %3485 = vst.msk [vmem:[#allocation3 + $0x180] sm:$0xff] %vm3460, %v3413
      %3486 = vst.msk [vmem:[#allocation3 + $0x190] sm:$0xff] %vm3460, %v3415
      %3487 = vst.msk [vmem:[#allocation3 + $0x1a0] sm:$0xff] %vm3460, %v3417
      %3488 = vst.msk [vmem:[#allocation3 + $0x1b0] sm:$0xff] %vm3460, %v3419
      %3489 = vst.msk [vmem:[#allocation3 + $0x1c0] sm:$0xff] %vm3460, %v3421
      %3490 = vst.msk [vmem:[#allocation3 + $0x1d0] sm:$0xff] %vm3460, %v3423
      %3491 = vst.msk [vmem:[#allocation3 + $0x1e0] sm:$0xff] %vm3460, %v3425
      %3492 = vst.msk [vmem:[#allocation3 + $0x1f0] sm:$0xff] %vm3460, %v3427
      %v3493 = vld [vmem:[%s2945] sm:$0xff]
      %v3494 = vld [vmem:[%s2945 + $0x10] sm:$0xff]
      %v3495 = vld [vmem:[%s2945 + $0x20] sm:$0xff]
      %v3496 = vld [vmem:[%s2945 + $0x30] sm:$0xff]
      %v3497 = vld [vmem:[%s2945 + $0x40] sm:$0xff]
      %v3498 = vld [vmem:[%s2945 + $0x50] sm:$0xff]
      %v3499 = vld [vmem:[%s2945 + $0x60] sm:$0xff]
      %v3500 = vld [vmem:[%s2945 + $0x70] sm:$0xff]
      %v3501 = vld [vmem:[%s2945 + $0xa0] sm:$0xff]
      %v3502 = vld [vmem:[%s2945 + $0xb0] sm:$0xff]
      %v3503 = vld [vmem:[%s2945 + $0xc0] sm:$0xff]
      %v3504 = vld [vmem:[%s2945 + $0xd0] sm:$0xff]
      %v3505 = vld [vmem:[%s2945 + $0xe0] sm:$0xff]
      %v3506 = vld [vmem:[%s2945 + $0xf0] sm:$0xff]
      %v3507 = vld [vmem:[%s2945 + $0x100] sm:$0xff]
      %v3508 = vld [vmem:[%s2945 + $0x110] sm:$0xff]
      %v3509 = vld [vmem:[%s2945 + $0x140] sm:$0xff]
      %v3510 = vld [vmem:[%s2945 + $0x150] sm:$0xff]
      %v3511 = vld [vmem:[%s2945 + $0x160] sm:$0xff]
      %v3512 = vld [vmem:[%s2945 + $0x170] sm:$0xff]
      %v3513 = vld [vmem:[%s2945 + $0x180] sm:$0xff]
      %v3514 = vld [vmem:[%s2945 + $0x190] sm:$0xff]
      %v3515 = vld [vmem:[%s2945 + $0x1a0] sm:$0xff]
      %v3516 = vld [vmem:[%s2945 + $0x1b0] sm:$0xff]
      %v3517 = vld [vmem:[%s2945 + $0x1e0] sm:$0xff]
      %v3518 = vld [vmem:[%s2945 + $0x1f0] sm:$0xff]
      %v3519 = vld [vmem:[%s2945 + $0x200] sm:$0xff]
      %v3520 = vld [vmem:[%s2945 + $0x210] sm:$0xff]
      %v3521 = vld [vmem:[%s2945 + $0x220] sm:$0xff]
      %v3522 = vld [vmem:[%s2945 + $0x230] sm:$0xff]
      %v3523 = vld [vmem:[%s2945 + $0x240] sm:$0xff]
      %v3524 = vld [vmem:[%s2945 + $0x250] sm:$0xff]
      %3557 = vrot.lane.b32.xlu0 %v3493, 48
      %v3558 = vpop.permute.xlu0 %3557
      %3559 = vrot.lane.b32.xlu0 %v3494, 48
      %v3560 = vpop.permute.xlu0 %3559
      %3561 = vrot.lane.b32.xlu0 %v3495, 48
      %v3562 = vpop.permute.xlu0 %3561
      %3563 = vrot.lane.b32.xlu0 %v3496, 48
      %v3564 = vpop.permute.xlu0 %3563
      %3565 = vrot.lane.b32.xlu0 %v3497, 48
      %v3566 = vpop.permute.xlu0 %3565
      %3567 = vrot.lane.b32.xlu0 %v3498, 48
      %v3568 = vpop.permute.xlu0 %3567
      %3569 = vrot.lane.b32.xlu0 %v3499, 48
      %v3570 = vpop.permute.xlu0 %3569
      %3571 = vrot.lane.b32.xlu0 %v3500, 48
      %v3572 = vpop.permute.xlu0 %3571
      %3573 = vrot.lane.b32.xlu0 %v3501, 48
      %v3574 = vpop.permute.xlu0 %3573
      %3575 = vrot.lane.b32.xlu0 %v3502, 48
      %v3576 = vpop.permute.xlu0 %3575
      %3577 = vrot.lane.b32.xlu0 %v3503, 48
      %v3578 = vpop.permute.xlu0 %3577
      %3579 = vrot.lane.b32.xlu0 %v3504, 48
      %v3580 = vpop.permute.xlu0 %3579
      %3581 = vrot.lane.b32.xlu0 %v3505, 48
      %v3582 = vpop.permute.xlu0 %3581
      %3583 = vrot.lane.b32.xlu0 %v3506, 48
      %v3584 = vpop.permute.xlu0 %3583
      %3585 = vrot.lane.b32.xlu0 %v3507, 48
      %v3586 = vpop.permute.xlu0 %3585
      %3587 = vrot.lane.b32.xlu0 %v3508, 48
      %v3588 = vpop.permute.xlu0 %3587
      %3589 = vrot.lane.b32.xlu0 %v3509, 48
      %v3590 = vpop.permute.xlu0 %3589
      %3591 = vrot.lane.b32.xlu0 %v3510, 48
      %v3592 = vpop.permute.xlu0 %3591
      %3593 = vrot.lane.b32.xlu0 %v3511, 48
      %v3594 = vpop.permute.xlu0 %3593
      %3595 = vrot.lane.b32.xlu0 %v3512, 48
      %v3596 = vpop.permute.xlu0 %3595
      %3597 = vrot.lane.b32.xlu0 %v3513, 48
      %v3598 = vpop.permute.xlu0 %3597
      %3599 = vrot.lane.b32.xlu0 %v3514, 48
      %v3600 = vpop.permute.xlu0 %3599
      %3601 = vrot.lane.b32.xlu0 %v3515, 48
      %v3602 = vpop.permute.xlu0 %3601
      %3603 = vrot.lane.b32.xlu0 %v3516, 48
      %v3604 = vpop.permute.xlu0 %3603
      %3605 = vrot.lane.b32.xlu0 %v3517, 48
      %v3606 = vpop.permute.xlu0 %3605
      %3607 = vrot.lane.b32.xlu0 %v3518, 48
      %v3608 = vpop.permute.xlu0 %3607
      %3609 = vrot.lane.b32.xlu0 %v3519, 48
      %v3610 = vpop.permute.xlu0 %3609
      %3611 = vrot.lane.b32.xlu0 %v3520, 48
      %v3612 = vpop.permute.xlu0 %3611
      %3613 = vrot.lane.b32.xlu0 %v3521, 48
      %v3614 = vpop.permute.xlu0 %3613
      %3615 = vrot.lane.b32.xlu0 %v3522, 48
      %v3616 = vpop.permute.xlu0 %3615
      %3617 = vrot.lane.b32.xlu0 %v3523, 48
      %v3618 = vpop.permute.xlu0 %3617
      %3619 = vrot.lane.b32.xlu0 %v3524, 48
      %v3620 = vpop.permute.xlu0 %3619
      %vm3653 = vcmask 523648
      %3654 = vst.msk [vmem:[#allocation3] sm:$0xff] %vm3653, %v3558
      %3655 = vst.msk [vmem:[#allocation3 + $0x10] sm:$0xff] %vm3653, %v3560
      %3656 = vst.msk [vmem:[#allocation3 + $0x20] sm:$0xff] %vm3653, %v3562
      %3657 = vst.msk [vmem:[#allocation3 + $0x30] sm:$0xff] %vm3653, %v3564
      %3658 = vst.msk [vmem:[#allocation3 + $0x40] sm:$0xff] %vm3653, %v3566
      %3659 = vst.msk [vmem:[#allocation3 + $0x50] sm:$0xff] %vm3653, %v3568
      %3660 = vst.msk [vmem:[#allocation3 + $0x60] sm:$0xff] %vm3653, %v3570
      %3661 = vst.msk [vmem:[#allocation3 + $0x70] sm:$0xff] %vm3653, %v3572
      %3662 = vst.msk [vmem:[#allocation3 + $0x80] sm:$0xff] %vm3653, %v3574
      %3663 = vst.msk [vmem:[#allocation3 + $0x90] sm:$0xff] %vm3653, %v3576
      %3664 = vst.msk [vmem:[#allocation3 + $0xa0] sm:$0xff] %vm3653, %v3578
      %3665 = vst.msk [vmem:[#allocation3 + $0xb0] sm:$0xff] %vm3653, %v3580
      %3666 = vst.msk [vmem:[#allocation3 + $0xc0] sm:$0xff] %vm3653, %v3582
      %3667 = vst.msk [vmem:[#allocation3 + $0xd0] sm:$0xff] %vm3653, %v3584
      %3668 = vst.msk [vmem:[#allocation3 + $0xe0] sm:$0xff] %vm3653, %v3586
      %3669 = vst.msk [vmem:[#allocation3 + $0xf0] sm:$0xff] %vm3653, %v3588
      %3670 = vst.msk [vmem:[#allocation3 + $0x100] sm:$0xff] %vm3653, %v3590
      %3671 = vst.msk [vmem:[#allocation3 + $0x110] sm:$0xff] %vm3653, %v3592
      %3672 = vst.msk [vmem:[#allocation3 + $0x120] sm:$0xff] %vm3653, %v3594
      %3673 = vst.msk [vmem:[#allocation3 + $0x130] sm:$0xff] %vm3653, %v3596
      %3674 = vst.msk [vmem:[#allocation3 + $0x140] sm:$0xff] %vm3653, %v3598
      %3675 = vst.msk [vmem:[#allocation3 + $0x150] sm:$0xff] %vm3653, %v3600
      %3676 = vst.msk [vmem:[#allocation3 + $0x160] sm:$0xff] %vm3653, %v3602
      %3677 = vst.msk [vmem:[#allocation3 + $0x170] sm:$0xff] %vm3653, %v3604
      %3678 = vst.msk [vmem:[#allocation3 + $0x180] sm:$0xff] %vm3653, %v3606
      %3679 = vst.msk [vmem:[#allocation3 + $0x190] sm:$0xff] %vm3653, %v3608
      %3680 = vst.msk [vmem:[#allocation3 + $0x1a0] sm:$0xff] %vm3653, %v3610
      %3681 = vst.msk [vmem:[#allocation3 + $0x1b0] sm:$0xff] %vm3653, %v3612
      %3682 = vst.msk [vmem:[#allocation3 + $0x1c0] sm:$0xff] %vm3653, %v3614
      %3683 = vst.msk [vmem:[#allocation3 + $0x1d0] sm:$0xff] %vm3653, %v3616
      %3684 = vst.msk [vmem:[#allocation3 + $0x1e0] sm:$0xff] %vm3653, %v3618
      %3685 = vst.msk [vmem:[#allocation3 + $0x1f0] sm:$0xff] %vm3653, %v3620
      %v3686 = vld [vmem:[%s2945 + $0x1] sm:$0xff]
      %v3687 = vld [vmem:[%s2945 + $0x11] sm:$0xff]
      %v3688 = vld [vmem:[%s2945 + $0x21] sm:$0xff]
      %v3689 = vld [vmem:[%s2945 + $0x31] sm:$0xff]
      %v3690 = vld [vmem:[%s2945 + $0x41] sm:$0xff]
      %v3691 = vld [vmem:[%s2945 + $0x51] sm:$0xff]
      %v3692 = vld [vmem:[%s2945 + $0x61] sm:$0xff]
      %v3693 = vld [vmem:[%s2945 + $0x71] sm:$0xff]
      %v3694 = vld [vmem:[%s2945 + $0xa1] sm:$0xff]
      %v3695 = vld [vmem:[%s2945 + $0xb1] sm:$0xff]
      %v3696 = vld [vmem:[%s2945 + $0xc1] sm:$0xff]
      %v3697 = vld [vmem:[%s2945 + $0xd1] sm:$0xff]
      %v3698 = vld [vmem:[%s2945 + $0xe1] sm:$0xff]
      %v3699 = vld [vmem:[%s2945 + $0xf1] sm:$0xff]
      %v3700 = vld [vmem:[%s2945 + $0x101] sm:$0xff]
      %v3701 = vld [vmem:[%s2945 + $0x111] sm:$0xff]
      %v3702 = vld [vmem:[%s2945 + $0x141] sm:$0xff]
      %v3703 = vld [vmem:[%s2945 + $0x151] sm:$0xff]
      %v3704 = vld [vmem:[%s2945 + $0x161] sm:$0xff]
      %v3705 = vld [vmem:[%s2945 + $0x171] sm:$0xff]
      %v3706 = vld [vmem:[%s2945 + $0x181] sm:$0xff]
      %v3707 = vld [vmem:[%s2945 + $0x191] sm:$0xff]
      %v3708 = vld [vmem:[%s2945 + $0x1a1] sm:$0xff]
      %v3709 = vld [vmem:[%s2945 + $0x1b1] sm:$0xff]
      %v3710 = vld [vmem:[%s2945 + $0x1e1] sm:$0xff]
      %v3711 = vld [vmem:[%s2945 + $0x1f1] sm:$0xff]
      %v3712 = vld [vmem:[%s2945 + $0x201] sm:$0xff]
      %v3713 = vld [vmem:[%s2945 + $0x211] sm:$0xff]
      %v3714 = vld [vmem:[%s2945 + $0x221] sm:$0xff]
      %v3715 = vld [vmem:[%s2945 + $0x231] sm:$0xff]
      %v3716 = vld [vmem:[%s2945 + $0x241] sm:$0xff]
      %v3717 = vld [vmem:[%s2945 + $0x251] sm:$0xff]
      %3750 = vrot.lane.b32.xlu0 %v3686, 64
      %v3751 = vpop.permute.xlu0 %3750
      %3752 = vrot.lane.b32.xlu0 %v3687, 64
      %v3753 = vpop.permute.xlu0 %3752
      %3754 = vrot.lane.b32.xlu0 %v3688, 64
      %v3755 = vpop.permute.xlu0 %3754
      %3756 = vrot.lane.b32.xlu0 %v3689, 64
      %v3757 = vpop.permute.xlu0 %3756
      %3758 = vrot.lane.b32.xlu0 %v3690, 64
      %v3759 = vpop.permute.xlu0 %3758
      %3760 = vrot.lane.b32.xlu0 %v3691, 64
      %v3761 = vpop.permute.xlu0 %3760
      %3762 = vrot.lane.b32.xlu0 %v3692, 64
      %v3763 = vpop.permute.xlu0 %3762
      %3764 = vrot.lane.b32.xlu0 %v3693, 64
      %v3765 = vpop.permute.xlu0 %3764
      %3766 = vrot.lane.b32.xlu0 %v3694, 64
      %v3767 = vpop.permute.xlu0 %3766
      %3768 = vrot.lane.b32.xlu0 %v3695, 64
      %v3769 = vpop.permute.xlu0 %3768
      %3770 = vrot.lane.b32.xlu0 %v3696, 64
      %v3771 = vpop.permute.xlu0 %3770
      %3772 = vrot.lane.b32.xlu0 %v3697, 64
      %v3773 = vpop.permute.xlu0 %3772
      %3774 = vrot.lane.b32.xlu0 %v3698, 64
      %v3775 = vpop.permute.xlu0 %3774
      %3776 = vrot.lane.b32.xlu0 %v3699, 64
      %v3777 = vpop.permute.xlu0 %3776
      %3778 = vrot.lane.b32.xlu0 %v3700, 64
      %v3779 = vpop.permute.xlu0 %3778
      %3780 = vrot.lane.b32.xlu0 %v3701, 64
      %v3781 = vpop.permute.xlu0 %3780
      %3782 = vrot.lane.b32.xlu0 %v3702, 64
      %v3783 = vpop.permute.xlu0 %3782
      %3784 = vrot.lane.b32.xlu0 %v3703, 64
      %v3785 = vpop.permute.xlu0 %3784
      %3786 = vrot.lane.b32.xlu0 %v3704, 64
      %v3787 = vpop.permute.xlu0 %3786
      %3788 = vrot.lane.b32.xlu0 %v3705, 64
      %v3789 = vpop.permute.xlu0 %3788
      %3790 = vrot.lane.b32.xlu0 %v3706, 64
      %v3791 = vpop.permute.xlu0 %3790
      %3792 = vrot.lane.b32.xlu0 %v3707, 64
      %v3793 = vpop.permute.xlu0 %3792
      %3794 = vrot.lane.b32.xlu0 %v3708, 64
      %v3795 = vpop.permute.xlu0 %3794
      %3796 = vrot.lane.b32.xlu0 %v3709, 64
      %v3797 = vpop.permute.xlu0 %3796
      %3798 = vrot.lane.b32.xlu0 %v3710, 64
      %v3799 = vpop.permute.xlu0 %3798
      %3800 = vrot.lane.b32.xlu0 %v3711, 64
      %v3801 = vpop.permute.xlu0 %3800
      %3802 = vrot.lane.b32.xlu0 %v3712, 64
      %v3803 = vpop.permute.xlu0 %3802
      %3804 = vrot.lane.b32.xlu0 %v3713, 64
      %v3805 = vpop.permute.xlu0 %3804
      %3806 = vrot.lane.b32.xlu0 %v3714, 64
      %v3807 = vpop.permute.xlu0 %3806
      %3808 = vrot.lane.b32.xlu0 %v3715, 64
      %v3809 = vpop.permute.xlu0 %3808
      %3810 = vrot.lane.b32.xlu0 %v3716, 64
      %v3811 = vpop.permute.xlu0 %3810
      %3812 = vrot.lane.b32.xlu0 %v3717, 64
      %v3813 = vpop.permute.xlu0 %3812
      %vm3846 = vcmask 654848
      %3847 = vst.msk [vmem:[#allocation3] sm:$0xff] %vm3846, %v3751
      %3848 = vst.msk [vmem:[#allocation3 + $0x10] sm:$0xff] %vm3846, %v3753
      %3849 = vst.msk [vmem:[#allocation3 + $0x20] sm:$0xff] %vm3846, %v3755
      %3850 = vst.msk [vmem:[#allocation3 + $0x30] sm:$0xff] %vm3846, %v3757
      %3851 = vst.msk [vmem:[#allocation3 + $0x40] sm:$0xff] %vm3846, %v3759
      %3852 = vst.msk [vmem:[#allocation3 + $0x50] sm:$0xff] %vm3846, %v3761
      %3853 = vst.msk [vmem:[#allocation3 + $0x60] sm:$0xff] %vm3846, %v3763
      %3854 = vst.msk [vmem:[#allocation3 + $0x70] sm:$0xff] %vm3846, %v3765
      %3855 = vst.msk [vmem:[#allocation3 + $0x80] sm:$0xff] %vm3846, %v3767
      %3856 = vst.msk [vmem:[#allocation3 + $0x90] sm:$0xff] %vm3846, %v3769
      %3857 = vst.msk [vmem:[#allocation3 + $0xa0] sm:$0xff] %vm3846, %v3771
      %3858 = vst.msk [vmem:[#allocation3 + $0xb0] sm:$0xff] %vm3846, %v3773
      %3859 = vst.msk [vmem:[#allocation3 + $0xc0] sm:$0xff] %vm3846, %v3775
      %3860 = vst.msk [vmem:[#allocation3 + $0xd0] sm:$0xff] %vm3846, %v3777
      %3861 = vst.msk [vmem:[#allocation3 + $0xe0] sm:$0xff] %vm3846, %v3779
      %3862 = vst.msk [vmem:[#allocation3 + $0xf0] sm:$0xff] %vm3846, %v3781
      %3863 = vst.msk [vmem:[#allocation3 + $0x100] sm:$0xff] %vm3846, %v3783
      %3864 = vst.msk [vmem:[#allocation3 + $0x110] sm:$0xff] %vm3846, %v3785
      %3865 = vst.msk [vmem:[#allocation3 + $0x120] sm:$0xff] %vm3846, %v3787
      %3866 = vst.msk [vmem:[#allocation3 + $0x130] sm:$0xff] %vm3846, %v3789
      %3867 = vst.msk [vmem:[#allocation3 + $0x140] sm:$0xff] %vm3846, %v3791
      %3868 = vst.msk [vmem:[#allocation3 + $0x150] sm:$0xff] %vm3846, %v3793
      %3869 = vst.msk [vmem:[#allocation3 + $0x160] sm:$0xff] %vm3846, %v3795
      %3870 = vst.msk [vmem:[#allocation3 + $0x170] sm:$0xff] %vm3846, %v3797
      %3871 = vst.msk [vmem:[#allocation3 + $0x180] sm:$0xff] %vm3846, %v3799
      %3872 = vst.msk [vmem:[#allocation3 + $0x190] sm:$0xff] %vm3846, %v3801
      %3873 = vst.msk [vmem:[#allocation3 + $0x1a0] sm:$0xff] %vm3846, %v3803
      %3874 = vst.msk [vmem:[#allocation3 + $0x1b0] sm:$0xff] %vm3846, %v3805
      %3875 = vst.msk [vmem:[#allocation3 + $0x1c0] sm:$0xff] %vm3846, %v3807
      %3876 = vst.msk [vmem:[#allocation3 + $0x1d0] sm:$0xff] %vm3846, %v3809
      %3877 = vst.msk [vmem:[#allocation3 + $0x1e0] sm:$0xff] %vm3846, %v3811
      %3878 = vst.msk [vmem:[#allocation3 + $0x1f0] sm:$0xff] %vm3846, %v3813
      %v3879 = vld [vmem:[%s2945 + $0x2] sm:$0xff]
      %v3880 = vld [vmem:[%s2945 + $0x12] sm:$0xff]
      %v3881 = vld [vmem:[%s2945 + $0x22] sm:$0xff]
      %v3882 = vld [vmem:[%s2945 + $0x32] sm:$0xff]
      %v3883 = vld [vmem:[%s2945 + $0x42] sm:$0xff]
      %v3884 = vld [vmem:[%s2945 + $0x52] sm:$0xff]
      %v3885 = vld [vmem:[%s2945 + $0x62] sm:$0xff]
      %v3886 = vld [vmem:[%s2945 + $0x72] sm:$0xff]
      %v3887 = vld [vmem:[%s2945 + $0xa2] sm:$0xff]
      %v3888 = vld [vmem:[%s2945 + $0xb2] sm:$0xff]
      %v3889 = vld [vmem:[%s2945 + $0xc2] sm:$0xff]
      %v3890 = vld [vmem:[%s2945 + $0xd2] sm:$0xff]
      %v3891 = vld [vmem:[%s2945 + $0xe2] sm:$0xff]
      %v3892 = vld [vmem:[%s2945 + $0xf2] sm:$0xff]
      %v3893 = vld [vmem:[%s2945 + $0x102] sm:$0xff]
      %v3894 = vld [vmem:[%s2945 + $0x112] sm:$0xff]
      %v3895 = vld [vmem:[%s2945 + $0x142] sm:$0xff]
      %v3896 = vld [vmem:[%s2945 + $0x152] sm:$0xff]
      %v3897 = vld [vmem:[%s2945 + $0x162] sm:$0xff]
      %v3898 = vld [vmem:[%s2945 + $0x172] sm:$0xff]
      %v3899 = vld [vmem:[%s2945 + $0x182] sm:$0xff]
      %v3900 = vld [vmem:[%s2945 + $0x192] sm:$0xff]
      %v3901 = vld [vmem:[%s2945 + $0x1a2] sm:$0xff]
      %v3902 = vld [vmem:[%s2945 + $0x1b2] sm:$0xff]
      %v3903 = vld [vmem:[%s2945 + $0x1e2] sm:$0xff]
      %v3904 = vld [vmem:[%s2945 + $0x1f2] sm:$0xff]
      %v3905 = vld [vmem:[%s2945 + $0x202] sm:$0xff]
      %v3906 = vld [vmem:[%s2945 + $0x212] sm:$0xff]
      %v3907 = vld [vmem:[%s2945 + $0x222] sm:$0xff]
      %v3908 = vld [vmem:[%s2945 + $0x232] sm:$0xff]
      %v3909 = vld [vmem:[%s2945 + $0x242] sm:$0xff]
      %v3910 = vld [vmem:[%s2945 + $0x252] sm:$0xff]
      %3943 = vrot.lane.b32.xlu0 %v3879, 80
      %v3944 = vpop.permute.xlu0 %3943
      %3945 = vrot.lane.b32.xlu0 %v3880, 80
      %v3946 = vpop.permute.xlu0 %3945
      %3947 = vrot.lane.b32.xlu0 %v3881, 80
      %v3948 = vpop.permute.xlu0 %3947
      %3949 = vrot.lane.b32.xlu0 %v3882, 80
      %v3950 = vpop.permute.xlu0 %3949
      %3951 = vrot.lane.b32.xlu0 %v3883, 80
      %v3952 = vpop.permute.xlu0 %3951
      %3953 = vrot.lane.b32.xlu0 %v3884, 80
      %v3954 = vpop.permute.xlu0 %3953
      %3955 = vrot.lane.b32.xlu0 %v3885, 80
      %v3956 = vpop.permute.xlu0 %3955
      %3957 = vrot.lane.b32.xlu0 %v3886, 80
      %v3958 = vpop.permute.xlu0 %3957
      %3959 = vrot.lane.b32.xlu0 %v3887, 80
      %v3960 = vpop.permute.xlu0 %3959
      %3961 = vrot.lane.b32.xlu0 %v3888, 80
      %v3962 = vpop.permute.xlu0 %3961
      %3963 = vrot.lane.b32.xlu0 %v3889, 80
      %v3964 = vpop.permute.xlu0 %3963
      %3965 = vrot.lane.b32.xlu0 %v3890, 80
      %v3966 = vpop.permute.xlu0 %3965
      %3967 = vrot.lane.b32.xlu0 %v3891, 80
      %v3968 = vpop.permute.xlu0 %3967
      %3969 = vrot.lane.b32.xlu0 %v3892, 80
      %v3970 = vpop.permute.xlu0 %3969
      %3971 = vrot.lane.b32.xlu0 %v3893, 80
      %v3972 = vpop.permute.xlu0 %3971
      %3973 = vrot.lane.b32.xlu0 %v3894, 80
      %v3974 = vpop.permute.xlu0 %3973
      %3975 = vrot.lane.b32.xlu0 %v3895, 80
      %v3976 = vpop.permute.xlu0 %3975
      %3977 = vrot.lane.b32.xlu0 %v3896, 80
      %v3978 = vpop.permute.xlu0 %3977
      %3979 = vrot.lane.b32.xlu0 %v3897, 80
      %v3980 = vpop.permute.xlu0 %3979
      %3981 = vrot.lane.b32.xlu0 %v3898, 80
      %v3982 = vpop.permute.xlu0 %3981
      %3983 = vrot.lane.b32.xlu0 %v3899, 80
      %v3984 = vpop.permute.xlu0 %3983
      %3985 = vrot.lane.b32.xlu0 %v3900, 80
      %v3986 = vpop.permute.xlu0 %3985
      %3987 = vrot.lane.b32.xlu0 %v3901, 80
      %v3988 = vpop.permute.xlu0 %3987
      %3989 = vrot.lane.b32.xlu0 %v3902, 80
      %v3990 = vpop.permute.xlu0 %3989
      %3991 = vrot.lane.b32.xlu0 %v3903, 80
      %v3992 = vpop.permute.xlu0 %3991
      %3993 = vrot.lane.b32.xlu0 %v3904, 80
      %v3994 = vpop.permute.xlu0 %3993
      %3995 = vrot.lane.b32.xlu0 %v3905, 80
      %v3996 = vpop.permute.xlu0 %3995
      %3997 = vrot.lane.b32.xlu0 %v3906, 80
      %v3998 = vpop.permute.xlu0 %3997
      %3999 = vrot.lane.b32.xlu0 %v3907, 80
      %v4000 = vpop.permute.xlu0 %3999
      %4001 = vrot.lane.b32.xlu0 %v3908, 80
      %v4002 = vpop.permute.xlu0 %4001
      %4003 = vrot.lane.b32.xlu0 %v3909, 80
      %v4004 = vpop.permute.xlu0 %4003
      %4005 = vrot.lane.b32.xlu0 %v3910, 80
      %v4006 = vpop.permute.xlu0 %4005
      %vm4039 = vcmask 786048
      %4040 = vst.msk [vmem:[#allocation3] sm:$0xff] %vm4039, %v3944
      %4041 = vst.msk [vmem:[#allocation3 + $0x10] sm:$0xff] %vm4039, %v3946
      %4042 = vst.msk [vmem:[#allocation3 + $0x20] sm:$0xff] %vm4039, %v3948
      %4043 = vst.msk [vmem:[#allocation3 + $0x30] sm:$0xff] %vm4039, %v3950
      %4044 = vst.msk [vmem:[#allocation3 + $0x40] sm:$0xff] %vm4039, %v3952
      %4045 = vst.msk [vmem:[#allocation3 + $0x50] sm:$0xff] %vm4039, %v3954
      %4046 = vst.msk [vmem:[#allocation3 + $0x60] sm:$0xff] %vm4039, %v3956
      %4047 = vst.msk [vmem:[#allocation3 + $0x70] sm:$0xff] %vm4039, %v3958
      %4048 = vst.msk [vmem:[#allocation3 + $0x80] sm:$0xff] %vm4039, %v3960
      %4049 = vst.msk [vmem:[#allocation3 + $0x90] sm:$0xff] %vm4039, %v3962
      %4050 = vst.msk [vmem:[#allocation3 + $0xa0] sm:$0xff] %vm4039, %v3964
      %4051 = vst.msk [vmem:[#allocation3 + $0xb0] sm:$0xff] %vm4039, %v3966
      %4052 = vst.msk [vmem:[#allocation3 + $0xc0] sm:$0xff] %vm4039, %v3968
      %4053 = vst.msk [vmem:[#allocation3 + $0xd0] sm:$0xff] %vm4039, %v3970
      %4054 = vst.msk [vmem:[#allocation3 + $0xe0] sm:$0xff] %vm4039, %v3972
      %4055 = vst.msk [vmem:[#allocation3 + $0xf0] sm:$0xff] %vm4039, %v3974
      %4056 = vst.msk [vmem:[#allocation3 + $0x100] sm:$0xff] %vm4039, %v3976
      %4057 = vst.msk [vmem:[#allocation3 + $0x110] sm:$0xff] %vm4039, %v3978
      %4058 = vst.msk [vmem:[#allocation3 + $0x120] sm:$0xff] %vm4039, %v3980
      %4059 = vst.msk [vmem:[#allocation3 + $0x130] sm:$0xff] %vm4039, %v3982
      %4060 = vst.msk [vmem:[#allocation3 + $0x140] sm:$0xff] %vm4039, %v3984
      %4061 = vst.msk [vmem:[#allocation3 + $0x150] sm:$0xff] %vm4039, %v3986
      %4062 = vst.msk [vmem:[#allocation3 + $0x160] sm:$0xff] %vm4039, %v3988
      %4063 = vst.msk [vmem:[#allocation3 + $0x170] sm:$0xff] %vm4039, %v3990
      %4064 = vst.msk [vmem:[#allocation3 + $0x180] sm:$0xff] %vm4039, %v3992
      %4065 = vst.msk [vmem:[#allocation3 + $0x190] sm:$0xff] %vm4039, %v3994
      %4066 = vst.msk [vmem:[#allocation3 + $0x1a0] sm:$0xff] %vm4039, %v3996
      %4067 = vst.msk [vmem:[#allocation3 + $0x1b0] sm:$0xff] %vm4039, %v3998
      %4068 = vst.msk [vmem:[#allocation3 + $0x1c0] sm:$0xff] %vm4039, %v4000
      %4069 = vst.msk [vmem:[#allocation3 + $0x1d0] sm:$0xff] %vm4039, %v4002
      %4070 = vst.msk [vmem:[#allocation3 + $0x1e0] sm:$0xff] %vm4039, %v4004
      %4071 = vst.msk [vmem:[#allocation3 + $0x1f0] sm:$0xff] %vm4039, %v4006
      %s4072 = scalar_lea.vmem [#allocation2], 32
      %v4073 = vld [vmem:[%s4072] sm:$0xff]
      %v4074 = vld [vmem:[%s4072 + $0x10] sm:$0xff]
      %v4075 = vld [vmem:[%s4072 + $0x20] sm:$0xff]
      %v4076 = vld [vmem:[%s4072 + $0x30] sm:$0xff]
      %v4077 = vld [vmem:[%s4072 + $0x40] sm:$0xff]
      %v4078 = vld [vmem:[%s4072 + $0x50] sm:$0xff]
      %v4079 = vld [vmem:[%s4072 + $0x60] sm:$0xff]
      %v4080 = vld [vmem:[%s4072 + $0x70] sm:$0xff]
      %v4081 = vld [vmem:[%s4072 + $0xa0] sm:$0xff]
      %v4082 = vld [vmem:[%s4072 + $0xb0] sm:$0xff]
      %v4083 = vld [vmem:[%s4072 + $0xc0] sm:$0xff]
      %v4084 = vld [vmem:[%s4072 + $0xd0] sm:$0xff]
      %v4085 = vld [vmem:[%s4072 + $0xe0] sm:$0xff]
      %v4086 = vld [vmem:[%s4072 + $0xf0] sm:$0xff]
      %v4087 = vld [vmem:[%s4072 + $0x100] sm:$0xff]
      %v4088 = vld [vmem:[%s4072 + $0x110] sm:$0xff]
      %v4089 = vld [vmem:[%s4072 + $0x140] sm:$0xff]
      %v4090 = vld [vmem:[%s4072 + $0x150] sm:$0xff]
      %v4091 = vld [vmem:[%s4072 + $0x160] sm:$0xff]
      %v4092 = vld [vmem:[%s4072 + $0x170] sm:$0xff]
      %v4093 = vld [vmem:[%s4072 + $0x180] sm:$0xff]
      %v4094 = vld [vmem:[%s4072 + $0x190] sm:$0xff]
      %v4095 = vld [vmem:[%s4072 + $0x1a0] sm:$0xff]
      %v4096 = vld [vmem:[%s4072 + $0x1b0] sm:$0xff]
      %v4097 = vld [vmem:[%s4072 + $0x1e0] sm:$0xff]
      %v4098 = vld [vmem:[%s4072 + $0x1f0] sm:$0xff]
      %v4099 = vld [vmem:[%s4072 + $0x200] sm:$0xff]
      %v4100 = vld [vmem:[%s4072 + $0x210] sm:$0xff]
      %v4101 = vld [vmem:[%s4072 + $0x220] sm:$0xff]
      %v4102 = vld [vmem:[%s4072 + $0x230] sm:$0xff]
      %v4103 = vld [vmem:[%s4072 + $0x240] sm:$0xff]
      %v4104 = vld [vmem:[%s4072 + $0x250] sm:$0xff]
      %4137 = vrot.lane.b32.xlu0 %v4073, 96
      %v4138 = vpop.permute.xlu0 %4137
      %4139 = vrot.lane.b32.xlu0 %v4074, 96
      %v4140 = vpop.permute.xlu0 %4139
      %4141 = vrot.lane.b32.xlu0 %v4075, 96
      %v4142 = vpop.permute.xlu0 %4141
      %4143 = vrot.lane.b32.xlu0 %v4076, 96
      %v4144 = vpop.permute.xlu0 %4143
      %4145 = vrot.lane.b32.xlu0 %v4077, 96
      %v4146 = vpop.permute.xlu0 %4145
      %4147 = vrot.lane.b32.xlu0 %v4078, 96
      %v4148 = vpop.permute.xlu0 %4147
      %4149 = vrot.lane.b32.xlu0 %v4079, 96
      %v4150 = vpop.permute.xlu0 %4149
      %4151 = vrot.lane.b32.xlu0 %v4080, 96
      %v4152 = vpop.permute.xlu0 %4151
      %4153 = vrot.lane.b32.xlu0 %v4081, 96
      %v4154 = vpop.permute.xlu0 %4153
      %4155 = vrot.lane.b32.xlu0 %v4082, 96
      %v4156 = vpop.permute.xlu0 %4155
      %4157 = vrot.lane.b32.xlu0 %v4083, 96
      %v4158 = vpop.permute.xlu0 %4157
      %4159 = vrot.lane.b32.xlu0 %v4084, 96
      %v4160 = vpop.permute.xlu0 %4159
      %4161 = vrot.lane.b32.xlu0 %v4085, 96
      %v4162 = vpop.permute.xlu0 %4161
      %4163 = vrot.lane.b32.xlu0 %v4086, 96
      %v4164 = vpop.permute.xlu0 %4163
      %4165 = vrot.lane.b32.xlu0 %v4087, 96
      %v4166 = vpop.permute.xlu0 %4165
      %4167 = vrot.lane.b32.xlu0 %v4088, 96
      %v4168 = vpop.permute.xlu0 %4167
      %4169 = vrot.lane.b32.xlu0 %v4089, 96
      %v4170 = vpop.permute.xlu0 %4169
      %4171 = vrot.lane.b32.xlu0 %v4090, 96
      %v4172 = vpop.permute.xlu0 %4171
      %4173 = vrot.lane.b32.xlu0 %v4091, 96
      %v4174 = vpop.permute.xlu0 %4173
      %4175 = vrot.lane.b32.xlu0 %v4092, 96
      %v4176 = vpop.permute.xlu0 %4175
      %4177 = vrot.lane.b32.xlu0 %v4093, 96
      %v4178 = vpop.permute.xlu0 %4177
      %4179 = vrot.lane.b32.xlu0 %v4094, 96
      %v4180 = vpop.permute.xlu0 %4179
      %4181 = vrot.lane.b32.xlu0 %v4095, 96
      %v4182 = vpop.permute.xlu0 %4181
      %4183 = vrot.lane.b32.xlu0 %v4096, 96
      %v4184 = vpop.permute.xlu0 %4183
      %4185 = vrot.lane.b32.xlu0 %v4097, 96
      %v4186 = vpop.permute.xlu0 %4185
      %4187 = vrot.lane.b32.xlu0 %v4098, 96
      %v4188 = vpop.permute.xlu0 %4187
      %4189 = vrot.lane.b32.xlu0 %v4099, 96
      %v4190 = vpop.permute.xlu0 %4189
      %4191 = vrot.lane.b32.xlu0 %v4100, 96
      %v4192 = vpop.permute.xlu0 %4191
      %4193 = vrot.lane.b32.xlu0 %v4101, 96
      %v4194 = vpop.permute.xlu0 %4193
      %4195 = vrot.lane.b32.xlu0 %v4102, 96
      %v4196 = vpop.permute.xlu0 %4195
      %4197 = vrot.lane.b32.xlu0 %v4103, 96
      %v4198 = vpop.permute.xlu0 %4197
      %4199 = vrot.lane.b32.xlu0 %v4104, 96
      %v4200 = vpop.permute.xlu0 %4199
      %vm4233 = vcmask 917248
      %4234 = vst.msk [vmem:[#allocation3] sm:$0xff] %vm4233, %v4138
      %4235 = vst.msk [vmem:[#allocation3 + $0x10] sm:$0xff] %vm4233, %v4140
      %4236 = vst.msk [vmem:[#allocation3 + $0x20] sm:$0xff] %vm4233, %v4142
      %4237 = vst.msk [vmem:[#allocation3 + $0x30] sm:$0xff] %vm4233, %v4144
      %4238 = vst.msk [vmem:[#allocation3 + $0x40] sm:$0xff] %vm4233, %v4146
      %4239 = vst.msk [vmem:[#allocation3 + $0x50] sm:$0xff] %vm4233, %v4148
      %4240 = vst.msk [vmem:[#allocation3 + $0x60] sm:$0xff] %vm4233, %v4150
      %4241 = vst.msk [vmem:[#allocation3 + $0x70] sm:$0xff] %vm4233, %v4152
      %4242 = vst.msk [vmem:[#allocation3 + $0x80] sm:$0xff] %vm4233, %v4154
      %4243 = vst.msk [vmem:[#allocation3 + $0x90] sm:$0xff] %vm4233, %v4156
      %4244 = vst.msk [vmem:[#allocation3 + $0xa0] sm:$0xff] %vm4233, %v4158
      %4245 = vst.msk [vmem:[#allocation3 + $0xb0] sm:$0xff] %vm4233, %v4160
      %4246 = vst.msk [vmem:[#allocation3 + $0xc0] sm:$0xff] %vm4233, %v4162
      %4247 = vst.msk [vmem:[#allocation3 + $0xd0] sm:$0xff] %vm4233, %v4164
      %4248 = vst.msk [vmem:[#allocation3 + $0xe0] sm:$0xff] %vm4233, %v4166
      %4249 = vst.msk [vmem:[#allocation3 + $0xf0] sm:$0xff] %vm4233, %v4168
      %4250 = vst.msk [vmem:[#allocation3 + $0x100] sm:$0xff] %vm4233, %v4170
      %4251 = vst.msk [vmem:[#allocation3 + $0x110] sm:$0xff] %vm4233, %v4172
      %4252 = vst.msk [vmem:[#allocation3 + $0x120] sm:$0xff] %vm4233, %v4174
      %4253 = vst.msk [vmem:[#allocation3 + $0x130] sm:$0xff] %vm4233, %v4176
      %4254 = vst.msk [vmem:[#allocation3 + $0x140] sm:$0xff] %vm4233, %v4178
      %4255 = vst.msk [vmem:[#allocation3 + $0x150] sm:$0xff] %vm4233, %v4180
      %4256 = vst.msk [vmem:[#allocation3 + $0x160] sm:$0xff] %vm4233, %v4182
      %4257 = vst.msk [vmem:[#allocation3 + $0x170] sm:$0xff] %vm4233, %v4184
      %4258 = vst.msk [vmem:[#allocation3 + $0x180] sm:$0xff] %vm4233, %v4186
      %4259 = vst.msk [vmem:[#allocation3 + $0x190] sm:$0xff] %vm4233, %v4188
      %4260 = vst.msk [vmem:[#allocation3 + $0x1a0] sm:$0xff] %vm4233, %v4190
      %4261 = vst.msk [vmem:[#allocation3 + $0x1b0] sm:$0xff] %vm4233, %v4192
      %4262 = vst.msk [vmem:[#allocation3 + $0x1c0] sm:$0xff] %vm4233, %v4194
      %4263 = vst.msk [vmem:[#allocation3 + $0x1d0] sm:$0xff] %vm4233, %v4196
      %4264 = vst.msk [vmem:[#allocation3 + $0x1e0] sm:$0xff] %vm4233, %v4198
      %4265 = vst.msk [vmem:[#allocation3 + $0x1f0] sm:$0xff] %vm4233, %v4200
      %v4266 = vld [vmem:[%s4072 + $0x1] sm:$0xff]
      %v4267 = vld [vmem:[%s4072 + $0x11] sm:$0xff]
      %v4268 = vld [vmem:[%s4072 + $0x21] sm:$0xff]
      %v4269 = vld [vmem:[%s4072 + $0x31] sm:$0xff]
      %v4270 = vld [vmem:[%s4072 + $0x41] sm:$0xff]
      %v4271 = vld [vmem:[%s4072 + $0x51] sm:$0xff]
      %v4272 = vld [vmem:[%s4072 + $0x61] sm:$0xff]
      %v4273 = vld [vmem:[%s4072 + $0x71] sm:$0xff]
      %v4274 = vld [vmem:[%s4072 + $0xa1] sm:$0xff]
      %v4275 = vld [vmem:[%s4072 + $0xb1] sm:$0xff]
      %v4276 = vld [vmem:[%s4072 + $0xc1] sm:$0xff]
      %v4277 = vld [vmem:[%s4072 + $0xd1] sm:$0xff]
      %v4278 = vld [vmem:[%s4072 + $0xe1] sm:$0xff]
      %v4279 = vld [vmem:[%s4072 + $0xf1] sm:$0xff]
      %v4280 = vld [vmem:[%s4072 + $0x101] sm:$0xff]
      %v4281 = vld [vmem:[%s4072 + $0x111] sm:$0xff]
      %v4282 = vld [vmem:[%s4072 + $0x141] sm:$0xff]
      %v4283 = vld [vmem:[%s4072 + $0x151] sm:$0xff]
      %v4284 = vld [vmem:[%s4072 + $0x161] sm:$0xff]
      %v4285 = vld [vmem:[%s4072 + $0x171] sm:$0xff]
      %v4286 = vld [vmem:[%s4072 + $0x181] sm:$0xff]
      %v4287 = vld [vmem:[%s4072 + $0x191] sm:$0xff]
      %v4288 = vld [vmem:[%s4072 + $0x1a1] sm:$0xff]
      %v4289 = vld [vmem:[%s4072 + $0x1b1] sm:$0xff]
      %v4290 = vld [vmem:[%s4072 + $0x1e1] sm:$0xff]
      %v4291 = vld [vmem:[%s4072 + $0x1f1] sm:$0xff]
      %v4292 = vld [vmem:[%s4072 + $0x201] sm:$0xff]
      %v4293 = vld [vmem:[%s4072 + $0x211] sm:$0xff]
      %v4294 = vld [vmem:[%s4072 + $0x221] sm:$0xff]
      %v4295 = vld [vmem:[%s4072 + $0x231] sm:$0xff]
      %v4296 = vld [vmem:[%s4072 + $0x241] sm:$0xff]
      %v4297 = vld [vmem:[%s4072 + $0x251] sm:$0xff]
      %4330 = vrot.lane.b32.xlu0 %v4266, 112
      %v4331 = vpop.permute.xlu0 %4330
      %4332 = vrot.lane.b32.xlu0 %v4267, 112
      %v4333 = vpop.permute.xlu0 %4332
      %4334 = vrot.lane.b32.xlu0 %v4268, 112
      %v4335 = vpop.permute.xlu0 %4334
      %4336 = vrot.lane.b32.xlu0 %v4269, 112
      %v4337 = vpop.permute.xlu0 %4336
      %4338 = vrot.lane.b32.xlu0 %v4270, 112
      %v4339 = vpop.permute.xlu0 %4338
      %4340 = vrot.lane.b32.xlu0 %v4271, 112
      %v4341 = vpop.permute.xlu0 %4340
      %4342 = vrot.lane.b32.xlu0 %v4272, 112
      %v4343 = vpop.permute.xlu0 %4342
      %4344 = vrot.lane.b32.xlu0 %v4273, 112
      %v4345 = vpop.permute.xlu0 %4344
      %4346 = vrot.lane.b32.xlu0 %v4274, 112
      %v4347 = vpop.permute.xlu0 %4346
      %4348 = vrot.lane.b32.xlu0 %v4275, 112
      %v4349 = vpop.permute.xlu0 %4348
      %4350 = vrot.lane.b32.xlu0 %v4276, 112
      %v4351 = vpop.permute.xlu0 %4350
      %4352 = vrot.lane.b32.xlu0 %v4277, 112
      %v4353 = vpop.permute.xlu0 %4352
      %4354 = vrot.lane.b32.xlu0 %v4278, 112
      %v4355 = vpop.permute.xlu0 %4354
      %4356 = vrot.lane.b32.xlu0 %v4279, 112
      %v4357 = vpop.permute.xlu0 %4356
      %4358 = vrot.lane.b32.xlu0 %v4280, 112
      %v4359 = vpop.permute.xlu0 %4358
      %4360 = vrot.lane.b32.xlu0 %v4281, 112
      %v4361 = vpop.permute.xlu0 %4360
      %4362 = vrot.lane.b32.xlu0 %v4282, 112
      %v4363 = vpop.permute.xlu0 %4362
      %4364 = vrot.lane.b32.xlu0 %v4283, 112
      %v4365 = vpop.permute.xlu0 %4364
      %4366 = vrot.lane.b32.xlu0 %v4284, 112
      %v4367 = vpop.permute.xlu0 %4366
      %4368 = vrot.lane.b32.xlu0 %v4285, 112
      %v4369 = vpop.permute.xlu0 %4368
      %4370 = vrot.lane.b32.xlu0 %v4286, 112
      %v4371 = vpop.permute.xlu0 %4370
      %4372 = vrot.lane.b32.xlu0 %v4287, 112
      %v4373 = vpop.permute.xlu0 %4372
      %4374 = vrot.lane.b32.xlu0 %v4288, 112
      %v4375 = vpop.permute.xlu0 %4374
      %4376 = vrot.lane.b32.xlu0 %v4289, 112
      %v4377 = vpop.permute.xlu0 %4376
      %4378 = vrot.lane.b32.xlu0 %v4290, 112
      %v4379 = vpop.permute.xlu0 %4378
      %4380 = vrot.lane.b32.xlu0 %v4291, 112
      %v4381 = vpop.permute.xlu0 %4380
      %4382 = vrot.lane.b32.xlu0 %v4292, 112
      %v4383 = vpop.permute.xlu0 %4382
      %4384 = vrot.lane.b32.xlu0 %v4293, 112
      %v4385 = vpop.permute.xlu0 %4384
      %4386 = vrot.lane.b32.xlu0 %v4294, 112
      %v4387 = vpop.permute.xlu0 %4386
      %4388 = vrot.lane.b32.xlu0 %v4295, 112
      %v4389 = vpop.permute.xlu0 %4388
      %4390 = vrot.lane.b32.xlu0 %v4296, 112
      %v4391 = vpop.permute.xlu0 %4390
      %4392 = vrot.lane.b32.xlu0 %v4297, 112
      %v4393 = vpop.permute.xlu0 %4392
      %vm4426 = vcmask 1048448
      %4427 = vst.msk [vmem:[#allocation3] sm:$0xff] %vm4426, %v4331
      %4428 = vst.msk [vmem:[#allocation3 + $0x10] sm:$0xff] %vm4426, %v4333
      %4429 = vst.msk [vmem:[#allocation3 + $0x20] sm:$0xff] %vm4426, %v4335
      %4430 = vst.msk [vmem:[#allocation3 + $0x30] sm:$0xff] %vm4426, %v4337
      %4431 = vst.msk [vmem:[#allocation3 + $0x40] sm:$0xff] %vm4426, %v4339
      %4432 = vst.msk [vmem:[#allocation3 + $0x50] sm:$0xff] %vm4426, %v4341
      %4433 = vst.msk [vmem:[#allocation3 + $0x60] sm:$0xff] %vm4426, %v4343
      %4434 = vst.msk [vmem:[#allocation3 + $0x70] sm:$0xff] %vm4426, %v4345
      %4435 = vst.msk [vmem:[#allocation3 + $0x80] sm:$0xff] %vm4426, %v4347
      %4436 = vst.msk [vmem:[#allocation3 + $0x90] sm:$0xff] %vm4426, %v4349
      %4437 = vst.msk [vmem:[#allocation3 + $0xa0] sm:$0xff] %vm4426, %v4351
      %4438 = vst.msk [vmem:[#allocation3 + $0xb0] sm:$0xff] %vm4426, %v4353
      %4439 = vst.msk [vmem:[#allocation3 + $0xc0] sm:$0xff] %vm4426, %v4355
      %4440 = vst.msk [vmem:[#allocation3 + $0xd0] sm:$0xff] %vm4426, %v4357
      %4441 = vst.msk [vmem:[#allocation3 + $0xe0] sm:$0xff] %vm4426, %v4359
      %4442 = vst.msk [vmem:[#allocation3 + $0xf0] sm:$0xff] %vm4426, %v4361
      %4443 = vst.msk [vmem:[#allocation3 + $0x100] sm:$0xff] %vm4426, %v4363
      %4444 = vst.msk [vmem:[#allocation3 + $0x110] sm:$0xff] %vm4426, %v4365
      %4445 = vst.msk [vmem:[#allocation3 + $0x120] sm:$0xff] %vm4426, %v4367
      %4446 = vst.msk [vmem:[#allocation3 + $0x130] sm:$0xff] %vm4426, %v4369
      %4447 = vst.msk [vmem:[#allocation3 + $0x140] sm:$0xff] %vm4426, %v4371
      %4448 = vst.msk [vmem:[#allocation3 + $0x150] sm:$0xff] %vm4426, %v4373
      %4449 = vst.msk [vmem:[#allocation3 + $0x160] sm:$0xff] %vm4426, %v4375
      %4450 = vst.msk [vmem:[#allocation3 + $0x170] sm:$0xff] %vm4426, %v4377
      %4451 = vst.msk [vmem:[#allocation3 + $0x180] sm:$0xff] %vm4426, %v4379
      %4452 = vst.msk [vmem:[#allocation3 + $0x190] sm:$0xff] %vm4426, %v4381
      %4453 = vst.msk [vmem:[#allocation3 + $0x1a0] sm:$0xff] %vm4426, %v4383
      %4454 = vst.msk [vmem:[#allocation3 + $0x1b0] sm:$0xff] %vm4426, %v4385
      %4455 = vst.msk [vmem:[#allocation3 + $0x1c0] sm:$0xff] %vm4426, %v4387
      %4456 = vst.msk [vmem:[#allocation3 + $0x1d0] sm:$0xff] %vm4426, %v4389
      %4457 = vst.msk [vmem:[#allocation3 + $0x1e0] sm:$0xff] %vm4426, %v4391
      %4458 = vst.msk [vmem:[#allocation3 + $0x1f0] sm:$0xff] %vm4426, %v4393
      %v4459 = vld [vmem:[%s4072 + $0x2] sm:$0xff]
      %v4460 = vld [vmem:[%s4072 + $0x12] sm:$0xff]
      %v4461 = vld [vmem:[%s4072 + $0x22] sm:$0xff]
      %v4462 = vld [vmem:[%s4072 + $0x32] sm:$0xff]
      %v4463 = vld [vmem:[%s4072 + $0x42] sm:$0xff]
      %v4464 = vld [vmem:[%s4072 + $0x52] sm:$0xff]
      %v4465 = vld [vmem:[%s4072 + $0x62] sm:$0xff]
      %v4466 = vld [vmem:[%s4072 + $0x72] sm:$0xff]
      %v4467 = vld [vmem:[%s4072 + $0xa2] sm:$0xff]
      %v4468 = vld [vmem:[%s4072 + $0xb2] sm:$0xff]
      %v4469 = vld [vmem:[%s4072 + $0xc2] sm:$0xff]
      %v4470 = vld [vmem:[%s4072 + $0xd2] sm:$0xff]
      %v4471 = vld [vmem:[%s4072 + $0xe2] sm:$0xff]
      %v4472 = vld [vmem:[%s4072 + $0xf2] sm:$0xff]
      %v4473 = vld [vmem:[%s4072 + $0x102] sm:$0xff]
      %v4474 = vld [vmem:[%s4072 + $0x112] sm:$0xff]
      %v4475 = vld [vmem:[%s4072 + $0x142] sm:$0xff]
      %v4476 = vld [vmem:[%s4072 + $0x152] sm:$0xff]
      %v4477 = vld [vmem:[%s4072 + $0x162] sm:$0xff]
      %v4478 = vld [vmem:[%s4072 + $0x172] sm:$0xff]
      %v4479 = vld [vmem:[%s4072 + $0x182] sm:$0xff]
      %v4480 = vld [vmem:[%s4072 + $0x192] sm:$0xff]
      %v4481 = vld [vmem:[%s4072 + $0x1a2] sm:$0xff]
      %v4482 = vld [vmem:[%s4072 + $0x1b2] sm:$0xff]
      %v4483 = vld [vmem:[%s4072 + $0x1e2] sm:$0xff]
      %v4484 = vld [vmem:[%s4072 + $0x1f2] sm:$0xff]
      %v4485 = vld [vmem:[%s4072 + $0x202] sm:$0xff]
      %v4486 = vld [vmem:[%s4072 + $0x212] sm:$0xff]
      %v4487 = vld [vmem:[%s4072 + $0x222] sm:$0xff]
      %v4488 = vld [vmem:[%s4072 + $0x232] sm:$0xff]
      %v4489 = vld [vmem:[%s4072 + $0x242] sm:$0xff]
      %v4490 = vld [vmem:[%s4072 + $0x252] sm:$0xff]
      %4491 = vst.msk [vmem:[#allocation3 + $0x8] sm:$0xff] %vm2926, %v4459
      %4492 = vst.msk [vmem:[#allocation3 + $0x18] sm:$0xff] %vm2926, %v4460
      %4493 = vst.msk [vmem:[#allocation3 + $0x28] sm:$0xff] %vm2926, %v4461
      %4494 = vst.msk [vmem:[#allocation3 + $0x38] sm:$0xff] %vm2926, %v4462
      %4495 = vst.msk [vmem:[#allocation3 + $0x48] sm:$0xff] %vm2926, %v4463
      %4496 = vst.msk [vmem:[#allocation3 + $0x58] sm:$0xff] %vm2926, %v4464
      %4497 = vst.msk [vmem:[#allocation3 + $0x68] sm:$0xff] %vm2926, %v4465
      %4498 = vst.msk [vmem:[#allocation3 + $0x78] sm:$0xff] %vm2926, %v4466
      %4499 = vst.msk [vmem:[#allocation3 + $0x88] sm:$0xff] %vm2926, %v4467
      %4500 = vst.msk [vmem:[#allocation3 + $0x98] sm:$0xff] %vm2926, %v4468
      %4501 = vst.msk [vmem:[#allocation3 + $0xa8] sm:$0xff] %vm2926, %v4469
      %4502 = vst.msk [vmem:[#allocation3 + $0xb8] sm:$0xff] %vm2926, %v4470
      %4503 = vst.msk [vmem:[#allocation3 + $0xc8] sm:$0xff] %vm2926, %v4471
      %4504 = vst.msk [vmem:[#allocation3 + $0xd8] sm:$0xff] %vm2926, %v4472
      %4505 = vst.msk [vmem:[#allocation3 + $0xe8] sm:$0xff] %vm2926, %v4473
      %4506 = vst.msk [vmem:[#allocation3 + $0xf8] sm:$0xff] %vm2926, %v4474
      %4507 = vst.msk [vmem:[#allocation3 + $0x108] sm:$0xff] %vm2926, %v4475
      %4508 = vst.msk [vmem:[#allocation3 + $0x118] sm:$0xff] %vm2926, %v4476
      %4509 = vst.msk [vmem:[#allocation3 + $0x128] sm:$0xff] %vm2926, %v4477
      %4510 = vst.msk [vmem:[#allocation3 + $0x138] sm:$0xff] %vm2926, %v4478
      %4511 = vst.msk [vmem:[#allocation3 + $0x148] sm:$0xff] %vm2926, %v4479
      %4512 = vst.msk [vmem:[#allocation3 + $0x158] sm:$0xff] %vm2926, %v4480
      %4513 = vst.msk [vmem:[#allocation3 + $0x168] sm:$0xff] %vm2926, %v4481
      %4514 = vst.msk [vmem:[#allocation3 + $0x178] sm:$0xff] %vm2926, %v4482
      %4515 = vst.msk [vmem:[#allocation3 + $0x188] sm:$0xff] %vm2926, %v4483
      %4516 = vst.msk [vmem:[#allocation3 + $0x198] sm:$0xff] %vm2926, %v4484
      %4517 = vst.msk [vmem:[#allocation3 + $0x1a8] sm:$0xff] %vm2926, %v4485
      %4518 = vst.msk [vmem:[#allocation3 + $0x1b8] sm:$0xff] %vm2926, %v4486
      %4519 = vst.msk [vmem:[#allocation3 + $0x1c8] sm:$0xff] %vm2926, %v4487
      %4520 = vst.msk [vmem:[#allocation3 + $0x1d8] sm:$0xff] %vm2926, %v4488
      %4521 = vst.msk [vmem:[#allocation3 + $0x1e8] sm:$0xff] %vm2926, %v4489
      %4522 = vst.msk [vmem:[#allocation3 + $0x1f8] sm:$0xff] %vm2926, %v4490
      %v4523 = vld [vmem:[#allocation3] sm:$0xff]
      %v4524 = vld [vmem:[#allocation3 + $0x8] sm:$0xff]
      %v4525 = vld [vmem:[#allocation3 + $0x10] sm:$0xff]
      %v4526 = vld [vmem:[#allocation3 + $0x18] sm:$0xff]
      %v4527 = vld [vmem:[#allocation3 + $0x20] sm:$0xff]
      %v4528 = vld [vmem:[#allocation3 + $0x28] sm:$0xff]
      %v4529 = vld [vmem:[#allocation3 + $0x30] sm:$0xff]
      %v4530 = vld [vmem:[#allocation3 + $0x38] sm:$0xff]
      %v4531 = vld [vmem:[#allocation3 + $0x40] sm:$0xff]
      %v4532 = vld [vmem:[#allocation3 + $0x48] sm:$0xff]
      %v4533 = vld [vmem:[#allocation3 + $0x50] sm:$0xff]
      %v4534 = vld [vmem:[#allocation3 + $0x58] sm:$0xff]
      %v4535 = vld [vmem:[#allocation3 + $0x60] sm:$0xff]
      %v4536 = vld [vmem:[#allocation3 + $0x68] sm:$0xff]
      %v4537 = vld [vmem:[#allocation3 + $0x70] sm:$0xff]
      %v4538 = vld [vmem:[#allocation3 + $0x78] sm:$0xff]
      %v4539 = vld [vmem:[#allocation3 + $0x80] sm:$0xff]
      %v4540 = vld [vmem:[#allocation3 + $0x88] sm:$0xff]
      %v4541 = vld [vmem:[#allocation3 + $0x90] sm:$0xff]
      %v4542 = vld [vmem:[#allocation3 + $0x98] sm:$0xff]
      %v4543 = vld [vmem:[#allocation3 + $0xa0] sm:$0xff]
      %v4544 = vld [vmem:[#allocation3 + $0xa8] sm:$0xff]
      %v4545 = vld [vmem:[#allocation3 + $0xb0] sm:$0xff]
      %v4546 = vld [vmem:[#allocation3 + $0xb8] sm:$0xff]
      %v4547 = vld [vmem:[#allocation3 + $0xc0] sm:$0xff]
      %v4548 = vld [vmem:[#allocation3 + $0xc8] sm:$0xff]
      %v4549 = vld [vmem:[#allocation3 + $0xd0] sm:$0xff]
      %v4550 = vld [vmem:[#allocation3 + $0xd8] sm:$0xff]
      %v4551 = vld [vmem:[#allocation3 + $0xe0] sm:$0xff]
      %v4552 = vld [vmem:[#allocation3 + $0xe8] sm:$0xff]
      %v4553 = vld [vmem:[#allocation3 + $0xf0] sm:$0xff]
      %v4554 = vld [vmem:[#allocation3 + $0xf8] sm:$0xff]
      %v4555 = vld [vmem:[#allocation3 + $0x100] sm:$0xff]
      %v4556 = vld [vmem:[#allocation3 + $0x108] sm:$0xff]
      %v4557 = vld [vmem:[#allocation3 + $0x110] sm:$0xff]
      %v4558 = vld [vmem:[#allocation3 + $0x118] sm:$0xff]
      %v4559 = vld [vmem:[#allocation3 + $0x120] sm:$0xff]
      %v4560 = vld [vmem:[#allocation3 + $0x128] sm:$0xff]
      %v4561 = vld [vmem:[#allocation3 + $0x130] sm:$0xff]
      %v4562 = vld [vmem:[#allocation3 + $0x138] sm:$0xff]
      %v4563 = vld [vmem:[#allocation3 + $0x140] sm:$0xff]
      %v4564 = vld [vmem:[#allocation3 + $0x148] sm:$0xff]
      %v4565 = vld [vmem:[#allocation3 + $0x150] sm:$0xff]
      %v4566 = vld [vmem:[#allocation3 + $0x158] sm:$0xff]
      %v4567 = vld [vmem:[#allocation3 + $0x160] sm:$0xff]
      %v4568 = vld [vmem:[#allocation3 + $0x168] sm:$0xff]
      %v4569 = vld [vmem:[#allocation3 + $0x170] sm:$0xff]
      %v4570 = vld [vmem:[#allocation3 + $0x178] sm:$0xff]
      %v4571 = vld [vmem:[#allocation3 + $0x180] sm:$0xff]
      %v4572 = vld [vmem:[#allocation3 + $0x188] sm:$0xff]
      %v4573 = vld [vmem:[#allocation3 + $0x190] sm:$0xff]
      %v4574 = vld [vmem:[#allocation3 + $0x198] sm:$0xff]
      %v4575 = vld [vmem:[#allocation3 + $0x1a0] sm:$0xff]
      %v4576 = vld [vmem:[#allocation3 + $0x1a8] sm:$0xff]
      %v4577 = vld [vmem:[#allocation3 + $0x1b0] sm:$0xff]
      %v4578 = vld [vmem:[#allocation3 + $0x1b8] sm:$0xff]
      %v4579 = vld [vmem:[#allocation3 + $0x1c0] sm:$0xff]
      %v4580 = vld [vmem:[#allocation3 + $0x1c8] sm:$0xff]
      %v4581 = vld [vmem:[#allocation3 + $0x1d0] sm:$0xff]
      %v4582 = vld [vmem:[#allocation3 + $0x1d8] sm:$0xff]
      %v4583 = vld [vmem:[#allocation3 + $0x1e0] sm:$0xff]
      %v4584 = vld [vmem:[#allocation3 + $0x1e8] sm:$0xff]
      %v4585 = vld [vmem:[#allocation3 + $0x1f0] sm:$0xff]
      %v4586 = vld [vmem:[#allocation3 + $0x1f8] sm:$0xff]
      %v4587 = vld [vmem:[%s3] sm:$0xff]
      %v4588 = vld [vmem:[%s3 + $0x8] sm:$0xff]
      %v4589 = vld [vmem:[%s3 + $0x10] sm:$0xff]
      %v4590 = vld [vmem:[%s3 + $0x18] sm:$0xff]
      %v4591 = vld [vmem:[%s3 + $0x20] sm:$0xff]
      %v4592 = vld [vmem:[%s3 + $0x28] sm:$0xff]
      %v4593 = vld [vmem:[%s3 + $0x30] sm:$0xff]
      %v4594 = vld [vmem:[%s3 + $0x38] sm:$0xff]
      %v4595 = vld [vmem:[%s3 + $0x40] sm:$0xff]
      %v4596 = vld [vmem:[%s3 + $0x48] sm:$0xff]
      %v4597 = vld [vmem:[%s3 + $0x50] sm:$0xff]
      %v4598 = vld [vmem:[%s3 + $0x58] sm:$0xff]
      %v4599 = vld [vmem:[%s3 + $0x60] sm:$0xff]
      %v4600 = vld [vmem:[%s3 + $0x68] sm:$0xff]
      %v4601 = vld [vmem:[%s3 + $0x70] sm:$0xff]
      %v4602 = vld [vmem:[%s3 + $0x78] sm:$0xff]
      %v4603 = vld [vmem:[%s3 + $0x80] sm:$0xff]
      %v4604 = vld [vmem:[%s3 + $0x88] sm:$0xff]
      %v4605 = vld [vmem:[%s4] sm:$0x1]
      %v4607 = vlaneseq
      %v4608 = vshrl.u32 %v4607, 7
      %v4609 = vsub.s32 0, %v4608
      %v4610 = vrot.slane %v4605, %v4609
      %v4613 = vsel %vm2926, %v4524, 0
      %v4616 = vsel %vm2926, %v4526, 0
      %v4619 = vsel %vm2926, %v4528, 0
      %v4622 = vsel %vm2926, %v4530, 0
      %v4625 = vsel %vm2926, %v4532, 0
      %v4628 = vsel %vm2926, %v4534, 0
      %v4631 = vsel %vm2926, %v4536, 0
      %v4634 = vsel %vm2926, %v4538, 0
      %v4637 = vsel %vm2926, %v4540, 0
      %v4640 = vsel %vm2926, %v4542, 0
      %v4643 = vsel %vm2926, %v4544, 0
      %v4646 = vsel %vm2926, %v4546, 0
      %v4649 = vsel %vm2926, %v4548, 0
      %v4652 = vsel %vm2926, %v4550, 0
      %v4655 = vsel %vm2926, %v4552, 0
      %v4658 = vsel %vm2926, %v4554, 0
      %v4661 = vsel %vm2926, %v4556, 0
      %v4664 = vsel %vm2926, %v4558, 0
      %v4667 = vsel %vm2926, %v4560, 0
      %v4670 = vsel %vm2926, %v4562, 0
      %v4673 = vsel %vm2926, %v4564, 0
      %v4676 = vsel %vm2926, %v4566, 0
      %v4679 = vsel %vm2926, %v4568, 0
      %v4682 = vsel %vm2926, %v4570, 0
      %v4685 = vsel %vm2926, %v4572, 0
      %v4688 = vsel %vm2926, %v4574, 0
      %v4691 = vsel %vm2926, %v4576, 0
      %v4694 = vsel %vm2926, %v4578, 0
      %v4697 = vsel %vm2926, %v4580, 0
      %v4700 = vsel %vm2926, %v4582, 0
      %v4703 = vsel %vm2926, %v4584, 0
      %v4706 = vsel %vm2926, %v4586, 0
      %4708 = vmatprep.subr.mxu0 0.0
      %4709 = vmatpush1.msra.mxu0 %v4587
      %4710 = vmatprep.subr.mxu0 0.0
      %4711 = vmatpush1.msra.mxu0 %v4588
      %4712 = vmatprep.subr.mxu0 0.0
      %4713 = vmatpush1.msra.mxu0 %v4589
      %4714 = vmatprep.subr.mxu0 0.0
      %4715 = vmatpush1.msra.mxu0 %v4590
      %4716 = vmatprep.subr.mxu0 0.0
      %4717 = vmatpush1.msra.mxu0 %v4591
      %4718 = vmatprep.subr.mxu0 0.0
      %4719 = vmatpush1.msra.mxu0 %v4592
      %4720 = vmatprep.subr.mxu0 0.0
      %4721 = vmatpush1.msra.mxu0 %v4593
      %4722 = vmatprep.subr.mxu0 0.0
      %4723 = vmatpush1.msra.mxu0 %v4594
      %4724 = vmatprep.subr.mxu0 0.0
      %4725 = vmatpush1.msra.mxu0 %v4595
      %4726 = vmatprep.subr.mxu0 0.0
      %4727 = vmatpush1.msra.mxu0 %v4596
      %4728 = vmatprep.subr.mxu0 0.0
      %4729 = vmatpush1.msra.mxu0 %v4597
      %4730 = vmatprep.subr.mxu0 0.0
      %4731 = vmatpush1.msra.mxu0 %v4598
      %4732 = vmatprep.subr.mxu0 0.0
      %4733 = vmatpush1.msra.mxu0 %v4599
      %4734 = vmatprep.subr.mxu0 0.0
      %4735 = vmatpush1.msra.mxu0 %v4600
      %4736 = vmatprep.subr.mxu0 0.0
      %4737 = vmatpush1.msra.mxu0 %v4601
      %4738 = vmatprep.subr.mxu0 0.0
      %4739 = vmatpush1.msra.mxu0 %v4602
      %4740 = vmatprep.subr.mxu0 0.0
      %4741 = vmatpush1.msra.mxu0 %v4603
      %4742 = vmatprep.subr.mxu0 0.0
      %4743 = vmatpush1.msra.mxu0 %v4604
      %4744 = vmatprep.subr.mxu0 0.0
      %4745 = vmatpush1.msra.mxu0 0.0
      %4746 = vmatprep.subr.mxu0 0.0
      %4747 = vmatpush1.msra.mxu0 0.0
      %4748 = vmatprep.subr.mxu0 0.0
      %4749 = vmatpush1.msra.mxu0 0.0
      %4750 = vmatprep.subr.mxu0 0.0
      %4751 = vmatpush1.msra.mxu0 0.0
      %4752 = vmatprep.subr.mxu0 0.0
      %4753 = vmatpush1.msra.mxu0 0.0
      %4754 = vmatprep.subr.mxu0 0.0
      %4755 = vmatpush1.msra.mxu0 0.0
      %4756 = vmatprep.subr.mxu0 0.0
      %4757 = vmatpush1.msra.mxu0 0.0
      %4758 = vmatprep.subr.mxu0 0.0
      %4759 = vmatpush1.msra.mxu0 0.0
      %4760 = vmatprep.subr.mxu0 0.0
      %4761 = vmatpush1.msra.mxu0 0.0
      %4762 = vmatprep.subr.mxu0 0.0
      %4763 = vmatpush1.msra.mxu0 0.0
      %4764 = vmatprep.subr.mxu0 0.0
      %4765 = vmatpush1.msra.mxu0 0.0
      %4766 = vmatprep.subr.mxu0 0.0
      %4767 = vmatpush1.msra.mxu0 0.0
      %4768 = vmatprep.subr.mxu0 0.0
      %4769 = vmatpush1.msra.mxu0 0.0
      %4770 = vmatprep.subr.mxu0 0.0
      %4771 = vmatpush1.msra.mxu0 0.0
      %4772 = vmatprep.mubr.f32.mxu0 %v4613
      %4773 = vmatmul.mubr.f32.gmra.mrb[0].mxu0 %v4523
      %v4774 = vpop.f32.mrb[0].mxu0
      %v4775 = vadd.f32 %v4610, %v4774
      %v4776 = vpop.f32.mrb[0].mxu0
      %4777 = vmatprep.mubr.f32.mxu0 %v4616
      %4778 = vmatmul.mubr.f32.gmra.mrb[0].mxu0 %v4525
      %v4779 = vpop.f32.mrb[0].mxu0
      %v4780 = vadd.f32 %v4610, %v4779
      %v4781 = vpop.f32.mrb[0].mxu0
      %4782 = vmatprep.mubr.f32.mxu0 %v4619
      %4783 = vmatmul.mubr.f32.gmra.mrb[0].mxu0 %v4527
      %v4784 = vpop.f32.mrb[0].mxu0
      %v4785 = vadd.f32 %v4610, %v4784
      %v4786 = vpop.f32.mrb[0].mxu0
      %4787 = vmatprep.mubr.f32.mxu0 %v4622
      %4788 = vmatmul.mubr.f32.gmra.mrb[0].mxu0 %v4529
      %v4789 = vpop.f32.mrb[0].mxu0
      %v4790 = vadd.f32 %v4610, %v4789
      %v4791 = vpop.f32.mrb[0].mxu0
      %4792 = vmatprep.mubr.f32.mxu0 %v4625
      %4793 = vmatmul.mubr.f32.gmra.mrb[0].mxu0 %v4531
      %v4794 = vpop.f32.mrb[0].mxu0
      %v4795 = vadd.f32 %v4610, %v4794
      %v4796 = vpop.f32.mrb[0].mxu0
      %4797 = vmatprep.mubr.f32.mxu0 %v4628
      %4798 = vmatmul.mubr.f32.gmra.mrb[0].mxu0 %v4533
      %v4799 = vpop.f32.mrb[0].mxu0
      %v4800 = vadd.f32 %v4610, %v4799
      %v4801 = vpop.f32.mrb[0].mxu0
      %4802 = vmatprep.mubr.f32.mxu0 %v4631
      %4803 = vmatmul.mubr.f32.gmra.mrb[0].mxu0 %v4535
      %v4804 = vpop.f32.mrb[0].mxu0
      %v4805 = vadd.f32 %v4610, %v4804
      %v4806 = vpop.f32.mrb[0].mxu0
      %4807 = vmatprep.mubr.f32.mxu0 %v4634
      %4808 = vmatmul.mubr.f32.gmra.mrb[0].mxu0 %v4537
      %v4809 = vpop.f32.mrb[0].mxu0
      %v4810 = vadd.f32 %v4610, %v4809
      %v4811 = vpop.f32.mrb[0].mxu0
      %4812 = vmatprep.mubr.f32.mxu0 %v4637
      %4813 = vmatmul.mubr.f32.gmra.mrb[0].mxu0 %v4539
      %v4814 = vpop.f32.mrb[0].mxu0
      %v4815 = vadd.f32 %v4610, %v4814
      %v4816 = vpop.f32.mrb[0].mxu0
      %4817 = vmatprep.mubr.f32.mxu0 %v4640
      %4818 = vmatmul.mubr.f32.gmra.mrb[0].mxu0 %v4541
      %v4819 = vpop.f32.mrb[0].mxu0
      %v4820 = vadd.f32 %v4610, %v4819
      %v4821 = vpop.f32.mrb[0].mxu0
      %4822 = vmatprep.mubr.f32.mxu0 %v4643
      %4823 = vmatmul.mubr.f32.gmra.mrb[0].mxu0 %v4543
      %v4824 = vpop.f32.mrb[0].mxu0
      %v4825 = vadd.f32 %v4610, %v4824
      %v4826 = vpop.f32.mrb[0].mxu0
      %4827 = vmatprep.mubr.f32.mxu0 %v4646
      %4828 = vmatmul.mubr.f32.gmra.mrb[0].mxu0 %v4545
      %v4829 = vpop.f32.mrb[0].mxu0
      %v4830 = vadd.f32 %v4610, %v4829
      %v4831 = vpop.f32.mrb[0].mxu0
      %4832 = vmatprep.mubr.f32.mxu0 %v4649
      %4833 = vmatmul.mubr.f32.gmra.mrb[0].mxu0 %v4547
      %v4834 = vpop.f32.mrb[0].mxu0
      %v4835 = vadd.f32 %v4610, %v4834
      %v4836 = vpop.f32.mrb[0].mxu0
      %4837 = vmatprep.mubr.f32.mxu0 %v4652
      %4838 = vmatmul.mubr.f32.gmra.mrb[0].mxu0 %v4549
      %v4839 = vpop.f32.mrb[0].mxu0
      %v4840 = vadd.f32 %v4610, %v4839
      %v4841 = vpop.f32.mrb[0].mxu0
      %4842 = vmatprep.mubr.f32.mxu0 %v4655
      %4843 = vmatmul.mubr.f32.gmra.mrb[0].mxu0 %v4551
      %v4844 = vpop.f32.mrb[0].mxu0
      %v4845 = vadd.f32 %v4610, %v4844
      %v4846 = vpop.f32.mrb[0].mxu0
      %4847 = vmatprep.mubr.f32.mxu0 %v4658
      %4848 = vmatmul.mubr.f32.gmra.mrb[0].mxu0 %v4553
      %v4849 = vpop.f32.mrb[0].mxu0
      %v4850 = vadd.f32 %v4610, %v4849
      %v4851 = vpop.f32.mrb[0].mxu0
      %4852 = vmatprep.mubr.f32.mxu0 %v4661
      %4853 = vmatmul.mubr.f32.gmra.mrb[0].mxu0 %v4555
      %v4854 = vpop.f32.mrb[0].mxu0
      %v4855 = vadd.f32 %v4610, %v4854
      %v4856 = vpop.f32.mrb[0].mxu0
      %4857 = vmatprep.mubr.f32.mxu0 %v4664
      %4858 = vmatmul.mubr.f32.gmra.mrb[0].mxu0 %v4557
      %v4859 = vpop.f32.mrb[0].mxu0
      %v4860 = vadd.f32 %v4610, %v4859
      %v4861 = vpop.f32.mrb[0].mxu0
      %4862 = vmatprep.mubr.f32.mxu0 %v4667
      %4863 = vmatmul.mubr.f32.gmra.mrb[0].mxu0 %v4559
      %v4864 = vpop.f32.mrb[0].mxu0
      %v4865 = vadd.f32 %v4610, %v4864
      %v4866 = vpop.f32.mrb[0].mxu0
      %4867 = vmatprep.mubr.f32.mxu0 %v4670
      %4868 = vmatmul.mubr.f32.gmra.mrb[0].mxu0 %v4561
      %v4869 = vpop.f32.mrb[0].mxu0
      %v4870 = vadd.f32 %v4610, %v4869
      %v4871 = vpop.f32.mrb[0].mxu0
      %4872 = vmatprep.mubr.f32.mxu0 %v4673
      %4873 = vmatmul.mubr.f32.gmra.mrb[0].mxu0 %v4563
      %v4874 = vpop.f32.mrb[0].mxu0
      %v4875 = vadd.f32 %v4610, %v4874
      %v4876 = vpop.f32.mrb[0].mxu0
      %4877 = vmatprep.mubr.f32.mxu0 %v4676
      %4878 = vmatmul.mubr.f32.gmra.mrb[0].mxu0 %v4565
      %v4879 = vpop.f32.mrb[0].mxu0
      %v4880 = vadd.f32 %v4610, %v4879
      %v4881 = vpop.f32.mrb[0].mxu0
      %4882 = vmatprep.mubr.f32.mxu0 %v4679
      %4883 = vmatmul.mubr.f32.gmra.mrb[0].mxu0 %v4567
      %v4884 = vpop.f32.mrb[0].mxu0
      %v4885 = vadd.f32 %v4610, %v4884
      %v4886 = vpop.f32.mrb[0].mxu0
      %4887 = vmatprep.mubr.f32.mxu0 %v4682
      %4888 = vmatmul.mubr.f32.gmra.mrb[0].mxu0 %v4569
      %v4889 = vpop.f32.mrb[0].mxu0
      %v4890 = vadd.f32 %v4610, %v4889
      %v4891 = vpop.f32.mrb[0].mxu0
      %4892 = vmatprep.mubr.f32.mxu0 %v4685
      %4893 = vmatmul.mubr.f32.gmra.mrb[0].mxu0 %v4571
      %v4894 = vpop.f32.mrb[0].mxu0
      %v4895 = vadd.f32 %v4610, %v4894
      %v4896 = vpop.f32.mrb[0].mxu0
      %4897 = vmatprep.mubr.f32.mxu0 %v4688
      %4898 = vmatmul.mubr.f32.gmra.mrb[0].mxu0 %v4573
      %v4899 = vpop.f32.mrb[0].mxu0
      %v4900 = vadd.f32 %v4610, %v4899
      %v4901 = vpop.f32.mrb[0].mxu0
      %4902 = vmatprep.mubr.f32.mxu0 %v4691
      %4903 = vmatmul.mubr.f32.gmra.mrb[0].mxu0 %v4575
      %v4904 = vpop.f32.mrb[0].mxu0
      %v4905 = vadd.f32 %v4610, %v4904
      %v4906 = vpop.f32.mrb[0].mxu0
      %4907 = vmatprep.mubr.f32.mxu0 %v4694
      %4908 = vmatmul.mubr.f32.gmra.mrb[0].mxu0 %v4577
      %v4909 = vpop.f32.mrb[0].mxu0
      %v4910 = vadd.f32 %v4610, %v4909
      %v4911 = vpop.f32.mrb[0].mxu0
      %4912 = vmatprep.mubr.f32.mxu0 %v4697
      %4913 = vmatmul.mubr.f32.gmra.mrb[0].mxu0 %v4579
      %v4914 = vpop.f32.mrb[0].mxu0
      %v4915 = vadd.f32 %v4610, %v4914
      %v4916 = vpop.f32.mrb[0].mxu0
      %4917 = vmatprep.mubr.f32.mxu0 %v4700
      %4918 = vmatmul.mubr.f32.gmra.mrb[0].mxu0 %v4581
      %v4919 = vpop.f32.mrb[0].mxu0
      %v4920 = vadd.f32 %v4610, %v4919
      %v4921 = vpop.f32.mrb[0].mxu0
      %4922 = vmatprep.mubr.f32.mxu0 %v4703
      %4923 = vmatmul.mubr.f32.gmra.mrb[0].mxu0 %v4583
      %v4924 = vpop.f32.mrb[0].mxu0
      %v4925 = vadd.f32 %v4610, %v4924
      %v4926 = vpop.f32.mrb[0].mxu0
      %4927 = vmatprep.mubr.f32.mxu0 %v4706
      %4928 = vmatmul.mubr.f32.gmra.mrb[0].mxu0 %v4585
      %v4929 = vpop.f32.mrb[0].mxu0
      %v4930 = vadd.f32 %v4610, %v4929
      %v4931 = vpop.f32.mrb[0].mxu0
      %4932 = vdwg.mxu0
      %v4933 = vmax.f32 %v4775, %v4780
      %v4934 = vmax.f32 %v4795, %v4800
      %v4935 = vmax.f32 %v4815, %v4820
      %v4936 = vmax.f32 %v4835, %v4840
      %v4937 = vmax.f32 %v4855, %v4860
      %v4938 = vmax.f32 %v4875, %v4880
      %v4939 = vmax.f32 %v4895, %v4900
      %v4940 = vmax.f32 %v4915, %v4920
      %v4941 = vmax.f32 %v4785, %v4790
      %v4942 = vmax.f32 %v4805, %v4810
      %v4943 = vmax.f32 %v4825, %v4830
      %v4944 = vmax.f32 %v4845, %v4850
      %v4945 = vmax.f32 %v4865, %v4870
      %v4946 = vmax.f32 %v4885, %v4890
      %v4947 = vmax.f32 %v4905, %v4910
      %v4948 = vmax.f32 %v4925, %v4930
      %v4949 = vmax.f32 %v4933, %v4941
      %v4950 = vmax.f32 %v4934, %v4942
      %v4951 = vmax.f32 %v4935, %v4943
      %v4952 = vmax.f32 %v4936, %v4944
      %v4953 = vmax.f32 %v4937, %v4945
      %v4954 = vmax.f32 %v4938, %v4946
      %v4955 = vmax.f32 %v4939, %v4947
      %v4956 = vmax.f32 %v4940, %v4948
      %4957 = vst.msk [vmem:[#allocation4] sm:$0xff] %vm2926, %v4949
      %4958 = vst.msk [vmem:[#allocation4 + $0x8] sm:$0xff] %vm2926, %v4950
      %4959 = vst.msk [vmem:[#allocation4 + $0x10] sm:$0xff] %vm2926, %v4951
      %4960 = vst.msk [vmem:[#allocation4 + $0x18] sm:$0xff] %vm2926, %v4952
      %4961 = vst.msk [vmem:[#allocation4 + $0x20] sm:$0xff] %vm2926, %v4953
      %4962 = vst.msk [vmem:[#allocation4 + $0x28] sm:$0xff] %vm2926, %v4954
      %4963 = vst.msk [vmem:[#allocation4 + $0x30] sm:$0xff] %vm2926, %v4955
      %4964 = vst.msk [vmem:[#allocation4 + $0x38] sm:$0xff] %vm2926, %v4956
      %v4965 = vld [vmem:[#allocation4] ss:$4 sm:$0xff]
      %s4966 = scalar_lea.vmem [#allocation4], 32
      %v4967 = vld [vmem:[%s4966] ss:$4 sm:$0xff]
      %s4968 = scalar_lea.vmem [#allocation4], 1
      %v4969 = vld [vmem:[%s4968] ss:$4 sm:$0xff]
      %s4970 = scalar_lea.vmem [#allocation4], 33
      %v4971 = vld [vmem:[%s4970] ss:$4 sm:$0xff]
      %v4972 = vmax.f32 %v4965, %v4969
      %v4973 = vmax.f32 %v4967, %v4971
      %s4974 = scalar_lea.vmem [#allocation4], 2
      %v4975 = vld [vmem:[%s4974] ss:$4 sm:$0xff]
      %s4976 = scalar_lea.vmem [#allocation4], 34
      %v4977 = vld [vmem:[%s4976] ss:$4 sm:$0xff]
      %s4978 = scalar_lea.vmem [#allocation4], 3
      %v4979 = vld [vmem:[%s4978] ss:$4 sm:$0xff]
      %s4980 = scalar_lea.vmem [#allocation4], 35
      %v4981 = vld [vmem:[%s4980] ss:$4 sm:$0xff]
      %v4982 = vmax.f32 %v4975, %v4979
      %v4983 = vmax.f32 %v4977, %v4981
      %v4984 = vmax.f32 %v4972, %v4982
      %v4985 = vmax.f32 %v4973, %v4983
      %v4986 = vmax.f32 %v4984, 0.0
      %v4987 = vmax.f32 %v4985, 0.0
      %4988 = vst.msk [vmem:[#allocation5] sm:$0xff] %vm2926, %v4986
      %4989 = vst.msk [vmem:[#allocation5 + $0x8] sm:$0xff] %vm2926, %v4987
      %v4990 = vld [vmem:[#allocation5] ss:$4 sm:$0xf]
      %vm4991 = vcmask 125952
      %4992 = vst.msk [vmem:[#allocation6] sm:$0xf] %vm4991, %v4990
      %s4993 = scalar_lea.vmem [#allocation5], 1
      %v4994 = vld [vmem:[%s4993] ss:$4 sm:$0xf]
      %4996 = vrot.lane.b32.xlu0 %v4994, 16
      %v4997 = vpop.permute.xlu0 %4996
      %vm4999 = vcmask 257152
      %5000 = vst.msk [vmem:[#allocation6] sm:$0xf] %vm4999, %v4997
      %s5001 = scalar_lea.vmem [#allocation5], 2
      %v5002 = vld [vmem:[%s5001] ss:$4 sm:$0xf]
      %5004 = vrot.lane.b32.xlu0 %v5002, 32
      %v5005 = vpop.permute.xlu0 %5004
      %vm5007 = vcmask 388352
      %5008 = vst.msk [vmem:[#allocation6] sm:$0xf] %vm5007, %v5005
      %s5009 = scalar_lea.vmem [#allocation5], 3
      %v5010 = vld [vmem:[%s5009] ss:$4 sm:$0xf]
      %5012 = vrot.lane.b32.xlu0 %v5010, 48
      %v5013 = vpop.permute.xlu0 %5012
      %vm5015 = vcmask 519552
      %5016 = vst.msk [vmem:[#allocation6] sm:$0xf] %vm5015, %v5013
      %v5017 = vld [vmem:[#allocation6] sm:$0xf]
      %v5018 = vld [vmem:[%s5] sm:$0xff]
      %v5019 = vld [vmem:[%s5 + $0x8] sm:$0xff]
      %v5020 = vld [vmem:[%s5 + $0x10] sm:$0xff]
      %v5021 = vld [vmem:[%s5 + $0x18] sm:$0xff]
      %v5022 = vld [vmem:[%s5 + $0x20] sm:$0xff]
      %v5023 = vld [vmem:[%s5 + $0x28] sm:$0xff]
      %v5024 = vld [vmem:[%s5 + $0x30] sm:$0xff]
      %v5025 = vld [vmem:[%s5 + $0x38] sm:$0xff]
      %v5026 = vld [vmem:[%s6] sm:$0x1]
      %v5028 = vlaneseq
      %v5029 = vshrl.u32 %v5028, 7
      %v5030 = vsub.s32 0, %v5029
      %v5031 = vrot.slane %v5026, %v5030
      %vm5033 = vcmask 523264
      %v5035 = vsel %vm5033, %v5017, 0
      %5037 = vmatprep.subr.mxu0 0.0
      %5038 = vmatpush1.msra.mxu0 %v5018
      %5039 = vmatprep.subr.mxu0 0.0
      %5040 = vmatpush1.msra.mxu0 %v5019
      %5041 = vmatprep.subr.mxu0 0.0
      %5042 = vmatpush1.msra.mxu0 %v5020
      %5043 = vmatprep.subr.mxu0 0.0
      %5044 = vmatpush1.msra.mxu0 %v5021
      %5045 = vmatprep.subr.mxu0 0.0
      %5046 = vmatpush1.msra.mxu0 %v5022
      %5047 = vmatprep.subr.mxu0 0.0
      %5048 = vmatpush1.msra.mxu0 %v5023
      %5049 = vmatprep.subr.mxu0 0.0
      %5050 = vmatpush1.msra.mxu0 %v5024
      %5051 = vmatprep.subr.mxu0 0.0
      %5052 = vmatpush1.msra.mxu0 %v5025
      %5053 = vmatprep.subr.mxu0 0.0
      %5054 = vmatpush1.msra.mxu0 0.0
      %5055 = vmatprep.subr.mxu0 0.0
      %5056 = vmatpush1.msra.mxu0 0.0
      %5057 = vmatprep.subr.mxu0 0.0
      %5058 = vmatpush1.msra.mxu0 0.0
      %5059 = vmatprep.subr.mxu0 0.0
      %5060 = vmatpush1.msra.mxu0 0.0
      %5061 = vmatprep.subr.mxu0 0.0
      %5062 = vmatpush1.msra.mxu0 0.0
      %5063 = vmatprep.subr.mxu0 0.0
      %5064 = vmatpush1.msra.mxu0 0.0
      %5065 = vmatprep.subr.mxu0 0.0
      %5066 = vmatpush1.msra.mxu0 0.0
      %5067 = vmatprep.subr.mxu0 0.0
      %5068 = vmatpush1.msra.mxu0 0.0
      %5069 = vmatprep.subr.mxu0 0.0
      %5070 = vmatpush1.msra.mxu0 0.0
      %5071 = vmatprep.subr.mxu0 0.0
      %5072 = vmatpush1.msra.mxu0 0.0
      %5073 = vmatprep.subr.mxu0 0.0
      %5074 = vmatpush1.msra.mxu0 0.0
      %5075 = vmatprep.subr.mxu0 0.0
      %5076 = vmatpush1.msra.mxu0 0.0
      %5077 = vmatprep.subr.mxu0 0.0
      %5078 = vmatpush1.msra.mxu0 0.0
      %5079 = vmatprep.subr.mxu0 0.0
      %5080 = vmatpush1.msra.mxu0 0.0
      %5081 = vmatprep.subr.mxu0 0.0
      %5082 = vmatpush1.msra.mxu0 0.0
      %5083 = vmatprep.subr.mxu0 0.0
      %5084 = vmatpush1.msra.mxu0 0.0
      %5085 = vmatprep.subr.mxu0 0.0
      %5086 = vmatpush1.msra.mxu0 0.0
      %5087 = vmatprep.subr.mxu0 0.0
      %5088 = vmatpush1.msra.mxu0 0.0
      %5089 = vmatprep.subr.mxu0 0.0
      %5090 = vmatpush1.msra.mxu0 0.0
      %5091 = vmatprep.subr.mxu0 0.0
      %5092 = vmatpush1.msra.mxu0 0.0
      %5093 = vmatprep.subr.mxu0 0.0
      %5094 = vmatpush1.msra.mxu0 0.0
      %5095 = vmatprep.subr.mxu0 0.0
      %5096 = vmatpush1.msra.mxu0 0.0
      %5097 = vmatprep.subr.mxu0 0.0
      %5098 = vmatpush1.msra.mxu0 0.0
      %5099 = vmatprep.subr.mxu0 0.0
      %5100 = vmatpush1.msra.mxu0 0.0
      %5101 = vmatprep.mubr.f32.mxu0 0.0
      %5102 = vmatmul.mubr.f32.gmra.mrb[0].mxu0 %v5035
      %v5103 = vpop.f32.mrb[0].mxu0
      %v5104 = vadd.f32 %v5031, %v5103
      %v5105 = vpop.f32.mrb[0].mxu0
      %5106 = vdwg.mxu0
      %vm5107 = vcmask 27648
      %5108 = vst.msk [vmem:[%s281] sm:$0xf] %vm5107, %v5104
      %p5109 = scmp.lt.s32.totalorder %s18, 1
      %s5110 = scalar_select %p5109, %s18, 1
      %s5111 = smul.addr %s5110, 4
      %s5112 = scalar_lea.vmem %s7, %s5111
      // Predicated region
      $region49: #{net_forward.1} parent=47 // pred_check
        %p5113 = pneg %p188
      $region50: #{net_forward.1} parent=47 // pred_check_branch
        %5115 = sbr.rel (%p5113) target = $region52
      $region51: #{net_forward.1} parent=47 // pred_region
        _
      $region52: #{net_forward.1} parent=47 // pred_fallthru
        _
    $region48: #{net_forward.1} parent=5 // pred_fallthru
      _
    %p5116 = scmp.le.s32.totalorder 2, %s13
    // Predicated region
    $region53: #{net_forward.1} parent=5 // pred_check
      %p5117 = pneg %p5116
    $region54: #{net_forward.1} parent=5 // pred_check_branch
      %5119 = sbr.rel (%p5117) target = $region56
    $region55: #{net_forward.1} parent=5 // pred_region
      %s5120 = ssub.s32 %s13, 2
      // Predicated region
      $region57: #{net_forward.1} parent=55 // pred_check
        %p5121 = pneg %p194
      $region58: #{net_forward.1} parent=55 // pred_check_branch
        %5123 = sbr.rel (%p5121) target = $region60
      $region59: #{net_forward.1} parent=55 // pred_region
        %p5124 = scmp.lt.s32.totalorder %s19, 1
        %s5125 = scalar_select %p5124, %s19, 1
        %s5126 = smul.addr %s5125, 4
        %s5127 = scalar_lea.vmem %s7, %s5126
      $region60: #{net_forward.1} parent=55 // pred_fallthru
        _
    $region56: #{net_forward.1} parent=5 // pred_fallthru
      _
  $region6: #{net_forward.1} parent=0 // loop_footer
    %s17 = sadd.s32 1, %s13
  $region7: #{net_forward.1} parent=0 // loop_footer_branch
    %12 = sbr.rel target = $region3
  $region8: #{net_forward.1} parent=0 // loop_exit
    _

</llo_original>
